<compile_context>
chip_gen: v7x
topology: tpu7x:2x2x1
jax: 0.10.0
libtpu: 0.0.40
codegen_flags: <defaults>
</compile_context>

<pallas_src>
import jax
import jax.numpy as jnp
from jax.experimental import pallas as pl
from jax.experimental.pallas import tpu as pltpu

D_MODEL = 32
D_FF = 64
HEADS = 4
LAYERS = 2
DROPOUT = 0.1
EPS = 1e-5  # nn.LayerNorm default
NEG_INF = -999999999.0


def _default_batch_tile(B):
    """v7x (2 TensorCores) -> keep 2 grid steps; v5e/v6e -> one big step."""
    try:
        kind = jax.devices()[0].device_kind.lower()
    except Exception:
        kind = ""
    if B >= 2 and B % 2 == 0 and ("v7" in kind or "7x" in kind):
        return B // 2
    return B


def make_encoder_kernel(heads, layers, batch_tile, seq_len, d_model, with_attn):
    """Builds the fused multi-layer encoder kernel body."""
    dk = d_model // heads
    scale = 1.0 / float(dk) ** 0.5
    M = batch_tile * seq_len

    def kernel(x_ref, mask_bias_ref, wqkv_ref, wo_ref, g_ref, beta_ref,
               w1_ref, b1_ref, w2_ref, b2_ref, *outs):
        if with_attn:
            out_ref, attn_ref = outs
        else:
            (out_ref,) = outs
            attn_ref = None

        # Flatten the batch tile into the row dim: bigger M for every matmul.
        x = x_ref[...].reshape(M, d_model)           # (M, D)
        mask_bias = mask_bias_ref[...]                # (T, T) additive (-1e9 masked)

        for l in range(layers):                       # static unroll: one launch total
            # Fused QKV projection: one MXU pass for the whole batch tile.
            qkv = jnp.dot(x, wqkv_ref[l], preferred_element_type=jnp.float32)  # (M, 3D)
            wo_l = wo_ref[l]                          # (D, D), eval-dropout pre-folded

            mha_rows = []
            for bt in range(batch_tile):              # per batch row in the tile
                r0 = bt * seq_len
                head_attn = []
                mha_bt = jnp.zeros((seq_len, d_model), jnp.float32)
                for h in range(heads):                # static unroll over heads
                    c = h * dk
                    qh = qkv[r0:r0 + seq_len, c:c + dk]
                    kh = qkv[r0:r0 + seq_len, d_model + c:d_model + c + dk]
                    vh = qkv[r0:r0 + seq_len, 2 * d_model + c:2 * d_model + c + dk]

                    scores = jnp.dot(qh, kh.T,
                                     preferred_element_type=jnp.float32) * scale
                    scores = scores + mask_bias       # additive mask (no cmp+select)
                    scores = scores - jnp.max(scores, axis=-1, keepdims=True)
                    p = jnp.exp(scores)
                    attn = p * pl.reciprocal(jnp.sum(p, axis=-1, keepdims=True),
                                             approx=True)
                    if attn_ref is not None:
                        head_attn.append(attn)
                    # Fold W_O directly into the head loop (no (T,D) scratch slab).
                    mha_bt = mha_bt + jnp.dot(
                        jnp.dot(attn, vh, preferred_element_type=jnp.float32),
                        wo_l[c:c + dk, :],
                        preferred_element_type=jnp.float32)
                if attn_ref is not None:
                    # One lane-denser (T, H*T) store per (layer, batch row).
                    attn_ref[l, bt] = jnp.concatenate(head_attn, axis=-1)
                mha_rows.append(mha_bt)

            mha = mha_rows[0] if batch_tile == 1 else jnp.concatenate(mha_rows, axis=0)

            gamma = g_ref[l]                          # (1, D) — used by both norms
            beta = beta_ref[l]

            def layer_norm(y):
                # single-pass: var = E[y^2] - mu^2
                mu = jnp.mean(y, axis=-1, keepdims=True)
                ms = jnp.mean(y * y, axis=-1, keepdims=True)
                return (y - mu) * jax.lax.rsqrt(ms - mu * mu + EPS) * gamma + beta

            x1 = layer_norm(mha + x)                  # norm1(attn_out + x)

            h1 = jnp.maximum(
                jnp.dot(x1, w1_ref[l], preferred_element_type=jnp.float32) + b1_ref[l],
                0.0)
            ffn = jnp.dot(h1, w2_ref[l], preferred_element_type=jnp.float32) + b2_ref[l]

            x = layer_norm(ffn + x1)                  # norm1 again (matches PyTorch)

        out_ref[...] = x.reshape(batch_tile, seq_len, d_model)

    return kernel


def encoder_forward_pallas(x, mask_f, packed, return_attention=True, batch_tile=None):
    """Single pallas_call for the whole encoder stack."""
    B, T, D = x.shape
    L = packed['wqkv'].shape[0]
    H = HEADS
    d_ff = packed['w1'].shape[-1]

    if batch_tile is None:
        batch_tile = _default_batch_tile(B)
    assert B % batch_tile == 0, "batch must divide evenly into batch tiles"
    steps = B // batch_tile

    # Additive mask bias, computed once in the wrapper.
    mask_bias = (mask_f * NEG_INF).astype(jnp.float32)

    kernel = make_encoder_kernel(H, L, batch_tile, T, D, return_attention)

    def full(shape):
        # whole array resident; constant index map => DMA'd once across the grid
        return pl.BlockSpec(shape, lambda g: (0,) * len(shape))

    in_specs = [
        pl.BlockSpec((batch_tile, T, D), lambda g: (g, 0, 0)),   # x (batch tile)
        full((T, T)),                                            # mask bias
        full((L, D, 3 * D)),                                     # fused W_QKV
        full((L, D, D)),                                         # W_O (keep folded)
        full((L, 1, D)), full((L, 1, D)),                        # gamma, beta
        full((L, D, d_ff)), full((L, 1, d_ff)),                  # W1, b1
        full((L, d_ff, D)), full((L, 1, D)),                     # W2, b2 (keep folded)
    ]
    out_specs = [pl.BlockSpec((batch_tile, T, D), lambda g: (g, 0, 0))]
    out_shape = [jax.ShapeDtypeStruct((B, T, D), jnp.float32)]
    if return_attention:
        out_specs.append(pl.BlockSpec((L, batch_tile, T, H * T),
                                      lambda g: (0, g, 0, 0)))
        out_shape.append(jax.ShapeDtypeStruct((L, B, T, H * T), jnp.float32))

    result = pl.pallas_call(
        kernel,
        out_shape=out_shape,
        grid_spec=pltpu.PrefetchScalarGridSpec(
            num_scalar_prefetch=0,
            grid=(steps,),
            in_specs=in_specs,
            out_specs=out_specs,
        ),
        compiler_params=pltpu.CompilerParams(
            dimension_semantics=("parallel",)),
    )(x, mask_bias,
      packed['wqkv'], packed['wo'], packed['gamma'], packed['beta'],
      packed['w1'], packed['b1'], packed['w2'], packed['b2'])

    out = result[0]
    if return_attention:
        attn_flat = result[1]                                  # (L, B, T, H*T)
        attn = attn_flat.reshape(L, B, T, H, T).transpose(0, 1, 3, 2, 4)  # (L,B,H,T,T)
        attention_record = [attn[l] for l in range(L)]
        return out, attention_record
    return out, None


# ---------------- parameter construction ----------------
def init_params(key):
    def lin(k, fin, fout):
        bound = 1.0 / jnp.sqrt(jnp.float32(fin))
        return jax.random.uniform(k, (fin, fout), jnp.float32, -bound, bound)

    layers = []
    for _ in range(LAYERS):
        keys = jax.random.split(key, 7)
        key = keys[0]
        layers.append({
            'wq': lin(keys[1], D_MODEL, D_MODEL),
            'wk': lin(keys[2], D_MODEL, D_MODEL),
            'wv': lin(keys[3], D_MODEL, D_MODEL),
            'wo': lin(keys[4], D_MODEL, D_MODEL),
            'gamma': jnp.ones((D_MODEL,), jnp.float32),
            'beta': jnp.zeros((D_MODEL,), jnp.float32),
            'w1': lin(keys[5], D_MODEL, D_FF),
            'b1': jnp.zeros((D_FF,), jnp.float32),
            'w2': lin(keys[6], D_FF, D_MODEL),
            'b2': jnp.zeros((D_MODEL,), jnp.float32),
        })
    return layers


def pack_params(layer_params, dropout_rate=DROPOUT):
    """Stack per-layer params; fuse W_Q/W_K/W_V; fold eval-dropout scale."""
    keep = 1.0 - dropout_rate   # PyTorch eval path: output * (1 - dropout_rate)
    stack = lambda name: jnp.stack([p[name] for p in layer_params])
    wqkv = jnp.stack([jnp.concatenate([p['wq'], p['wk'], p['wv']], axis=1)
                      for p in layer_params])                       # (L, D, 3D)
    return {
        'wqkv': wqkv,
        'wo': stack('wo') * keep,                                   # (L, D, D)
        'gamma': stack('gamma')[:, None, :],                        # (L, 1, D)
        'beta': stack('beta')[:, None, :],                          # (L, 1, D)
        'w1': stack('w1'),                                          # (L, D, D_FF)
        'b1': stack('b1')[:, None, :],                              # (L, 1, D_FF)
        'w2': stack('w2') * keep,                                   # (L, D_FF, D)
        'b2': stack('b2')[:, None, :] * keep,                       # (L, 1, D)
    }


# ---- pure-JAX reference (mirrors the PyTorch forward, train_flg=False) ----
def ref_encoder(x, mask_b, layer_params):
    attns = []
    for p in layer_params:
        B, T, D = x.shape
        dk = D // HEADS
        q = x @ p['wq']
        k = x @ p['wk']
        v = x @ p['wv']
        qh = q.reshape(B, T, HEADS, dk).transpose(0, 2, 1, 3)
        kh = k.reshape(B, T, HEADS, dk).transpose(0, 2, 1, 3)
        vh = v.reshape(B, T, HEADS, dk).transpose(0, 2, 1, 3)
        scores = qh @ kh.transpose(0, 1, 3, 2) / jnp.sqrt(jnp.float32(dk))
        scores = jnp.where(mask_b[None, None], NEG_INF, scores)
        attn = jax.nn.softmax(scores, axis=-1)
        head_cat = (attn @ vh).transpose(0, 2, 1, 3).reshape(B, T, D)
        mha = (head_cat @ p['wo']) * (1.0 - DROPOUT)

        def ln(y):
            mu = jnp.mean(y, axis=-1, keepdims=True)
            var = jnp.mean((y - mu) ** 2, axis=-1, keepdims=True)
            return (y - mu) / jnp.sqrt(var + EPS) * p['gamma'] + p['beta']

        x1 = ln(mha + x)
        ffn = (jnp.maximum(x1 @ p['w1'] + p['b1'], 0.0) @ p['w2'] + p['b2'])
        ffn = ffn * (1.0 - DROPOUT)
        x = ln(ffn + x1)
        attns.append(attn)
    return x, attns


if __name__ == "__main__":
    key = jax.random.PRNGKey(0)
    kx, kp = jax.random.split(key)

    B, T = 2, 8
    x = jax.random.normal(kx, (B, T, D_MODEL), jnp.float32)
    # pad-style mask: last two key positions masked for every query
    mask_b = jnp.zeros((T, T), jnp.bool_).at[:, T - 2:].set(True)
    mask_f = mask_b.astype(jnp.float32)

    layer_params = init_params(kp)
    packed = pack_params(layer_params)

    # fused kernel: one launch for the whole 2-layer stack (default batch tiling)
    out, attn_record = encoder_forward_pallas(x, mask_f, packed, return_attention=True)
    out = jax.block_until_ready(out)

    # correctness check vs. pure-JAX reference
    out_ref, attn_ref_list = ref_encoder(x, mask_b, layer_params)
    assert jnp.allclose(out, out_ref, atol=1e-3, rtol=1e-3), "output mismatch vs reference"
    for a_k, a_r in zip(attn_record, attn_ref_list):
        assert jnp.allclose(a_k, a_r, atol=1e-3, rtol=1e-3), "attention mismatch vs reference"

    # attention-free fast path, 2-step "parallel" grid (v7x-style) — must agree too
    out2, _ = encoder_forward_pallas(x, mask_f, packed,
                                     return_attention=False, batch_tile=1)
    out2 = jax.block_until_ready(out2)
    assert jnp.allclose(out2, out, atol=1e-3, rtol=1e-3), "return_attention=False path mismatch"

    print("KERNEL_OK")
</pallas_src>

<mosaic_0001>
module attributes {stable_mosaic.version = 11 : i64} {
  func.func @kernel(%arg0: i32, %arg1: memref<2x8x32xf32, #tpu.memory_space<vmem>>, %arg2: memref<8x8xf32, #tpu.memory_space<vmem>>, %arg3: memref<2x32x96xf32, #tpu.memory_space<vmem>>, %arg4: memref<2x32x32xf32, #tpu.memory_space<vmem>>, %arg5: memref<2x1x32xf32, #tpu.memory_space<vmem>>, %arg6: memref<2x1x32xf32, #tpu.memory_space<vmem>>, %arg7: memref<2x32x64xf32, #tpu.memory_space<vmem>>, %arg8: memref<2x1x64xf32, #tpu.memory_space<vmem>>, %arg9: memref<2x64x32xf32, #tpu.memory_space<vmem>>, %arg10: memref<2x1x32xf32, #tpu.memory_space<vmem>>, %arg11: memref<2x8x32xf32, #tpu.memory_space<vmem>>, %arg12: memref<2x2x8x32xf32, #tpu.memory_space<vmem>>) attributes {dimension_semantics = [#tpu.dimension_semantics<parallel>], iteration_bounds = array<i64: 1>, scalar_prefetch = 0 : i64, scratch_operands = 0 : i64, tpu.core_type = #tpu.core_type<tc>, window_params = [{transform_indices = @transform_0, window_bounds = array<i64: 2, 8, 32>}, {pipeline_mode = #tpu.pipeline_mode<synchronous>, transform_indices = @transform_1, window_bounds = array<i64: 8, 8>}, {pipeline_mode = #tpu.pipeline_mode<synchronous>, transform_indices = @transform_2, window_bounds = array<i64: 2, 32, 96>}, {pipeline_mode = #tpu.pipeline_mode<synchronous>, transform_indices = @transform_3, window_bounds = array<i64: 2, 32, 32>}, {pipeline_mode = #tpu.pipeline_mode<synchronous>, transform_indices = @transform_4, window_bounds = array<i64: 2, 1, 32>}, {pipeline_mode = #tpu.pipeline_mode<synchronous>, transform_indices = @transform_5, window_bounds = array<i64: 2, 1, 32>}, {pipeline_mode = #tpu.pipeline_mode<synchronous>, transform_indices = @transform_6, window_bounds = array<i64: 2, 32, 64>}, {pipeline_mode = #tpu.pipeline_mode<synchronous>, transform_indices = @transform_7, window_bounds = array<i64: 2, 1, 64>}, {pipeline_mode = #tpu.pipeline_mode<synchronous>, transform_indices = @transform_8, window_bounds = array<i64: 2, 64, 32>}, {pipeline_mode = #tpu.pipeline_mode<synchronous>, transform_indices = @transform_9, window_bounds = array<i64: 2, 1, 32>}, {transform_indices = @transform_10, window_bounds = array<i64: 2, 8, 32>}, {transform_indices = @transform_11, window_bounds = array<i64: 2, 2, 8, 32>}]} {
    %c0 = arith.constant 0 : index
    %c0_0 = arith.constant 0 : index
    %c0_1 = arith.constant 0 : index
    %0 = vector.load %arg1[%c0, %c0_0, %c0_1] : memref<2x8x32xf32, #tpu.memory_space<vmem>>, vector<2x8x32xf32>
    %1 = vector.shape_cast %0 : vector<2x8x32xf32> to vector<16x32xf32>
    %c0_2 = arith.constant 0 : index
    %c0_3 = arith.constant 0 : index
    %2 = vector.load %arg2[%c0_2, %c0_3] : memref<8x8xf32, #tpu.memory_space<vmem>>, vector<8x8xf32>
    %c0_4 = arith.constant 0 : index
    %c0_5 = arith.constant 0 : index
    %c0_6 = arith.constant 0 : index
    %3 = vector.load %arg3[%c0_4, %c0_5, %c0_6] : memref<2x32x96xf32, #tpu.memory_space<vmem>>, vector<1x32x96xf32>
    %4 = vector.shape_cast %3 : vector<1x32x96xf32> to vector<32x96xf32>
    %cst = arith.constant dense<0.000000e+00> : vector<16x96xf32>
    %5 = tpu.matmul %1, %4, %cst {dimension_numbers = #tpu.dot_dimension_numbers<[1], [0], [0], [1], [0, 0, 1, 1], [], []>} : vector<16x32xf32>, vector<32x96xf32>, vector<16x96xf32> -> vector<16x96xf32>
    %c0_7 = arith.constant 0 : index
    %c0_8 = arith.constant 0 : index
    %c0_9 = arith.constant 0 : index
    %6 = vector.load %arg4[%c0_7, %c0_8, %c0_9] : memref<2x32x32xf32, #tpu.memory_space<vmem>>, vector<1x32x32xf32>
    %7 = vector.shape_cast %6 : vector<1x32x32xf32> to vector<32x32xf32>
    %cst_10 = arith.constant 0.000000e+00 : f32
    %8 = vector.broadcast %cst_10 : f32 to vector<8x32xf32>
    %9 = vector.extract_strided_slice %5 {offsets = [0, 0], sizes = [8, 8], strides = [1, 1]} : vector<16x96xf32> to vector<8x8xf32>
    %10 = vector.extract_strided_slice %5 {offsets = [0, 32], sizes = [8, 8], strides = [1, 1]} : vector<16x96xf32> to vector<8x8xf32>
    %11 = vector.extract_strided_slice %5 {offsets = [0, 64], sizes = [8, 8], strides = [1, 1]} : vector<16x96xf32> to vector<8x8xf32>
    %12 = tpu.transpose %10, [1, 0] : vector<8x8xf32> -> vector<8x8xf32>
    %cst_11 = arith.constant dense<0.000000e+00> : vector<8x8xf32>
    %13 = tpu.matmul %9, %12, %cst_11 {dimension_numbers = #tpu.dot_dimension_numbers<[1], [0], [0], [1], [0, 0, 1, 1], [], []>} : vector<8x8xf32>, vector<8x8xf32>, vector<8x8xf32> -> vector<8x8xf32>
    %cst_12 = arith.constant 0.353553385 : f32
    %14 = vector.broadcast %cst_12 : f32 to vector<8x8xf32>
    %15 = arith.mulf %13, %14 : vector<8x8xf32>
    %16 = arith.addf %15, %2 : vector<8x8xf32>
    %cst_13 = arith.constant dense<0xFF800000> : vector<8xf32>
    %17 = vector.multi_reduction <maximumf>, %16, %cst_13 [1] : vector<8x8xf32> to vector<8xf32>
    %18 = vector.shape_cast %17 : vector<8xf32> to vector<8x1xf32>
    %19 = vector.broadcast %18 : vector<8x1xf32> to vector<8x8xf32>
    %20 = arith.subf %16, %19 : vector<8x8xf32>
    %21 = math.exp %20 : vector<8x8xf32>
    %cst_14 = arith.constant dense<0.000000e+00> : vector<8xf32>
    %22 = vector.multi_reduction <add>, %21, %cst_14 [1] : vector<8x8xf32> to vector<8xf32>
    %23 = vector.shape_cast %22 : vector<8xf32> to vector<8x1xf32>
    %24 = tpu.reciprocal %23 {approx = true} : vector<8x1xf32> -> vector<8x1xf32>
    %25 = vector.broadcast %24 : vector<8x1xf32> to vector<8x8xf32>
    %26 = arith.mulf %21, %25 : vector<8x8xf32>
    %cst_15 = arith.constant dense<0.000000e+00> : vector<8x8xf32>
    %27 = tpu.matmul %26, %11, %cst_15 {dimension_numbers = #tpu.dot_dimension_numbers<[1], [0], [0], [1], [0, 0, 1, 1], [], []>} : vector<8x8xf32>, vector<8x8xf32>, vector<8x8xf32> -> vector<8x8xf32>
    %28 = vector.extract_strided_slice %7 {offsets = [0, 0], sizes = [8, 32], strides = [1, 1]} : vector<32x32xf32> to vector<8x32xf32>
    %cst_16 = arith.constant dense<0.000000e+00> : vector<8x32xf32>
    %29 = tpu.matmul %27, %28, %cst_16 {dimension_numbers = #tpu.dot_dimension_numbers<[1], [0], [0], [1], [0, 0, 1, 1], [], []>} : vector<8x8xf32>, vector<8x32xf32>, vector<8x32xf32> -> vector<8x32xf32>
    %30 = arith.addf %8, %29 : vector<8x32xf32>
    %31 = vector.extract_strided_slice %5 {offsets = [0, 8], sizes = [8, 8], strides = [1, 1]} : vector<16x96xf32> to vector<8x8xf32>
    %32 = vector.extract_strided_slice %5 {offsets = [0, 40], sizes = [8, 8], strides = [1, 1]} : vector<16x96xf32> to vector<8x8xf32>
    %33 = vector.extract_strided_slice %5 {offsets = [0, 72], sizes = [8, 8], strides = [1, 1]} : vector<16x96xf32> to vector<8x8xf32>
    %34 = tpu.transpose %32, [1, 0] : vector<8x8xf32> -> vector<8x8xf32>
    %cst_17 = arith.constant dense<0.000000e+00> : vector<8x8xf32>
    %35 = tpu.matmul %31, %34, %cst_17 {dimension_numbers = #tpu.dot_dimension_numbers<[1], [0], [0], [1], [0, 0, 1, 1], [], []>} : vector<8x8xf32>, vector<8x8xf32>, vector<8x8xf32> -> vector<8x8xf32>
    %cst_18 = arith.constant 0.353553385 : f32
    %36 = vector.broadcast %cst_18 : f32 to vector<8x8xf32>
    %37 = arith.mulf %35, %36 : vector<8x8xf32>
    %38 = arith.addf %37, %2 : vector<8x8xf32>
    %cst_19 = arith.constant dense<0xFF800000> : vector<8xf32>
    %39 = vector.multi_reduction <maximumf>, %38, %cst_19 [1] : vector<8x8xf32> to vector<8xf32>
    %40 = vector.shape_cast %39 : vector<8xf32> to vector<8x1xf32>
    %41 = vector.broadcast %40 : vector<8x1xf32> to vector<8x8xf32>
    %42 = arith.subf %38, %41 : vector<8x8xf32>
    %43 = math.exp %42 : vector<8x8xf32>
    %cst_20 = arith.constant dense<0.000000e+00> : vector<8xf32>
    %44 = vector.multi_reduction <add>, %43, %cst_20 [1] : vector<8x8xf32> to vector<8xf32>
    %45 = vector.shape_cast %44 : vector<8xf32> to vector<8x1xf32>
    %46 = tpu.reciprocal %45 {approx = true} : vector<8x1xf32> -> vector<8x1xf32>
    %47 = vector.broadcast %46 : vector<8x1xf32> to vector<8x8xf32>
    %48 = arith.mulf %43, %47 : vector<8x8xf32>
    %cst_21 = arith.constant dense<0.000000e+00> : vector<8x8xf32>
    %49 = tpu.matmul %48, %33, %cst_21 {dimension_numbers = #tpu.dot_dimension_numbers<[1], [0], [0], [1], [0, 0, 1, 1], [], []>} : vector<8x8xf32>, vector<8x8xf32>, vector<8x8xf32> -> vector<8x8xf32>
    %50 = vector.extract_strided_slice %7 {offsets = [8, 0], sizes = [8, 32], strides = [1, 1]} : vector<32x32xf32> to vector<8x32xf32>
    %cst_22 = arith.constant dense<0.000000e+00> : vector<8x32xf32>
    %51 = tpu.matmul %49, %50, %cst_22 {dimension_numbers = #tpu.dot_dimension_numbers<[1], [0], [0], [1], [0, 0, 1, 1], [], []>} : vector<8x8xf32>, vector<8x32xf32>, vector<8x32xf32> -> vector<8x32xf32>
    %52 = arith.addf %30, %51 : vector<8x32xf32>
    %53 = vector.extract_strided_slice %5 {offsets = [0, 16], sizes = [8, 8], strides = [1, 1]} : vector<16x96xf32> to vector<8x8xf32>
    %54 = vector.extract_strided_slice %5 {offsets = [0, 48], sizes = [8, 8], strides = [1, 1]} : vector<16x96xf32> to vector<8x8xf32>
    %55 = vector.extract_strided_slice %5 {offsets = [0, 80], sizes = [8, 8], strides = [1, 1]} : vector<16x96xf32> to vector<8x8xf32>
    %56 = tpu.transpose %54, [1, 0] : vector<8x8xf32> -> vector<8x8xf32>
    %cst_23 = arith.constant dense<0.000000e+00> : vector<8x8xf32>
    %57 = tpu.matmul %53, %56, %cst_23 {dimension_numbers = #tpu.dot_dimension_numbers<[1], [0], [0], [1], [0, 0, 1, 1], [], []>} : vector<8x8xf32>, vector<8x8xf32>, vector<8x8xf32> -> vector<8x8xf32>
    %cst_24 = arith.constant 0.353553385 : f32
    %58 = vector.broadcast %cst_24 : f32 to vector<8x8xf32>
    %59 = arith.mulf %57, %58 : vector<8x8xf32>
    %60 = arith.addf %59, %2 : vector<8x8xf32>
    %cst_25 = arith.constant dense<0xFF800000> : vector<8xf32>
    %61 = vector.multi_reduction <maximumf>, %60, %cst_25 [1] : vector<8x8xf32> to vector<8xf32>
    %62 = vector.shape_cast %61 : vector<8xf32> to vector<8x1xf32>
    %63 = vector.broadcast %62 : vector<8x1xf32> to vector<8x8xf32>
    %64 = arith.subf %60, %63 : vector<8x8xf32>
    %65 = math.exp %64 : vector<8x8xf32>
    %cst_26 = arith.constant dense<0.000000e+00> : vector<8xf32>
    %66 = vector.multi_reduction <add>, %65, %cst_26 [1] : vector<8x8xf32> to vector<8xf32>
    %67 = vector.shape_cast %66 : vector<8xf32> to vector<8x1xf32>
    %68 = tpu.reciprocal %67 {approx = true} : vector<8x1xf32> -> vector<8x1xf32>
    %69 = vector.broadcast %68 : vector<8x1xf32> to vector<8x8xf32>
    %70 = arith.mulf %65, %69 : vector<8x8xf32>
    %cst_27 = arith.constant dense<0.000000e+00> : vector<8x8xf32>
    %71 = tpu.matmul %70, %55, %cst_27 {dimension_numbers = #tpu.dot_dimension_numbers<[1], [0], [0], [1], [0, 0, 1, 1], [], []>} : vector<8x8xf32>, vector<8x8xf32>, vector<8x8xf32> -> vector<8x8xf32>
    %72 = vector.extract_strided_slice %7 {offsets = [16, 0], sizes = [8, 32], strides = [1, 1]} : vector<32x32xf32> to vector<8x32xf32>
    %cst_28 = arith.constant dense<0.000000e+00> : vector<8x32xf32>
    %73 = tpu.matmul %71, %72, %cst_28 {dimension_numbers = #tpu.dot_dimension_numbers<[1], [0], [0], [1], [0, 0, 1, 1], [], []>} : vector<8x8xf32>, vector<8x32xf32>, vector<8x32xf32> -> vector<8x32xf32>
    %74 = arith.addf %52, %73 : vector<8x32xf32>
    %75 = vector.extract_strided_slice %5 {offsets = [0, 24], sizes = [8, 8], strides = [1, 1]} : vector<16x96xf32> to vector<8x8xf32>
    %76 = vector.extract_strided_slice %5 {offsets = [0, 56], sizes = [8, 8], strides = [1, 1]} : vector<16x96xf32> to vector<8x8xf32>
    %77 = vector.extract_strided_slice %5 {offsets = [0, 88], sizes = [8, 8], strides = [1, 1]} : vector<16x96xf32> to vector<8x8xf32>
    %78 = tpu.transpose %76, [1, 0] : vector<8x8xf32> -> vector<8x8xf32>
    %cst_29 = arith.constant dense<0.000000e+00> : vector<8x8xf32>
    %79 = tpu.matmul %75, %78, %cst_29 {dimension_numbers = #tpu.dot_dimension_numbers<[1], [0], [0], [1], [0, 0, 1, 1], [], []>} : vector<8x8xf32>, vector<8x8xf32>, vector<8x8xf32> -> vector<8x8xf32>
    %cst_30 = arith.constant 0.353553385 : f32
    %80 = vector.broadcast %cst_30 : f32 to vector<8x8xf32>
    %81 = arith.mulf %79, %80 : vector<8x8xf32>
    %82 = arith.addf %81, %2 : vector<8x8xf32>
    %cst_31 = arith.constant dense<0xFF800000> : vector<8xf32>
    %83 = vector.multi_reduction <maximumf>, %82, %cst_31 [1] : vector<8x8xf32> to vector<8xf32>
    %84 = vector.shape_cast %83 : vector<8xf32> to vector<8x1xf32>
    %85 = vector.broadcast %84 : vector<8x1xf32> to vector<8x8xf32>
    %86 = arith.subf %82, %85 : vector<8x8xf32>
    %87 = math.exp %86 : vector<8x8xf32>
    %cst_32 = arith.constant dense<0.000000e+00> : vector<8xf32>
    %88 = vector.multi_reduction <add>, %87, %cst_32 [1] : vector<8x8xf32> to vector<8xf32>
    %89 = vector.shape_cast %88 : vector<8xf32> to vector<8x1xf32>
    %90 = tpu.reciprocal %89 {approx = true} : vector<8x1xf32> -> vector<8x1xf32>
    %91 = vector.broadcast %90 : vector<8x1xf32> to vector<8x8xf32>
    %92 = arith.mulf %87, %91 : vector<8x8xf32>
    %cst_33 = arith.constant dense<0.000000e+00> : vector<8x8xf32>
    %93 = tpu.matmul %92, %77, %cst_33 {dimension_numbers = #tpu.dot_dimension_numbers<[1], [0], [0], [1], [0, 0, 1, 1], [], []>} : vector<8x8xf32>, vector<8x8xf32>, vector<8x8xf32> -> vector<8x8xf32>
    %94 = vector.extract_strided_slice %7 {offsets = [24, 0], sizes = [8, 32], strides = [1, 1]} : vector<32x32xf32> to vector<8x32xf32>
    %cst_34 = arith.constant dense<0.000000e+00> : vector<8x32xf32>
    %95 = tpu.matmul %93, %94, %cst_34 {dimension_numbers = #tpu.dot_dimension_numbers<[1], [0], [0], [1], [0, 0, 1, 1], [], []>} : vector<8x8xf32>, vector<8x32xf32>, vector<8x32xf32> -> vector<8x32xf32>
    %96 = arith.addf %74, %95 : vector<8x32xf32>
    %97 = tpu.concatenate %26, %48, %70, %92 in 1 : vector<8x8xf32>, vector<8x8xf32>, vector<8x8xf32>, vector<8x8xf32> -> vector<8x32xf32>
    %c0_35 = arith.constant 0 : index
    %c0_36 = arith.constant 0 : index
    %c0_37 = arith.constant 0 : index
    %c0_38 = arith.constant 0 : index
    %98 = vector.load %arg12[%c0_35, %c0_36, %c0_37, %c0_38] : memref<2x2x8x32xf32, #tpu.memory_space<vmem>>, vector<1x1x8x32xf32>
    %99 = vector.shape_cast %98 : vector<1x1x8x32xf32> to vector<8x32xf32>
    %100 = vector.shape_cast %97 : vector<8x32xf32> to vector<1x1x8x32xf32>
    tpu.vector_store %arg12[%c0_35, %c0_36, %c0_37, %c0_38], %100 {strides = array<i32>} : memref<2x2x8x32xf32, #tpu.memory_space<vmem>>, vector<1x1x8x32xf32>,
    %cst_39 = arith.constant 0.000000e+00 : f32
    %101 = vector.broadcast %cst_39 : f32 to vector<8x32xf32>
    %102 = vector.extract_strided_slice %5 {offsets = [8, 0], sizes = [8, 8], strides = [1, 1]} : vector<16x96xf32> to vector<8x8xf32>
    %103 = vector.extract_strided_slice %5 {offsets = [8, 32], sizes = [8, 8], strides = [1, 1]} : vector<16x96xf32> to vector<8x8xf32>
    %104 = vector.extract_strided_slice %5 {offsets = [8, 64], sizes = [8, 8], strides = [1, 1]} : vector<16x96xf32> to vector<8x8xf32>
    %105 = tpu.transpose %103, [1, 0] : vector<8x8xf32> -> vector<8x8xf32>
    %cst_40 = arith.constant dense<0.000000e+00> : vector<8x8xf32>
    %106 = tpu.matmul %102, %105, %cst_40 {dimension_numbers = #tpu.dot_dimension_numbers<[1], [0], [0], [1], [0, 0, 1, 1], [], []>} : vector<8x8xf32>, vector<8x8xf32>, vector<8x8xf32> -> vector<8x8xf32>
    %cst_41 = arith.constant 0.353553385 : f32
    %107 = vector.broadcast %cst_41 : f32 to vector<8x8xf32>
    %108 = arith.mulf %106, %107 : vector<8x8xf32>
    %109 = arith.addf %108, %2 : vector<8x8xf32>
    %cst_42 = arith.constant dense<0xFF800000> : vector<8xf32>
    %110 = vector.multi_reduction <maximumf>, %109, %cst_42 [1] : vector<8x8xf32> to vector<8xf32>
    %111 = vector.shape_cast %110 : vector<8xf32> to vector<8x1xf32>
    %112 = vector.broadcast %111 : vector<8x1xf32> to vector<8x8xf32>
    %113 = arith.subf %109, %112 : vector<8x8xf32>
    %114 = math.exp %113 : vector<8x8xf32>
    %cst_43 = arith.constant dense<0.000000e+00> : vector<8xf32>
    %115 = vector.multi_reduction <add>, %114, %cst_43 [1] : vector<8x8xf32> to vector<8xf32>
    %116 = vector.shape_cast %115 : vector<8xf32> to vector<8x1xf32>
    %117 = tpu.reciprocal %116 {approx = true} : vector<8x1xf32> -> vector<8x1xf32>
    %118 = vector.broadcast %117 : vector<8x1xf32> to vector<8x8xf32>
    %119 = arith.mulf %114, %118 : vector<8x8xf32>
    %cst_44 = arith.constant dense<0.000000e+00> : vector<8x8xf32>
    %120 = tpu.matmul %119, %104, %cst_44 {dimension_numbers = #tpu.dot_dimension_numbers<[1], [0], [0], [1], [0, 0, 1, 1], [], []>} : vector<8x8xf32>, vector<8x8xf32>, vector<8x8xf32> -> vector<8x8xf32>
    %121 = vector.extract_strided_slice %7 {offsets = [0, 0], sizes = [8, 32], strides = [1, 1]} : vector<32x32xf32> to vector<8x32xf32>
    %cst_45 = arith.constant dense<0.000000e+00> : vector<8x32xf32>
    %122 = tpu.matmul %120, %121, %cst_45 {dimension_numbers = #tpu.dot_dimension_numbers<[1], [0], [0], [1], [0, 0, 1, 1], [], []>} : vector<8x8xf32>, vector<8x32xf32>, vector<8x32xf32> -> vector<8x32xf32>
    %123 = arith.addf %101, %122 : vector<8x32xf32>
    %124 = vector.extract_strided_slice %5 {offsets = [8, 8], sizes = [8, 8], strides = [1, 1]} : vector<16x96xf32> to vector<8x8xf32>
    %125 = vector.extract_strided_slice %5 {offsets = [8, 40], sizes = [8, 8], strides = [1, 1]} : vector<16x96xf32> to vector<8x8xf32>
    %126 = vector.extract_strided_slice %5 {offsets = [8, 72], sizes = [8, 8], strides = [1, 1]} : vector<16x96xf32> to vector<8x8xf32>
    %127 = tpu.transpose %125, [1, 0] : vector<8x8xf32> -> vector<8x8xf32>
    %cst_46 = arith.constant dense<0.000000e+00> : vector<8x8xf32>
    %128 = tpu.matmul %124, %127, %cst_46 {dimension_numbers = #tpu.dot_dimension_numbers<[1], [0], [0], [1], [0, 0, 1, 1], [], []>} : vector<8x8xf32>, vector<8x8xf32>, vector<8x8xf32> -> vector<8x8xf32>
    %cst_47 = arith.constant 0.353553385 : f32
    %129 = vector.broadcast %cst_47 : f32 to vector<8x8xf32>
    %130 = arith.mulf %128, %129 : vector<8x8xf32>
    %131 = arith.addf %130, %2 : vector<8x8xf32>
    %cst_48 = arith.constant dense<0xFF800000> : vector<8xf32>
    %132 = vector.multi_reduction <maximumf>, %131, %cst_48 [1] : vector<8x8xf32> to vector<8xf32>
    %133 = vector.shape_cast %132 : vector<8xf32> to vector<8x1xf32>
    %134 = vector.broadcast %133 : vector<8x1xf32> to vector<8x8xf32>
    %135 = arith.subf %131, %134 : vector<8x8xf32>
    %136 = math.exp %135 : vector<8x8xf32>
    %cst_49 = arith.constant dense<0.000000e+00> : vector<8xf32>
    %137 = vector.multi_reduction <add>, %136, %cst_49 [1] : vector<8x8xf32> to vector<8xf32>
    %138 = vector.shape_cast %137 : vector<8xf32> to vector<8x1xf32>
    %139 = tpu.reciprocal %138 {approx = true} : vector<8x1xf32> -> vector<8x1xf32>
    %140 = vector.broadcast %139 : vector<8x1xf32> to vector<8x8xf32>
    %141 = arith.mulf %136, %140 : vector<8x8xf32>
    %cst_50 = arith.constant dense<0.000000e+00> : vector<8x8xf32>
    %142 = tpu.matmul %141, %126, %cst_50 {dimension_numbers = #tpu.dot_dimension_numbers<[1], [0], [0], [1], [0, 0, 1, 1], [], []>} : vector<8x8xf32>, vector<8x8xf32>, vector<8x8xf32> -> vector<8x8xf32>
    %143 = vector.extract_strided_slice %7 {offsets = [8, 0], sizes = [8, 32], strides = [1, 1]} : vector<32x32xf32> to vector<8x32xf32>
    %cst_51 = arith.constant dense<0.000000e+00> : vector<8x32xf32>
    %144 = tpu.matmul %142, %143, %cst_51 {dimension_numbers = #tpu.dot_dimension_numbers<[1], [0], [0], [1], [0, 0, 1, 1], [], []>} : vector<8x8xf32>, vector<8x32xf32>, vector<8x32xf32> -> vector<8x32xf32>
    %145 = arith.addf %123, %144 : vector<8x32xf32>
    %146 = vector.extract_strided_slice %5 {offsets = [8, 16], sizes = [8, 8], strides = [1, 1]} : vector<16x96xf32> to vector<8x8xf32>
    %147 = vector.extract_strided_slice %5 {offsets = [8, 48], sizes = [8, 8], strides = [1, 1]} : vector<16x96xf32> to vector<8x8xf32>
    %148 = vector.extract_strided_slice %5 {offsets = [8, 80], sizes = [8, 8], strides = [1, 1]} : vector<16x96xf32> to vector<8x8xf32>
    %149 = tpu.transpose %147, [1, 0] : vector<8x8xf32> -> vector<8x8xf32>
    %cst_52 = arith.constant dense<0.000000e+00> : vector<8x8xf32>
    %150 = tpu.matmul %146, %149, %cst_52 {dimension_numbers = #tpu.dot_dimension_numbers<[1], [0], [0], [1], [0, 0, 1, 1], [], []>} : vector<8x8xf32>, vector<8x8xf32>, vector<8x8xf32> -> vector<8x8xf32>
    %cst_53 = arith.constant 0.353553385 : f32
    %151 = vector.broadcast %cst_53 : f32 to vector<8x8xf32>
    %152 = arith.mulf %150, %151 : vector<8x8xf32>
    %153 = arith.addf %152, %2 : vector<8x8xf32>
    %cst_54 = arith.constant dense<0xFF800000> : vector<8xf32>
    %154 = vector.multi_reduction <maximumf>, %153, %cst_54 [1] : vector<8x8xf32> to vector<8xf32>
    %155 = vector.shape_cast %154 : vector<8xf32> to vector<8x1xf32>
    %156 = vector.broadcast %155 : vector<8x1xf32> to vector<8x8xf32>
    %157 = arith.subf %153, %156 : vector<8x8xf32>
    %158 = math.exp %157 : vector<8x8xf32>
    %cst_55 = arith.constant dense<0.000000e+00> : vector<8xf32>
    %159 = vector.multi_reduction <add>, %158, %cst_55 [1] : vector<8x8xf32> to vector<8xf32>
    %160 = vector.shape_cast %159 : vector<8xf32> to vector<8x1xf32>
    %161 = tpu.reciprocal %160 {approx = true} : vector<8x1xf32> -> vector<8x1xf32>
    %162 = vector.broadcast %161 : vector<8x1xf32> to vector<8x8xf32>
    %163 = arith.mulf %158, %162 : vector<8x8xf32>
    %cst_56 = arith.constant dense<0.000000e+00> : vector<8x8xf32>
    %164 = tpu.matmul %163, %148, %cst_56 {dimension_numbers = #tpu.dot_dimension_numbers<[1], [0], [0], [1], [0, 0, 1, 1], [], []>} : vector<8x8xf32>, vector<8x8xf32>, vector<8x8xf32> -> vector<8x8xf32>
    %165 = vector.extract_strided_slice %7 {offsets = [16, 0], sizes = [8, 32], strides = [1, 1]} : vector<32x32xf32> to vector<8x32xf32>
    %cst_57 = arith.constant dense<0.000000e+00> : vector<8x32xf32>
    %166 = tpu.matmul %164, %165, %cst_57 {dimension_numbers = #tpu.dot_dimension_numbers<[1], [0], [0], [1], [0, 0, 1, 1], [], []>} : vector<8x8xf32>, vector<8x32xf32>, vector<8x32xf32> -> vector<8x32xf32>
    %167 = arith.addf %145, %166 : vector<8x32xf32>
    %168 = vector.extract_strided_slice %5 {offsets = [8, 24], sizes = [8, 8], strides = [1, 1]} : vector<16x96xf32> to vector<8x8xf32>
    %169 = vector.extract_strided_slice %5 {offsets = [8, 56], sizes = [8, 8], strides = [1, 1]} : vector<16x96xf32> to vector<8x8xf32>
    %170 = vector.extract_strided_slice %5 {offsets = [8, 88], sizes = [8, 8], strides = [1, 1]} : vector<16x96xf32> to vector<8x8xf32>
    %171 = tpu.transpose %169, [1, 0] : vector<8x8xf32> -> vector<8x8xf32>
    %cst_58 = arith.constant dense<0.000000e+00> : vector<8x8xf32>
    %172 = tpu.matmul %168, %171, %cst_58 {dimension_numbers = #tpu.dot_dimension_numbers<[1], [0], [0], [1], [0, 0, 1, 1], [], []>} : vector<8x8xf32>, vector<8x8xf32>, vector<8x8xf32> -> vector<8x8xf32>
    %cst_59 = arith.constant 0.353553385 : f32
    %173 = vector.broadcast %cst_59 : f32 to vector<8x8xf32>
    %174 = arith.mulf %172, %173 : vector<8x8xf32>
    %175 = arith.addf %174, %2 : vector<8x8xf32>
    %cst_60 = arith.constant dense<0xFF800000> : vector<8xf32>
    %176 = vector.multi_reduction <maximumf>, %175, %cst_60 [1] : vector<8x8xf32> to vector<8xf32>
    %177 = vector.shape_cast %176 : vector<8xf32> to vector<8x1xf32>
    %178 = vector.broadcast %177 : vector<8x1xf32> to vector<8x8xf32>
    %179 = arith.subf %175, %178 : vector<8x8xf32>
    %180 = math.exp %179 : vector<8x8xf32>
    %cst_61 = arith.constant dense<0.000000e+00> : vector<8xf32>
    %181 = vector.multi_reduction <add>, %180, %cst_61 [1] : vector<8x8xf32> to vector<8xf32>
    %182 = vector.shape_cast %181 : vector<8xf32> to vector<8x1xf32>
    %183 = tpu.reciprocal %182 {approx = true} : vector<8x1xf32> -> vector<8x1xf32>
    %184 = vector.broadcast %183 : vector<8x1xf32> to vector<8x8xf32>
    %185 = arith.mulf %180, %184 : vector<8x8xf32>
    %cst_62 = arith.constant dense<0.000000e+00> : vector<8x8xf32>
    %186 = tpu.matmul %185, %170, %cst_62 {dimension_numbers = #tpu.dot_dimension_numbers<[1], [0], [0], [1], [0, 0, 1, 1], [], []>} : vector<8x8xf32>, vector<8x8xf32>, vector<8x8xf32> -> vector<8x8xf32>
    %187 = vector.extract_strided_slice %7 {offsets = [24, 0], sizes = [8, 32], strides = [1, 1]} : vector<32x32xf32> to vector<8x32xf32>
    %cst_63 = arith.constant dense<0.000000e+00> : vector<8x32xf32>
    %188 = tpu.matmul %186, %187, %cst_63 {dimension_numbers = #tpu.dot_dimension_numbers<[1], [0], [0], [1], [0, 0, 1, 1], [], []>} : vector<8x8xf32>, vector<8x32xf32>, vector<8x32xf32> -> vector<8x32xf32>
    %189 = arith.addf %167, %188 : vector<8x32xf32>
    %190 = tpu.concatenate %119, %141, %163, %185 in 1 : vector<8x8xf32>, vector<8x8xf32>, vector<8x8xf32>, vector<8x8xf32> -> vector<8x32xf32>
    %c0_64 = arith.constant 0 : index
    %c1 = arith.constant 1 : index
    %c0_65 = arith.constant 0 : index
    %c0_66 = arith.constant 0 : index
    %191 = vector.load %arg12[%c0_64, %c1, %c0_65, %c0_66] : memref<2x2x8x32xf32, #tpu.memory_space<vmem>>, vector<1x1x8x32xf32>
    %192 = vector.shape_cast %191 : vector<1x1x8x32xf32> to vector<8x32xf32>
    %193 = vector.shape_cast %190 : vector<8x32xf32> to vector<1x1x8x32xf32>
    tpu.vector_store %arg12[%c0_64, %c1, %c0_65, %c0_66], %193 {strides = array<i32>} : memref<2x2x8x32xf32, #tpu.memory_space<vmem>>, vector<1x1x8x32xf32>,
    %194 = tpu.concatenate %96, %189 in 0 : vector<8x32xf32>, vector<8x32xf32> -> vector<16x32xf32>
    %c0_67 = arith.constant 0 : index
    %c0_68 = arith.constant 0 : index
    %c0_69 = arith.constant 0 : index
    %195 = vector.load %arg5[%c0_67, %c0_68, %c0_69] : memref<2x1x32xf32, #tpu.memory_space<vmem>>, vector<1x1x32xf32>
    %196 = vector.shape_cast %195 : vector<1x1x32xf32> to vector<1x32xf32>
    %c0_70 = arith.constant 0 : index
    %c0_71 = arith.constant 0 : index
    %c0_72 = arith.constant 0 : index
    %197 = vector.load %arg6[%c0_70, %c0_71, %c0_72] : memref<2x1x32xf32, #tpu.memory_space<vmem>>, vector<1x1x32xf32>
    %198 = vector.shape_cast %197 : vector<1x1x32xf32> to vector<1x32xf32>
    %199 = arith.addf %194, %1 : vector<16x32xf32>
    %cst_73 = arith.constant dense<0.000000e+00> : vector<16xf32>
    %200 = vector.multi_reduction <add>, %199, %cst_73 [1] : vector<16x32xf32> to vector<16xf32>
    %201 = vector.shape_cast %200 : vector<16xf32> to vector<16x1xf32>
    %cst_74 = arith.constant 3.200000e+01 : f32
    %202 = vector.broadcast %cst_74 : f32 to vector<16x1xf32>
    %203 = arith.divf %201, %202 : vector<16x1xf32>
    %204 = arith.mulf %199, %199 : vector<16x32xf32>
    %cst_75 = arith.constant dense<0.000000e+00> : vector<16xf32>
    %205 = vector.multi_reduction <add>, %204, %cst_75 [1] : vector<16x32xf32> to vector<16xf32>
    %206 = vector.shape_cast %205 : vector<16xf32> to vector<16x1xf32>
    %cst_76 = arith.constant 3.200000e+01 : f32
    %207 = vector.broadcast %cst_76 : f32 to vector<16x1xf32>
    %208 = arith.divf %206, %207 : vector<16x1xf32>
    %209 = vector.broadcast %203 : vector<16x1xf32> to vector<16x32xf32>
    %210 = arith.subf %199, %209 : vector<16x32xf32>
    %211 = arith.mulf %203, %203 : vector<16x1xf32>
    %212 = arith.subf %208, %211 : vector<16x1xf32>
    %cst_77 = arith.constant 9.99999974E-6 : f32
    %213 = vector.broadcast %cst_77 : f32 to vector<16x1xf32>
    %214 = arith.addf %212, %213 : vector<16x1xf32>
    %215 = math.rsqrt %214 : vector<16x1xf32>
    %216 = vector.broadcast %215 : vector<16x1xf32> to vector<16x32xf32>
    %217 = arith.mulf %210, %216 : vector<16x32xf32>
    %218 = vector.broadcast %196 : vector<1x32xf32> to vector<16x32xf32>
    %219 = arith.mulf %217, %218 : vector<16x32xf32>
    %220 = vector.broadcast %198 : vector<1x32xf32> to vector<16x32xf32>
    %221 = arith.addf %219, %220 : vector<16x32xf32>
    %c0_78 = arith.constant 0 : index
    %c0_79 = arith.constant 0 : index
    %c0_80 = arith.constant 0 : index
    %222 = vector.load %arg7[%c0_78, %c0_79, %c0_80] : memref<2x32x64xf32, #tpu.memory_space<vmem>>, vector<1x32x64xf32>
    %223 = vector.shape_cast %222 : vector<1x32x64xf32> to vector<32x64xf32>
    %cst_81 = arith.constant dense<0.000000e+00> : vector<16x64xf32>
    %224 = tpu.matmul %221, %223, %cst_81 {dimension_numbers = #tpu.dot_dimension_numbers<[1], [0], [0], [1], [0, 0, 1, 1], [], []>} : vector<16x32xf32>, vector<32x64xf32>, vector<16x64xf32> -> vector<16x64xf32>
    %c0_82 = arith.constant 0 : index
    %c0_83 = arith.constant 0 : index
    %c0_84 = arith.constant 0 : index
    %225 = vector.load %arg8[%c0_82, %c0_83, %c0_84] : memref<2x1x64xf32, #tpu.memory_space<vmem>>, vector<1x1x64xf32>
    %226 = vector.shape_cast %225 : vector<1x1x64xf32> to vector<1x64xf32>
    %227 = vector.broadcast %226 : vector<1x64xf32> to vector<16x64xf32>
    %228 = arith.addf %224, %227 : vector<16x64xf32>
    %cst_85 = arith.constant 0.000000e+00 : f32
    %229 = vector.broadcast %cst_85 : f32 to vector<16x64xf32>
    %230 = arith.maximumf %228, %229 : vector<16x64xf32>
    %c0_86 = arith.constant 0 : index
    %c0_87 = arith.constant 0 : index
    %c0_88 = arith.constant 0 : index
    %231 = vector.load %arg9[%c0_86, %c0_87, %c0_88] : memref<2x64x32xf32, #tpu.memory_space<vmem>>, vector<1x64x32xf32>
    %232 = vector.shape_cast %231 : vector<1x64x32xf32> to vector<64x32xf32>
    %cst_89 = arith.constant dense<0.000000e+00> : vector<16x32xf32>
    %233 = tpu.matmul %230, %232, %cst_89 {dimension_numbers = #tpu.dot_dimension_numbers<[1], [0], [0], [1], [0, 0, 1, 1], [], []>} : vector<16x64xf32>, vector<64x32xf32>, vector<16x32xf32> -> vector<16x32xf32>
    %c0_90 = arith.constant 0 : index
    %c0_91 = arith.constant 0 : index
    %c0_92 = arith.constant 0 : index
    %234 = vector.load %arg10[%c0_90, %c0_91, %c0_92] : memref<2x1x32xf32, #tpu.memory_space<vmem>>, vector<1x1x32xf32>
    %235 = vector.shape_cast %234 : vector<1x1x32xf32> to vector<1x32xf32>
    %236 = vector.broadcast %235 : vector<1x32xf32> to vector<16x32xf32>
    %237 = arith.addf %233, %236 : vector<16x32xf32>
    %238 = arith.addf %237, %221 : vector<16x32xf32>
    %cst_93 = arith.constant dense<0.000000e+00> : vector<16xf32>
    %239 = vector.multi_reduction <add>, %238, %cst_93 [1] : vector<16x32xf32> to vector<16xf32>
    %240 = vector.shape_cast %239 : vector<16xf32> to vector<16x1xf32>
    %cst_94 = arith.constant 3.200000e+01 : f32
    %241 = vector.broadcast %cst_94 : f32 to vector<16x1xf32>
    %242 = arith.divf %240, %241 : vector<16x1xf32>
    %243 = arith.mulf %238, %238 : vector<16x32xf32>
    %cst_95 = arith.constant dense<0.000000e+00> : vector<16xf32>
    %244 = vector.multi_reduction <add>, %243, %cst_95 [1] : vector<16x32xf32> to vector<16xf32>
    %245 = vector.shape_cast %244 : vector<16xf32> to vector<16x1xf32>
    %cst_96 = arith.constant 3.200000e+01 : f32
    %246 = vector.broadcast %cst_96 : f32 to vector<16x1xf32>
    %247 = arith.divf %245, %246 : vector<16x1xf32>
    %248 = vector.broadcast %242 : vector<16x1xf32> to vector<16x32xf32>
    %249 = arith.subf %238, %248 : vector<16x32xf32>
    %250 = arith.mulf %242, %242 : vector<16x1xf32>
    %251 = arith.subf %247, %250 : vector<16x1xf32>
    %cst_97 = arith.constant 9.99999974E-6 : f32
    %252 = vector.broadcast %cst_97 : f32 to vector<16x1xf32>
    %253 = arith.addf %251, %252 : vector<16x1xf32>
    %254 = math.rsqrt %253 : vector<16x1xf32>
    %255 = vector.broadcast %254 : vector<16x1xf32> to vector<16x32xf32>
    %256 = arith.mulf %249, %255 : vector<16x32xf32>
    %257 = vector.broadcast %196 : vector<1x32xf32> to vector<16x32xf32>
    %258 = arith.mulf %256, %257 : vector<16x32xf32>
    %259 = vector.broadcast %198 : vector<1x32xf32> to vector<16x32xf32>
    %260 = arith.addf %258, %259 : vector<16x32xf32>
    %c1_98 = arith.constant 1 : index
    %c0_99 = arith.constant 0 : index
    %c0_100 = arith.constant 0 : index
    %261 = vector.load %arg3[%c1_98, %c0_99, %c0_100] : memref<2x32x96xf32, #tpu.memory_space<vmem>>, vector<1x32x96xf32>
    %262 = vector.shape_cast %261 : vector<1x32x96xf32> to vector<32x96xf32>
    %cst_101 = arith.constant dense<0.000000e+00> : vector<16x96xf32>
    %263 = tpu.matmul %260, %262, %cst_101 {dimension_numbers = #tpu.dot_dimension_numbers<[1], [0], [0], [1], [0, 0, 1, 1], [], []>} : vector<16x32xf32>, vector<32x96xf32>, vector<16x96xf32> -> vector<16x96xf32>
    %c1_102 = arith.constant 1 : index
    %c0_103 = arith.constant 0 : index
    %c0_104 = arith.constant 0 : index
    %264 = vector.load %arg4[%c1_102, %c0_103, %c0_104] : memref<2x32x32xf32, #tpu.memory_space<vmem>>, vector<1x32x32xf32>
    %265 = vector.shape_cast %264 : vector<1x32x32xf32> to vector<32x32xf32>
    %cst_105 = arith.constant 0.000000e+00 : f32
    %266 = vector.broadcast %cst_105 : f32 to vector<8x32xf32>
    %267 = vector.extract_strided_slice %263 {offsets = [0, 0], sizes = [8, 8], strides = [1, 1]} : vector<16x96xf32> to vector<8x8xf32>
    %268 = vector.extract_strided_slice %263 {offsets = [0, 32], sizes = [8, 8], strides = [1, 1]} : vector<16x96xf32> to vector<8x8xf32>
    %269 = vector.extract_strided_slice %263 {offsets = [0, 64], sizes = [8, 8], strides = [1, 1]} : vector<16x96xf32> to vector<8x8xf32>
    %270 = tpu.transpose %268, [1, 0] : vector<8x8xf32> -> vector<8x8xf32>
    %cst_106 = arith.constant dense<0.000000e+00> : vector<8x8xf32>
    %271 = tpu.matmul %267, %270, %cst_106 {dimension_numbers = #tpu.dot_dimension_numbers<[1], [0], [0], [1], [0, 0, 1, 1], [], []>} : vector<8x8xf32>, vector<8x8xf32>, vector<8x8xf32> -> vector<8x8xf32>
    %cst_107 = arith.constant 0.353553385 : f32
    %272 = vector.broadcast %cst_107 : f32 to vector<8x8xf32>
    %273 = arith.mulf %271, %272 : vector<8x8xf32>
    %274 = arith.addf %273, %2 : vector<8x8xf32>
    %cst_108 = arith.constant dense<0xFF800000> : vector<8xf32>
    %275 = vector.multi_reduction <maximumf>, %274, %cst_108 [1] : vector<8x8xf32> to vector<8xf32>
    %276 = vector.shape_cast %275 : vector<8xf32> to vector<8x1xf32>
    %277 = vector.broadcast %276 : vector<8x1xf32> to vector<8x8xf32>
    %278 = arith.subf %274, %277 : vector<8x8xf32>
    %279 = math.exp %278 : vector<8x8xf32>
    %cst_109 = arith.constant dense<0.000000e+00> : vector<8xf32>
    %280 = vector.multi_reduction <add>, %279, %cst_109 [1] : vector<8x8xf32> to vector<8xf32>
    %281 = vector.shape_cast %280 : vector<8xf32> to vector<8x1xf32>
    %282 = tpu.reciprocal %281 {approx = true} : vector<8x1xf32> -> vector<8x1xf32>
    %283 = vector.broadcast %282 : vector<8x1xf32> to vector<8x8xf32>
    %284 = arith.mulf %279, %283 : vector<8x8xf32>
    %cst_110 = arith.constant dense<0.000000e+00> : vector<8x8xf32>
    %285 = tpu.matmul %284, %269, %cst_110 {dimension_numbers = #tpu.dot_dimension_numbers<[1], [0], [0], [1], [0, 0, 1, 1], [], []>} : vector<8x8xf32>, vector<8x8xf32>, vector<8x8xf32> -> vector<8x8xf32>
    %286 = vector.extract_strided_slice %265 {offsets = [0, 0], sizes = [8, 32], strides = [1, 1]} : vector<32x32xf32> to vector<8x32xf32>
    %cst_111 = arith.constant dense<0.000000e+00> : vector<8x32xf32>
    %287 = tpu.matmul %285, %286, %cst_111 {dimension_numbers = #tpu.dot_dimension_numbers<[1], [0], [0], [1], [0, 0, 1, 1], [], []>} : vector<8x8xf32>, vector<8x32xf32>, vector<8x32xf32> -> vector<8x32xf32>
    %288 = arith.addf %266, %287 : vector<8x32xf32>
    %289 = vector.extract_strided_slice %263 {offsets = [0, 8], sizes = [8, 8], strides = [1, 1]} : vector<16x96xf32> to vector<8x8xf32>
    %290 = vector.extract_strided_slice %263 {offsets = [0, 40], sizes = [8, 8], strides = [1, 1]} : vector<16x96xf32> to vector<8x8xf32>
    %291 = vector.extract_strided_slice %263 {offsets = [0, 72], sizes = [8, 8], strides = [1, 1]} : vector<16x96xf32> to vector<8x8xf32>
    %292 = tpu.transpose %290, [1, 0] : vector<8x8xf32> -> vector<8x8xf32>
    %cst_112 = arith.constant dense<0.000000e+00> : vector<8x8xf32>
    %293 = tpu.matmul %289, %292, %cst_112 {dimension_numbers = #tpu.dot_dimension_numbers<[1], [0], [0], [1], [0, 0, 1, 1], [], []>} : vector<8x8xf32>, vector<8x8xf32>, vector<8x8xf32> -> vector<8x8xf32>
    %cst_113 = arith.constant 0.353553385 : f32
    %294 = vector.broadcast %cst_113 : f32 to vector<8x8xf32>
    %295 = arith.mulf %293, %294 : vector<8x8xf32>
    %296 = arith.addf %295, %2 : vector<8x8xf32>
    %cst_114 = arith.constant dense<0xFF800000> : vector<8xf32>
    %297 = vector.multi_reduction <maximumf>, %296, %cst_114 [1] : vector<8x8xf32> to vector<8xf32>
    %298 = vector.shape_cast %297 : vector<8xf32> to vector<8x1xf32>
    %299 = vector.broadcast %298 : vector<8x1xf32> to vector<8x8xf32>
    %300 = arith.subf %296, %299 : vector<8x8xf32>
    %301 = math.exp %300 : vector<8x8xf32>
    %cst_115 = arith.constant dense<0.000000e+00> : vector<8xf32>
    %302 = vector.multi_reduction <add>, %301, %cst_115 [1] : vector<8x8xf32> to vector<8xf32>
    %303 = vector.shape_cast %302 : vector<8xf32> to vector<8x1xf32>
    %304 = tpu.reciprocal %303 {approx = true} : vector<8x1xf32> -> vector<8x1xf32>
    %305 = vector.broadcast %304 : vector<8x1xf32> to vector<8x8xf32>
    %306 = arith.mulf %301, %305 : vector<8x8xf32>
    %cst_116 = arith.constant dense<0.000000e+00> : vector<8x8xf32>
    %307 = tpu.matmul %306, %291, %cst_116 {dimension_numbers = #tpu.dot_dimension_numbers<[1], [0], [0], [1], [0, 0, 1, 1], [], []>} : vector<8x8xf32>, vector<8x8xf32>, vector<8x8xf32> -> vector<8x8xf32>
    %308 = vector.extract_strided_slice %265 {offsets = [8, 0], sizes = [8, 32], strides = [1, 1]} : vector<32x32xf32> to vector<8x32xf32>
    %cst_117 = arith.constant dense<0.000000e+00> : vector<8x32xf32>
    %309 = tpu.matmul %307, %308, %cst_117 {dimension_numbers = #tpu.dot_dimension_numbers<[1], [0], [0], [1], [0, 0, 1, 1], [], []>} : vector<8x8xf32>, vector<8x32xf32>, vector<8x32xf32> -> vector<8x32xf32>
    %310 = arith.addf %288, %309 : vector<8x32xf32>
    %311 = vector.extract_strided_slice %263 {offsets = [0, 16], sizes = [8, 8], strides = [1, 1]} : vector<16x96xf32> to vector<8x8xf32>
    %312 = vector.extract_strided_slice %263 {offsets = [0, 48], sizes = [8, 8], strides = [1, 1]} : vector<16x96xf32> to vector<8x8xf32>
    %313 = vector.extract_strided_slice %263 {offsets = [0, 80], sizes = [8, 8], strides = [1, 1]} : vector<16x96xf32> to vector<8x8xf32>
    %314 = tpu.transpose %312, [1, 0] : vector<8x8xf32> -> vector<8x8xf32>
    %cst_118 = arith.constant dense<0.000000e+00> : vector<8x8xf32>
    %315 = tpu.matmul %311, %314, %cst_118 {dimension_numbers = #tpu.dot_dimension_numbers<[1], [0], [0], [1], [0, 0, 1, 1], [], []>} : vector<8x8xf32>, vector<8x8xf32>, vector<8x8xf32> -> vector<8x8xf32>
    %cst_119 = arith.constant 0.353553385 : f32
    %316 = vector.broadcast %cst_119 : f32 to vector<8x8xf32>
    %317 = arith.mulf %315, %316 : vector<8x8xf32>
    %318 = arith.addf %317, %2 : vector<8x8xf32>
    %cst_120 = arith.constant dense<0xFF800000> : vector<8xf32>
    %319 = vector.multi_reduction <maximumf>, %318, %cst_120 [1] : vector<8x8xf32> to vector<8xf32>
    %320 = vector.shape_cast %319 : vector<8xf32> to vector<8x1xf32>
    %321 = vector.broadcast %320 : vector<8x1xf32> to vector<8x8xf32>
    %322 = arith.subf %318, %321 : vector<8x8xf32>
    %323 = math.exp %322 : vector<8x8xf32>
    %cst_121 = arith.constant dense<0.000000e+00> : vector<8xf32>
    %324 = vector.multi_reduction <add>, %323, %cst_121 [1] : vector<8x8xf32> to vector<8xf32>
    %325 = vector.shape_cast %324 : vector<8xf32> to vector<8x1xf32>
    %326 = tpu.reciprocal %325 {approx = true} : vector<8x1xf32> -> vector<8x1xf32>
    %327 = vector.broadcast %326 : vector<8x1xf32> to vector<8x8xf32>
    %328 = arith.mulf %323, %327 : vector<8x8xf32>
    %cst_122 = arith.constant dense<0.000000e+00> : vector<8x8xf32>
    %329 = tpu.matmul %328, %313, %cst_122 {dimension_numbers = #tpu.dot_dimension_numbers<[1], [0], [0], [1], [0, 0, 1, 1], [], []>} : vector<8x8xf32>, vector<8x8xf32>, vector<8x8xf32> -> vector<8x8xf32>
    %330 = vector.extract_strided_slice %265 {offsets = [16, 0], sizes = [8, 32], strides = [1, 1]} : vector<32x32xf32> to vector<8x32xf32>
    %cst_123 = arith.constant dense<0.000000e+00> : vector<8x32xf32>
    %331 = tpu.matmul %329, %330, %cst_123 {dimension_numbers = #tpu.dot_dimension_numbers<[1], [0], [0], [1], [0, 0, 1, 1], [], []>} : vector<8x8xf32>, vector<8x32xf32>, vector<8x32xf32> -> vector<8x32xf32>
    %332 = arith.addf %310, %331 : vector<8x32xf32>
    %333 = vector.extract_strided_slice %263 {offsets = [0, 24], sizes = [8, 8], strides = [1, 1]} : vector<16x96xf32> to vector<8x8xf32>
    %334 = vector.extract_strided_slice %263 {offsets = [0, 56], sizes = [8, 8], strides = [1, 1]} : vector<16x96xf32> to vector<8x8xf32>
    %335 = vector.extract_strided_slice %263 {offsets = [0, 88], sizes = [8, 8], strides = [1, 1]} : vector<16x96xf32> to vector<8x8xf32>
    %336 = tpu.transpose %334, [1, 0] : vector<8x8xf32> -> vector<8x8xf32>
    %cst_124 = arith.constant dense<0.000000e+00> : vector<8x8xf32>
    %337 = tpu.matmul %333, %336, %cst_124 {dimension_numbers = #tpu.dot_dimension_numbers<[1], [0], [0], [1], [0, 0, 1, 1], [], []>} : vector<8x8xf32>, vector<8x8xf32>, vector<8x8xf32> -> vector<8x8xf32>
    %cst_125 = arith.constant 0.353553385 : f32
    %338 = vector.broadcast %cst_125 : f32 to vector<8x8xf32>
    %339 = arith.mulf %337, %338 : vector<8x8xf32>
    %340 = arith.addf %339, %2 : vector<8x8xf32>
    %cst_126 = arith.constant dense<0xFF800000> : vector<8xf32>
    %341 = vector.multi_reduction <maximumf>, %340, %cst_126 [1] : vector<8x8xf32> to vector<8xf32>
    %342 = vector.shape_cast %341 : vector<8xf32> to vector<8x1xf32>
    %343 = vector.broadcast %342 : vector<8x1xf32> to vector<8x8xf32>
    %344 = arith.subf %340, %343 : vector<8x8xf32>
    %345 = math.exp %344 : vector<8x8xf32>
    %cst_127 = arith.constant dense<0.000000e+00> : vector<8xf32>
    %346 = vector.multi_reduction <add>, %345, %cst_127 [1] : vector<8x8xf32> to vector<8xf32>
    %347 = vector.shape_cast %346 : vector<8xf32> to vector<8x1xf32>
    %348 = tpu.reciprocal %347 {approx = true} : vector<8x1xf32> -> vector<8x1xf32>
    %349 = vector.broadcast %348 : vector<8x1xf32> to vector<8x8xf32>
    %350 = arith.mulf %345, %349 : vector<8x8xf32>
    %cst_128 = arith.constant dense<0.000000e+00> : vector<8x8xf32>
    %351 = tpu.matmul %350, %335, %cst_128 {dimension_numbers = #tpu.dot_dimension_numbers<[1], [0], [0], [1], [0, 0, 1, 1], [], []>} : vector<8x8xf32>, vector<8x8xf32>, vector<8x8xf32> -> vector<8x8xf32>
    %352 = vector.extract_strided_slice %265 {offsets = [24, 0], sizes = [8, 32], strides = [1, 1]} : vector<32x32xf32> to vector<8x32xf32>
    %cst_129 = arith.constant dense<0.000000e+00> : vector<8x32xf32>
    %353 = tpu.matmul %351, %352, %cst_129 {dimension_numbers = #tpu.dot_dimension_numbers<[1], [0], [0], [1], [0, 0, 1, 1], [], []>} : vector<8x8xf32>, vector<8x32xf32>, vector<8x32xf32> -> vector<8x32xf32>
    %354 = arith.addf %332, %353 : vector<8x32xf32>
    %355 = tpu.concatenate %284, %306, %328, %350 in 1 : vector<8x8xf32>, vector<8x8xf32>, vector<8x8xf32>, vector<8x8xf32> -> vector<8x32xf32>
    %c1_130 = arith.constant 1 : index
    %c0_131 = arith.constant 0 : index
    %c0_132 = arith.constant 0 : index
    %c0_133 = arith.constant 0 : index
    %356 = vector.load %arg12[%c1_130, %c0_131, %c0_132, %c0_133] : memref<2x2x8x32xf32, #tpu.memory_space<vmem>>, vector<1x1x8x32xf32>
    %357 = vector.shape_cast %356 : vector<1x1x8x32xf32> to vector<8x32xf32>
    %358 = vector.shape_cast %355 : vector<8x32xf32> to vector<1x1x8x32xf32>
    tpu.vector_store %arg12[%c1_130, %c0_131, %c0_132, %c0_133], %358 {strides = array<i32>} : memref<2x2x8x32xf32, #tpu.memory_space<vmem>>, vector<1x1x8x32xf32>,
    %cst_134 = arith.constant 0.000000e+00 : f32
    %359 = vector.broadcast %cst_134 : f32 to vector<8x32xf32>
    %360 = vector.extract_strided_slice %263 {offsets = [8, 0], sizes = [8, 8], strides = [1, 1]} : vector<16x96xf32> to vector<8x8xf32>
    %361 = vector.extract_strided_slice %263 {offsets = [8, 32], sizes = [8, 8], strides = [1, 1]} : vector<16x96xf32> to vector<8x8xf32>
    %362 = vector.extract_strided_slice %263 {offsets = [8, 64], sizes = [8, 8], strides = [1, 1]} : vector<16x96xf32> to vector<8x8xf32>
    %363 = tpu.transpose %361, [1, 0] : vector<8x8xf32> -> vector<8x8xf32>
    %cst_135 = arith.constant dense<0.000000e+00> : vector<8x8xf32>
    %364 = tpu.matmul %360, %363, %cst_135 {dimension_numbers = #tpu.dot_dimension_numbers<[1], [0], [0], [1], [0, 0, 1, 1], [], []>} : vector<8x8xf32>, vector<8x8xf32>, vector<8x8xf32> -> vector<8x8xf32>
    %cst_136 = arith.constant 0.353553385 : f32
    %365 = vector.broadcast %cst_136 : f32 to vector<8x8xf32>
    %366 = arith.mulf %364, %365 : vector<8x8xf32>
    %367 = arith.addf %366, %2 : vector<8x8xf32>
    %cst_137 = arith.constant dense<0xFF800000> : vector<8xf32>
    %368 = vector.multi_reduction <maximumf>, %367, %cst_137 [1] : vector<8x8xf32> to vector<8xf32>
    %369 = vector.shape_cast %368 : vector<8xf32> to vector<8x1xf32>
    %370 = vector.broadcast %369 : vector<8x1xf32> to vector<8x8xf32>
    %371 = arith.subf %367, %370 : vector<8x8xf32>
    %372 = math.exp %371 : vector<8x8xf32>
    %cst_138 = arith.constant dense<0.000000e+00> : vector<8xf32>
    %373 = vector.multi_reduction <add>, %372, %cst_138 [1] : vector<8x8xf32> to vector<8xf32>
    %374 = vector.shape_cast %373 : vector<8xf32> to vector<8x1xf32>
    %375 = tpu.reciprocal %374 {approx = true} : vector<8x1xf32> -> vector<8x1xf32>
    %376 = vector.broadcast %375 : vector<8x1xf32> to vector<8x8xf32>
    %377 = arith.mulf %372, %376 : vector<8x8xf32>
    %cst_139 = arith.constant dense<0.000000e+00> : vector<8x8xf32>
    %378 = tpu.matmul %377, %362, %cst_139 {dimension_numbers = #tpu.dot_dimension_numbers<[1], [0], [0], [1], [0, 0, 1, 1], [], []>} : vector<8x8xf32>, vector<8x8xf32>, vector<8x8xf32> -> vector<8x8xf32>
    %379 = vector.extract_strided_slice %265 {offsets = [0, 0], sizes = [8, 32], strides = [1, 1]} : vector<32x32xf32> to vector<8x32xf32>
    %cst_140 = arith.constant dense<0.000000e+00> : vector<8x32xf32>
    %380 = tpu.matmul %378, %379, %cst_140 {dimension_numbers = #tpu.dot_dimension_numbers<[1], [0], [0], [1], [0, 0, 1, 1], [], []>} : vector<8x8xf32>, vector<8x32xf32>, vector<8x32xf32> -> vector<8x32xf32>
    %381 = arith.addf %359, %380 : vector<8x32xf32>
    %382 = vector.extract_strided_slice %263 {offsets = [8, 8], sizes = [8, 8], strides = [1, 1]} : vector<16x96xf32> to vector<8x8xf32>
    %383 = vector.extract_strided_slice %263 {offsets = [8, 40], sizes = [8, 8], strides = [1, 1]} : vector<16x96xf32> to vector<8x8xf32>
    %384 = vector.extract_strided_slice %263 {offsets = [8, 72], sizes = [8, 8], strides = [1, 1]} : vector<16x96xf32> to vector<8x8xf32>
    %385 = tpu.transpose %383, [1, 0] : vector<8x8xf32> -> vector<8x8xf32>
    %cst_141 = arith.constant dense<0.000000e+00> : vector<8x8xf32>
    %386 = tpu.matmul %382, %385, %cst_141 {dimension_numbers = #tpu.dot_dimension_numbers<[1], [0], [0], [1], [0, 0, 1, 1], [], []>} : vector<8x8xf32>, vector<8x8xf32>, vector<8x8xf32> -> vector<8x8xf32>
    %cst_142 = arith.constant 0.353553385 : f32
    %387 = vector.broadcast %cst_142 : f32 to vector<8x8xf32>
    %388 = arith.mulf %386, %387 : vector<8x8xf32>
    %389 = arith.addf %388, %2 : vector<8x8xf32>
    %cst_143 = arith.constant dense<0xFF800000> : vector<8xf32>
    %390 = vector.multi_reduction <maximumf>, %389, %cst_143 [1] : vector<8x8xf32> to vector<8xf32>
    %391 = vector.shape_cast %390 : vector<8xf32> to vector<8x1xf32>
    %392 = vector.broadcast %391 : vector<8x1xf32> to vector<8x8xf32>
    %393 = arith.subf %389, %392 : vector<8x8xf32>
    %394 = math.exp %393 : vector<8x8xf32>
    %cst_144 = arith.constant dense<0.000000e+00> : vector<8xf32>
    %395 = vector.multi_reduction <add>, %394, %cst_144 [1] : vector<8x8xf32> to vector<8xf32>
    %396 = vector.shape_cast %395 : vector<8xf32> to vector<8x1xf32>
    %397 = tpu.reciprocal %396 {approx = true} : vector<8x1xf32> -> vector<8x1xf32>
    %398 = vector.broadcast %397 : vector<8x1xf32> to vector<8x8xf32>
    %399 = arith.mulf %394, %398 : vector<8x8xf32>
    %cst_145 = arith.constant dense<0.000000e+00> : vector<8x8xf32>
    %400 = tpu.matmul %399, %384, %cst_145 {dimension_numbers = #tpu.dot_dimension_numbers<[1], [0], [0], [1], [0, 0, 1, 1], [], []>} : vector<8x8xf32>, vector<8x8xf32>, vector<8x8xf32> -> vector<8x8xf32>
    %401 = vector.extract_strided_slice %265 {offsets = [8, 0], sizes = [8, 32], strides = [1, 1]} : vector<32x32xf32> to vector<8x32xf32>
    %cst_146 = arith.constant dense<0.000000e+00> : vector<8x32xf32>
    %402 = tpu.matmul %400, %401, %cst_146 {dimension_numbers = #tpu.dot_dimension_numbers<[1], [0], [0], [1], [0, 0, 1, 1], [], []>} : vector<8x8xf32>, vector<8x32xf32>, vector<8x32xf32> -> vector<8x32xf32>
    %403 = arith.addf %381, %402 : vector<8x32xf32>
    %404 = vector.extract_strided_slice %263 {offsets = [8, 16], sizes = [8, 8], strides = [1, 1]} : vector<16x96xf32> to vector<8x8xf32>
    %405 = vector.extract_strided_slice %263 {offsets = [8, 48], sizes = [8, 8], strides = [1, 1]} : vector<16x96xf32> to vector<8x8xf32>
    %406 = vector.extract_strided_slice %263 {offsets = [8, 80], sizes = [8, 8], strides = [1, 1]} : vector<16x96xf32> to vector<8x8xf32>
    %407 = tpu.transpose %405, [1, 0] : vector<8x8xf32> -> vector<8x8xf32>
    %cst_147 = arith.constant dense<0.000000e+00> : vector<8x8xf32>
    %408 = tpu.matmul %404, %407, %cst_147 {dimension_numbers = #tpu.dot_dimension_numbers<[1], [0], [0], [1], [0, 0, 1, 1], [], []>} : vector<8x8xf32>, vector<8x8xf32>, vector<8x8xf32> -> vector<8x8xf32>
    %cst_148 = arith.constant 0.353553385 : f32
    %409 = vector.broadcast %cst_148 : f32 to vector<8x8xf32>
    %410 = arith.mulf %408, %409 : vector<8x8xf32>
    %411 = arith.addf %410, %2 : vector<8x8xf32>
    %cst_149 = arith.constant dense<0xFF800000> : vector<8xf32>
    %412 = vector.multi_reduction <maximumf>, %411, %cst_149 [1] : vector<8x8xf32> to vector<8xf32>
    %413 = vector.shape_cast %412 : vector<8xf32> to vector<8x1xf32>
    %414 = vector.broadcast %413 : vector<8x1xf32> to vector<8x8xf32>
    %415 = arith.subf %411, %414 : vector<8x8xf32>
    %416 = math.exp %415 : vector<8x8xf32>
    %cst_150 = arith.constant dense<0.000000e+00> : vector<8xf32>
    %417 = vector.multi_reduction <add>, %416, %cst_150 [1] : vector<8x8xf32> to vector<8xf32>
    %418 = vector.shape_cast %417 : vector<8xf32> to vector<8x1xf32>
    %419 = tpu.reciprocal %418 {approx = true} : vector<8x1xf32> -> vector<8x1xf32>
    %420 = vector.broadcast %419 : vector<8x1xf32> to vector<8x8xf32>
    %421 = arith.mulf %416, %420 : vector<8x8xf32>
    %cst_151 = arith.constant dense<0.000000e+00> : vector<8x8xf32>
    %422 = tpu.matmul %421, %406, %cst_151 {dimension_numbers = #tpu.dot_dimension_numbers<[1], [0], [0], [1], [0, 0, 1, 1], [], []>} : vector<8x8xf32>, vector<8x8xf32>, vector<8x8xf32> -> vector<8x8xf32>
    %423 = vector.extract_strided_slice %265 {offsets = [16, 0], sizes = [8, 32], strides = [1, 1]} : vector<32x32xf32> to vector<8x32xf32>
    %cst_152 = arith.constant dense<0.000000e+00> : vector<8x32xf32>
    %424 = tpu.matmul %422, %423, %cst_152 {dimension_numbers = #tpu.dot_dimension_numbers<[1], [0], [0], [1], [0, 0, 1, 1], [], []>} : vector<8x8xf32>, vector<8x32xf32>, vector<8x32xf32> -> vector<8x32xf32>
    %425 = arith.addf %403, %424 : vector<8x32xf32>
    %426 = vector.extract_strided_slice %263 {offsets = [8, 24], sizes = [8, 8], strides = [1, 1]} : vector<16x96xf32> to vector<8x8xf32>
    %427 = vector.extract_strided_slice %263 {offsets = [8, 56], sizes = [8, 8], strides = [1, 1]} : vector<16x96xf32> to vector<8x8xf32>
    %428 = vector.extract_strided_slice %263 {offsets = [8, 88], sizes = [8, 8], strides = [1, 1]} : vector<16x96xf32> to vector<8x8xf32>
    %429 = tpu.transpose %427, [1, 0] : vector<8x8xf32> -> vector<8x8xf32>
    %cst_153 = arith.constant dense<0.000000e+00> : vector<8x8xf32>
    %430 = tpu.matmul %426, %429, %cst_153 {dimension_numbers = #tpu.dot_dimension_numbers<[1], [0], [0], [1], [0, 0, 1, 1], [], []>} : vector<8x8xf32>, vector<8x8xf32>, vector<8x8xf32> -> vector<8x8xf32>
    %cst_154 = arith.constant 0.353553385 : f32
    %431 = vector.broadcast %cst_154 : f32 to vector<8x8xf32>
    %432 = arith.mulf %430, %431 : vector<8x8xf32>
    %433 = arith.addf %432, %2 : vector<8x8xf32>
    %cst_155 = arith.constant dense<0xFF800000> : vector<8xf32>
    %434 = vector.multi_reduction <maximumf>, %433, %cst_155 [1] : vector<8x8xf32> to vector<8xf32>
    %435 = vector.shape_cast %434 : vector<8xf32> to vector<8x1xf32>
    %436 = vector.broadcast %435 : vector<8x1xf32> to vector<8x8xf32>
    %437 = arith.subf %433, %436 : vector<8x8xf32>
    %438 = math.exp %437 : vector<8x8xf32>
    %cst_156 = arith.constant dense<0.000000e+00> : vector<8xf32>
    %439 = vector.multi_reduction <add>, %438, %cst_156 [1] : vector<8x8xf32> to vector<8xf32>
    %440 = vector.shape_cast %439 : vector<8xf32> to vector<8x1xf32>
    %441 = tpu.reciprocal %440 {approx = true} : vector<8x1xf32> -> vector<8x1xf32>
    %442 = vector.broadcast %441 : vector<8x1xf32> to vector<8x8xf32>
    %443 = arith.mulf %438, %442 : vector<8x8xf32>
    %cst_157 = arith.constant dense<0.000000e+00> : vector<8x8xf32>
    %444 = tpu.matmul %443, %428, %cst_157 {dimension_numbers = #tpu.dot_dimension_numbers<[1], [0], [0], [1], [0, 0, 1, 1], [], []>} : vector<8x8xf32>, vector<8x8xf32>, vector<8x8xf32> -> vector<8x8xf32>
    %445 = vector.extract_strided_slice %265 {offsets = [24, 0], sizes = [8, 32], strides = [1, 1]} : vector<32x32xf32> to vector<8x32xf32>
    %cst_158 = arith.constant dense<0.000000e+00> : vector<8x32xf32>
    %446 = tpu.matmul %444, %445, %cst_158 {dimension_numbers = #tpu.dot_dimension_numbers<[1], [0], [0], [1], [0, 0, 1, 1], [], []>} : vector<8x8xf32>, vector<8x32xf32>, vector<8x32xf32> -> vector<8x32xf32>
    %447 = arith.addf %425, %446 : vector<8x32xf32>
    %448 = tpu.concatenate %377, %399, %421, %443 in 1 : vector<8x8xf32>, vector<8x8xf32>, vector<8x8xf32>, vector<8x8xf32> -> vector<8x32xf32>
    %c1_159 = arith.constant 1 : index
    %c1_160 = arith.constant 1 : index
    %c0_161 = arith.constant 0 : index
    %c0_162 = arith.constant 0 : index
    %449 = vector.load %arg12[%c1_159, %c1_160, %c0_161, %c0_162] : memref<2x2x8x32xf32, #tpu.memory_space<vmem>>, vector<1x1x8x32xf32>
    %450 = vector.shape_cast %449 : vector<1x1x8x32xf32> to vector<8x32xf32>
    %451 = vector.shape_cast %448 : vector<8x32xf32> to vector<1x1x8x32xf32>
    tpu.vector_store %arg12[%c1_159, %c1_160, %c0_161, %c0_162], %451 {strides = array<i32>} : memref<2x2x8x32xf32, #tpu.memory_space<vmem>>, vector<1x1x8x32xf32>,
    %452 = tpu.concatenate %354, %447 in 0 : vector<8x32xf32>, vector<8x32xf32> -> vector<16x32xf32>
    %c1_163 = arith.constant 1 : index
    %c0_164 = arith.constant 0 : index
    %c0_165 = arith.constant 0 : index
    %453 = vector.load %arg5[%c1_163, %c0_164, %c0_165] : memref<2x1x32xf32, #tpu.memory_space<vmem>>, vector<1x1x32xf32>
    %454 = vector.shape_cast %453 : vector<1x1x32xf32> to vector<1x32xf32>
    %c1_166 = arith.constant 1 : index
    %c0_167 = arith.constant 0 : index
    %c0_168 = arith.constant 0 : index
    %455 = vector.load %arg6[%c1_166, %c0_167, %c0_168] : memref<2x1x32xf32, #tpu.memory_space<vmem>>, vector<1x1x32xf32>
    %456 = vector.shape_cast %455 : vector<1x1x32xf32> to vector<1x32xf32>
    %457 = arith.addf %452, %260 : vector<16x32xf32>
    %cst_169 = arith.constant dense<0.000000e+00> : vector<16xf32>
    %458 = vector.multi_reduction <add>, %457, %cst_169 [1] : vector<16x32xf32> to vector<16xf32>
    %459 = vector.shape_cast %458 : vector<16xf32> to vector<16x1xf32>
    %cst_170 = arith.constant 3.200000e+01 : f32
    %460 = vector.broadcast %cst_170 : f32 to vector<16x1xf32>
    %461 = arith.divf %459, %460 : vector<16x1xf32>
    %462 = arith.mulf %457, %457 : vector<16x32xf32>
    %cst_171 = arith.constant dense<0.000000e+00> : vector<16xf32>
    %463 = vector.multi_reduction <add>, %462, %cst_171 [1] : vector<16x32xf32> to vector<16xf32>
    %464 = vector.shape_cast %463 : vector<16xf32> to vector<16x1xf32>
    %cst_172 = arith.constant 3.200000e+01 : f32
    %465 = vector.broadcast %cst_172 : f32 to vector<16x1xf32>
    %466 = arith.divf %464, %465 : vector<16x1xf32>
    %467 = vector.broadcast %461 : vector<16x1xf32> to vector<16x32xf32>
    %468 = arith.subf %457, %467 : vector<16x32xf32>
    %469 = arith.mulf %461, %461 : vector<16x1xf32>
    %470 = arith.subf %466, %469 : vector<16x1xf32>
    %cst_173 = arith.constant 9.99999974E-6 : f32
    %471 = vector.broadcast %cst_173 : f32 to vector<16x1xf32>
    %472 = arith.addf %470, %471 : vector<16x1xf32>
    %473 = math.rsqrt %472 : vector<16x1xf32>
    %474 = vector.broadcast %473 : vector<16x1xf32> to vector<16x32xf32>
    %475 = arith.mulf %468, %474 : vector<16x32xf32>
    %476 = vector.broadcast %454 : vector<1x32xf32> to vector<16x32xf32>
    %477 = arith.mulf %475, %476 : vector<16x32xf32>
    %478 = vector.broadcast %456 : vector<1x32xf32> to vector<16x32xf32>
    %479 = arith.addf %477, %478 : vector<16x32xf32>
    %c1_174 = arith.constant 1 : index
    %c0_175 = arith.constant 0 : index
    %c0_176 = arith.constant 0 : index
    %480 = vector.load %arg7[%c1_174, %c0_175, %c0_176] : memref<2x32x64xf32, #tpu.memory_space<vmem>>, vector<1x32x64xf32>
    %481 = vector.shape_cast %480 : vector<1x32x64xf32> to vector<32x64xf32>
    %cst_177 = arith.constant dense<0.000000e+00> : vector<16x64xf32>
    %482 = tpu.matmul %479, %481, %cst_177 {dimension_numbers = #tpu.dot_dimension_numbers<[1], [0], [0], [1], [0, 0, 1, 1], [], []>} : vector<16x32xf32>, vector<32x64xf32>, vector<16x64xf32> -> vector<16x64xf32>
    %c1_178 = arith.constant 1 : index
    %c0_179 = arith.constant 0 : index
    %c0_180 = arith.constant 0 : index
    %483 = vector.load %arg8[%c1_178, %c0_179, %c0_180] : memref<2x1x64xf32, #tpu.memory_space<vmem>>, vector<1x1x64xf32>
    %484 = vector.shape_cast %483 : vector<1x1x64xf32> to vector<1x64xf32>
    %485 = vector.broadcast %484 : vector<1x64xf32> to vector<16x64xf32>
    %486 = arith.addf %482, %485 : vector<16x64xf32>
    %cst_181 = arith.constant 0.000000e+00 : f32
    %487 = vector.broadcast %cst_181 : f32 to vector<16x64xf32>
    %488 = arith.maximumf %486, %487 : vector<16x64xf32>
    %c1_182 = arith.constant 1 : index
    %c0_183 = arith.constant 0 : index
    %c0_184 = arith.constant 0 : index
    %489 = vector.load %arg9[%c1_182, %c0_183, %c0_184] : memref<2x64x32xf32, #tpu.memory_space<vmem>>, vector<1x64x32xf32>
    %490 = vector.shape_cast %489 : vector<1x64x32xf32> to vector<64x32xf32>
    %cst_185 = arith.constant dense<0.000000e+00> : vector<16x32xf32>
    %491 = tpu.matmul %488, %490, %cst_185 {dimension_numbers = #tpu.dot_dimension_numbers<[1], [0], [0], [1], [0, 0, 1, 1], [], []>} : vector<16x64xf32>, vector<64x32xf32>, vector<16x32xf32> -> vector<16x32xf32>
    %c1_186 = arith.constant 1 : index
    %c0_187 = arith.constant 0 : index
    %c0_188 = arith.constant 0 : index
    %492 = vector.load %arg10[%c1_186, %c0_187, %c0_188] : memref<2x1x32xf32, #tpu.memory_space<vmem>>, vector<1x1x32xf32>
    %493 = vector.shape_cast %492 : vector<1x1x32xf32> to vector<1x32xf32>
    %494 = vector.broadcast %493 : vector<1x32xf32> to vector<16x32xf32>
    %495 = arith.addf %491, %494 : vector<16x32xf32>
    %496 = arith.addf %495, %479 : vector<16x32xf32>
    %cst_189 = arith.constant dense<0.000000e+00> : vector<16xf32>
    %497 = vector.multi_reduction <add>, %496, %cst_189 [1] : vector<16x32xf32> to vector<16xf32>
    %498 = vector.shape_cast %497 : vector<16xf32> to vector<16x1xf32>
    %cst_190 = arith.constant 3.200000e+01 : f32
    %499 = vector.broadcast %cst_190 : f32 to vector<16x1xf32>
    %500 = arith.divf %498, %499 : vector<16x1xf32>
    %501 = arith.mulf %496, %496 : vector<16x32xf32>
    %cst_191 = arith.constant dense<0.000000e+00> : vector<16xf32>
    %502 = vector.multi_reduction <add>, %501, %cst_191 [1] : vector<16x32xf32> to vector<16xf32>
    %503 = vector.shape_cast %502 : vector<16xf32> to vector<16x1xf32>
    %cst_192 = arith.constant 3.200000e+01 : f32
    %504 = vector.broadcast %cst_192 : f32 to vector<16x1xf32>
    %505 = arith.divf %503, %504 : vector<16x1xf32>
    %506 = vector.broadcast %500 : vector<16x1xf32> to vector<16x32xf32>
    %507 = arith.subf %496, %506 : vector<16x32xf32>
    %508 = arith.mulf %500, %500 : vector<16x1xf32>
    %509 = arith.subf %505, %508 : vector<16x1xf32>
    %cst_193 = arith.constant 9.99999974E-6 : f32
    %510 = vector.broadcast %cst_193 : f32 to vector<16x1xf32>
    %511 = arith.addf %509, %510 : vector<16x1xf32>
    %512 = math.rsqrt %511 : vector<16x1xf32>
    %513 = vector.broadcast %512 : vector<16x1xf32> to vector<16x32xf32>
    %514 = arith.mulf %507, %513 : vector<16x32xf32>
    %515 = vector.broadcast %454 : vector<1x32xf32> to vector<16x32xf32>
    %516 = arith.mulf %514, %515 : vector<16x32xf32>
    %517 = vector.broadcast %456 : vector<1x32xf32> to vector<16x32xf32>
    %518 = arith.addf %516, %517 : vector<16x32xf32>
    %519 = vector.shape_cast %518 : vector<16x32xf32> to vector<2x8x32xf32>
    %c0_194 = arith.constant 0 : index
    %c0_195 = arith.constant 0 : index
    %c0_196 = arith.constant 0 : index
    %520 = vector.load %arg11[%c0_194, %c0_195, %c0_196] : memref<2x8x32xf32, #tpu.memory_space<vmem>>, vector<2x8x32xf32>
    tpu.vector_store %arg11[%c0_194, %c0_195, %c0_196], %519 {strides = array<i32>} : memref<2x8x32xf32, #tpu.memory_space<vmem>>, vector<2x8x32xf32>,
    return
  }
  func.func @transform_0(%arg0: i32) -> (i32, i32, i32) {
    %c0_i32 = arith.constant 0 : i32
    %c0_i32_0 = arith.constant 0 : i32
    %c0_i32_1 = arith.constant 0 : i32
    return %arg0, %c0_i32, %c0_i32_0 : i32, i32, i32
  }
  func.func @transform_1(%arg0: i32) -> (i32, i32) {
    %c0_i32 = arith.constant 0 : i32
    %c0_i32_0 = arith.constant 0 : i32
    %c0_i32_1 = arith.constant 0 : i32
    return %c0_i32, %c0_i32_0 : i32, i32
  }
  func.func @transform_2(%arg0: i32) -> (i32, i32, i32) {
    %c0_i32 = arith.constant 0 : i32
    %c0_i32_0 = arith.constant 0 : i32
    %c0_i32_1 = arith.constant 0 : i32
    %c0_i32_2 = arith.constant 0 : i32
    return %c0_i32, %c0_i32_0, %c0_i32_1 : i32, i32, i32
  }
  func.func @transform_3(%arg0: i32) -> (i32, i32, i32) {
    %c0_i32 = arith.constant 0 : i32
    %c0_i32_0 = arith.constant 0 : i32
    %c0_i32_1 = arith.constant 0 : i32
    %c0_i32_2 = arith.constant 0 : i32
    return %c0_i32, %c0_i32_0, %c0_i32_1 : i32, i32, i32
  }
  func.func @transform_4(%arg0: i32) -> (i32, i32, i32) {
    %c0_i32 = arith.constant 0 : i32
    %c0_i32_0 = arith.constant 0 : i32
    %c0_i32_1 = arith.constant 0 : i32
    %c0_i32_2 = arith.constant 0 : i32
    return %c0_i32, %c0_i32_0, %c0_i32_1 : i32, i32, i32
  }
  func.func @transform_5(%arg0: i32) -> (i32, i32, i32) {
    %c0_i32 = arith.constant 0 : i32
    %c0_i32_0 = arith.constant 0 : i32
    %c0_i32_1 = arith.constant 0 : i32
    %c0_i32_2 = arith.constant 0 : i32
    return %c0_i32, %c0_i32_0, %c0_i32_1 : i32, i32, i32
  }
  func.func @transform_6(%arg0: i32) -> (i32, i32, i32) {
    %c0_i32 = arith.constant 0 : i32
    %c0_i32_0 = arith.constant 0 : i32
    %c0_i32_1 = arith.constant 0 : i32
    %c0_i32_2 = arith.constant 0 : i32
    return %c0_i32, %c0_i32_0, %c0_i32_1 : i32, i32, i32
  }
  func.func @transform_7(%arg0: i32) -> (i32, i32, i32) {
    %c0_i32 = arith.constant 0 : i32
    %c0_i32_0 = arith.constant 0 : i32
    %c0_i32_1 = arith.constant 0 : i32
    %c0_i32_2 = arith.constant 0 : i32
    return %c0_i32, %c0_i32_0, %c0_i32_1 : i32, i32, i32
  }
  func.func @transform_8(%arg0: i32) -> (i32, i32, i32) {
    %c0_i32 = arith.constant 0 : i32
    %c0_i32_0 = arith.constant 0 : i32
    %c0_i32_1 = arith.constant 0 : i32
    %c0_i32_2 = arith.constant 0 : i32
    return %c0_i32, %c0_i32_0, %c0_i32_1 : i32, i32, i32
  }
  func.func @transform_9(%arg0: i32) -> (i32, i32, i32) {
    %c0_i32 = arith.constant 0 : i32
    %c0_i32_0 = arith.constant 0 : i32
    %c0_i32_1 = arith.constant 0 : i32
    %c0_i32_2 = arith.constant 0 : i32
    return %c0_i32, %c0_i32_0, %c0_i32_1 : i32, i32, i32
  }
  func.func @transform_10(%arg0: i32) -> (i32, i32, i32) {
    %c0_i32 = arith.constant 0 : i32
    %c0_i32_0 = arith.constant 0 : i32
    %c0_i32_1 = arith.constant 0 : i32
    return %arg0, %c0_i32, %c0_i32_0 : i32, i32, i32
  }
  func.func @transform_11(%arg0: i32) -> (i32, i32, i32, i32) {
    %c0_i32 = arith.constant 0 : i32
    %c0_i32_0 = arith.constant 0 : i32
    %c0_i32_1 = arith.constant 0 : i32
    %c0_i32_2 = arith.constant 0 : i32
    return %c0_i32, %arg0, %c0_i32_0, %c0_i32_1 : i32, i32, i32, i32
  }
}

</mosaic_0001>

<llo_original>
// kernel: tpu_custom_call.1
$region0: #{tpu_custom_call.1}
  #allocation0 [shape = 'u32[]', space=smem, size = 0x4, offset = 0x4, fixed_abs, tag = 'smem constant byte address 0x4 - core index']
  #allocation1 [shape = 'u32[144,128]{1,0:T(1,128)}', space=vmem, size = 0x12000, scoped, tag = 'internal scratch']
  %s0 = inlined_call_operand.hbm [shape: f32[2,8,32], index: 0, kind: input, shape index: {}]
  %s1 = inlined_call_operand.hbm [shape: f32[8,8], index: 1, kind: input, shape index: {}]
  %s2 = inlined_call_operand.vmem [shape: f32[2,32,96], index: 2, kind: input, shape index: {}]
  %s3 = inlined_call_operand.vmem [shape: f32[2,32,32], index: 3, kind: input, shape index: {}]
  %s4 = inlined_call_operand.vmem [shape: f32[2,1,32], index: 4, kind: input, shape index: {}]
  %s5 = inlined_call_operand.vmem [shape: f32[2,1,32], index: 5, kind: input, shape index: {}]
  %s6 = inlined_call_operand.vmem [shape: f32[2,32,64], index: 6, kind: input, shape index: {}]
  %s7 = inlined_call_operand.vmem [shape: f32[2,1,64], index: 7, kind: input, shape index: {}]
  %s8 = inlined_call_operand.vmem [shape: f32[2,64,32], index: 8, kind: input, shape index: {}]
  %s9 = inlined_call_operand.vmem [shape: f32[2,1,32], index: 9, kind: input, shape index: {}]
  %s10 = inlined_call_operand.hbm [shape: f32[2,8,32], index: 10, kind: output, shape index: {0}]
  %s11 = inlined_call_operand.hbm [shape: f32[2,2,8,32], index: 11, kind: output, shape index: {1}]
  %12 = xla_tuple %s10, %s11
  %s13 = sld [smem:[#allocation0]]
  $region66: #{tpu_custom_call.1} parent=0
    _
  %s15 = ssub.s32 1, %s13
  %s16 = scalar_select 0, %s15, %s13
  $region1: #{tpu_custom_call.1} parent=0
    #allocation2 [shape = 'u8[8192]{0}', space=vmem, size = 0x2000, scoped, tag = 'input window, operand 0, single buffered']
    #allocation3 [shape = 's32[1]{0}', space=sflag, size = 0x4, scoped, tag = 'scoped memory for tpu_custom_call.1']
    #allocation4 [shape = 's32[1]{0}', space=sflag, size = 0x4, scoped, tag = 'scoped memory for tpu_custom_call.1']
    #allocation5 [shape = 'u8[4096]{0}', space=vmem, size = 0x1000, scoped, tag = 'input window, operand 1, single buffered']
    #allocation6 [shape = 's32[1]{0}', space=sflag, size = 0x4, scoped, tag = 'scoped memory for tpu_custom_call.1']
    #allocation7 [shape = 'u8[8192]{0}', space=vmem, size = 0x2000, scoped, tag = 'output window, operand 0, single buffered']
    #allocation8 [shape = 'u8[16384]{0}', space=vmem, size = 0x4000, scoped, tag = 'output window, operand 1, single buffered']
    #allocation9 [shape = 's32[1]{0}', space=sflag, size = 0x4, scoped, tag = 'scoped memory for tpu_custom_call.1']
    %17 = vsyncpa [#allocation3], 0
    %18 = vsyncpa [#allocation6], 0
    %19 = vsyncpa [#allocation4], 0
    %20 = vsyncpa [#allocation9], 0
    // Predicated region
    $region2: #{tpu_custom_call.1} parent=1 // pred_check
      _
    $region3: #{tpu_custom_call.1} parent=1 // pred_check_branch
      %22 = sbr.rel (0) target = $region5
    $region4: #{tpu_custom_call.1} parent=1 // pred_region
      %s24 = ssub.s32 256, 256
      %25 = vsyncadd [#allocation3], %s24
      %s26 = sshll.u32 [#allocation2], 4
      %s27 = int_to_ptr.vmem [resolvable:$true] %s26
      %32 = dma.hbm_to_vmem [thread:$0]  %s0, 256, %s27, [#allocation3], 128, 128, 8
    $region5: #{tpu_custom_call.1} parent=1 // pred_fallthru
      _
    // Predicated region
    $region6: #{tpu_custom_call.1} parent=1 // pred_check
      _
    $region7: #{tpu_custom_call.1} parent=1 // pred_check_branch
      %34 = sbr.rel (0) target = $region9
    $region8: #{tpu_custom_call.1} parent=1 // pred_region
      %s36 = ssub.s32 128, 128
      %37 = vsyncadd [#allocation6], %s36
      %s39 = sshll.u32 [#allocation5], 4
      %s40 = int_to_ptr.vmem [resolvable:$true] %s39
      %42 = dma.hbm_to_vmem [thread:$0]  %s1, 128, %s40, [#allocation6]
    $region9: #{tpu_custom_call.1} parent=1 // pred_fallthru
      _
    // Predicated region
    $region10: #{tpu_custom_call.1} parent=1 // pred_check
      _
    $region11: #{tpu_custom_call.1} parent=1 // pred_check_branch
      %44 = sbr.rel (0) target = $region13
    $region12: #{tpu_custom_call.1} parent=1 // pred_region
      _
    $region13: #{tpu_custom_call.1} parent=1 // pred_fallthru
      _
    // Predicated region
    $region14: #{tpu_custom_call.1} parent=1 // pred_check
      _
    $region15: #{tpu_custom_call.1} parent=1 // pred_check_branch
      %46 = sbr.rel (0) target = $region17
    $region16: #{tpu_custom_call.1} parent=1 // pred_region
      _
    $region17: #{tpu_custom_call.1} parent=1 // pred_fallthru
      _
    // Predicated region
    $region18: #{tpu_custom_call.1} parent=1 // pred_check
      _
    $region19: #{tpu_custom_call.1} parent=1 // pred_check_branch
      %48 = sbr.rel (0) target = $region21
    $region20: #{tpu_custom_call.1} parent=1 // pred_region
      _
    $region21: #{tpu_custom_call.1} parent=1 // pred_fallthru
      _
    // Predicated region
    $region22: #{tpu_custom_call.1} parent=1 // pred_check
      _
    $region23: #{tpu_custom_call.1} parent=1 // pred_check_branch
      %50 = sbr.rel (0) target = $region25
    $region24: #{tpu_custom_call.1} parent=1 // pred_region
      _
    $region25: #{tpu_custom_call.1} parent=1 // pred_fallthru
      _
    // Predicated region
    $region26: #{tpu_custom_call.1} parent=1 // pred_check
      _
    $region27: #{tpu_custom_call.1} parent=1 // pred_check_branch
      %52 = sbr.rel (0) target = $region29
    $region28: #{tpu_custom_call.1} parent=1 // pred_region
      _
    $region29: #{tpu_custom_call.1} parent=1 // pred_fallthru
      _
    // Predicated region
    $region30: #{tpu_custom_call.1} parent=1 // pred_check
      _
    $region31: #{tpu_custom_call.1} parent=1 // pred_check_branch
      %54 = sbr.rel (0) target = $region33
    $region32: #{tpu_custom_call.1} parent=1 // pred_region
      _
    $region33: #{tpu_custom_call.1} parent=1 // pred_fallthru
      _
    // Predicated region
    $region34: #{tpu_custom_call.1} parent=1 // pred_check
      _
    $region35: #{tpu_custom_call.1} parent=1 // pred_check_branch
      %56 = sbr.rel (0) target = $region37
    $region36: #{tpu_custom_call.1} parent=1 // pred_region
      _
    $region37: #{tpu_custom_call.1} parent=1 // pred_fallthru
      _
    // Predicated region
    $region38: #{tpu_custom_call.1} parent=1 // pred_check
      _
    $region39: #{tpu_custom_call.1} parent=1 // pred_check_branch
      %58 = sbr.rel (0) target = $region41
    $region40: #{tpu_custom_call.1} parent=1 // pred_region
      _
    $region41: #{tpu_custom_call.1} parent=1 // pred_fallthru
      _
    // Predicated region
    $region42: #{tpu_custom_call.1} parent=1 // pred_check
      _
    $region43: #{tpu_custom_call.1} parent=1 // pred_check_branch
      %60 = sbr.rel (0) target = $region45
    $region44: #{tpu_custom_call.1} parent=1 // pred_region
      %61 = dma.done [#allocation3], 256
    $region45: #{tpu_custom_call.1} parent=1 // pred_fallthru
      _
    // Predicated region
    $region46: #{tpu_custom_call.1} parent=1 // pred_check
      _
    $region47: #{tpu_custom_call.1} parent=1 // pred_check_branch
      %63 = sbr.rel (0) target = $region49
    $region48: #{tpu_custom_call.1} parent=1 // pred_region
      %64 = dma.done [#allocation6], 128
    $region49: #{tpu_custom_call.1} parent=1 // pred_fallthru
      _
    %v65 = vld [vmem:[#allocation2] sm:$0xff]
    %v66 = vld [vmem:[#allocation2 + $0x8] sm:$0xff]
    %v67 = vld [vmem:[#allocation5] sm:$0xff]
    %v68 = vld [vmem:[%s2] sm:$0xff]
    %v69 = vld [vmem:[%s2 + $0x8] sm:$0xff]
    %v70 = vld [vmem:[%s2 + $0x10] sm:$0xff]
    %v71 = vld [vmem:[%s2 + $0x18] sm:$0xff]
    %vm72 = vcmask 261120
    %v74 = vsel %vm72, %v65, 0
    %v77 = vsel %vm72, %v66, 0
    %79 = vmatprep.subr.mxu0 0.0
    %80 = vmatpush1.msra.mxu0 %v68
    %81 = vmatprep.subr.mxu0 0.0
    %82 = vmatpush1.msra.mxu0 %v69
    %83 = vmatprep.subr.mxu0 0.0
    %84 = vmatpush1.msra.mxu0 %v70
    %85 = vmatprep.subr.mxu0 0.0
    %86 = vmatpush1.msra.mxu0 %v71
    %87 = vmatprep.subr.mxu0 0.0
    %88 = vmatpush1.msra.mxu0 0.0
    %89 = vmatprep.subr.mxu0 0.0
    %90 = vmatpush1.msra.mxu0 0.0
    %91 = vmatprep.subr.mxu0 0.0
    %92 = vmatpush1.msra.mxu0 0.0
    %93 = vmatprep.subr.mxu0 0.0
    %94 = vmatpush1.msra.mxu0 0.0
    %95 = vmatprep.subr.mxu0 0.0
    %96 = vmatpush1.msra.mxu0 0.0
    %97 = vmatprep.subr.mxu0 0.0
    %98 = vmatpush1.msra.mxu0 0.0
    %99 = vmatprep.subr.mxu0 0.0
    %100 = vmatpush1.msra.mxu0 0.0
    %101 = vmatprep.subr.mxu0 0.0
    %102 = vmatpush1.msra.mxu0 0.0
    %103 = vmatprep.subr.mxu0 0.0
    %104 = vmatpush1.msra.mxu0 0.0
    %105 = vmatprep.subr.mxu0 0.0
    %106 = vmatpush1.msra.mxu0 0.0
    %107 = vmatprep.subr.mxu0 0.0
    %108 = vmatpush1.msra.mxu0 0.0
    %109 = vmatprep.subr.mxu0 0.0
    %110 = vmatpush1.msra.mxu0 0.0
    %111 = vmatprep.subr.mxu0 0.0
    %112 = vmatpush1.msra.mxu0 0.0
    %113 = vmatprep.subr.mxu0 0.0
    %114 = vmatpush1.msra.mxu0 0.0
    %115 = vmatprep.subr.mxu0 0.0
    %116 = vmatpush1.msra.mxu0 0.0
    %117 = vmatprep.subr.mxu0 0.0
    %118 = vmatpush1.msra.mxu0 0.0
    %119 = vmatprep.subr.mxu0 0.0
    %120 = vmatpush1.msra.mxu0 0.0
    %121 = vmatprep.subr.mxu0 0.0
    %122 = vmatpush1.msra.mxu0 0.0
    %123 = vmatprep.subr.mxu0 0.0
    %124 = vmatpush1.msra.mxu0 0.0
    %125 = vmatprep.subr.mxu0 0.0
    %126 = vmatpush1.msra.mxu0 0.0
    %127 = vmatprep.subr.mxu0 0.0
    %128 = vmatpush1.msra.mxu0 0.0
    %129 = vmatprep.subr.mxu0 0.0
    %130 = vmatpush1.msra.mxu0 0.0
    %131 = vmatprep.subr.mxu0 0.0
    %132 = vmatpush1.msra.mxu0 0.0
    %133 = vmatprep.subr.mxu0 0.0
    %134 = vmatpush1.msra.mxu0 0.0
    %135 = vmatprep.subr.mxu0 0.0
    %136 = vmatpush1.msra.mxu0 0.0
    %137 = vmatprep.subr.mxu0 0.0
    %138 = vmatpush1.msra.mxu0 0.0
    %139 = vmatprep.subr.mxu0 0.0
    %140 = vmatpush1.msra.mxu0 0.0
    %141 = vmatprep.subr.mxu0 0.0
    %142 = vmatpush1.msra.mxu0 0.0
    %143 = vmatprep.mubr.f32.mxu0 0.0
    %144 = vmatmul.mubr.f32.gmra.mrb[0].mxu0 %v74
    %v145 = vpop.f32.mrb[0].mxu0
    %v146 = vadd.f32 0.0, %v145
    %v147 = vpop.f32.mrb[0].mxu0
    %148 = vmatprep.mubr.f32.mxu0 0.0
    %149 = vmatmul.mubr.f32.gmra.mrb[0].mxu0 %v77
    %v150 = vpop.f32.mrb[0].mxu0
    %v151 = vadd.f32 0.0, %v150
    %v152 = vpop.f32.mrb[0].mxu0
    %153 = vdwg.mxu0
    %v154 = vld [vmem:[%s3] sm:$0xff]
    %v155 = vld [vmem:[%s3 + $0x8] sm:$0xff]
    %v156 = vld [vmem:[%s3 + $0x10] sm:$0xff]
    %v157 = vld [vmem:[%s3 + $0x18] sm:$0xff]
    %159 = vrot.lane.b32.xlu0 %v146, 96
    %v160 = vpop.permute.xlu0 %159
    %vm161 = vcmask 64512
    %v162 = vsel %vm161, %v146, 0
    %v164 = vsel %vm161, %v160, 0
    %166 = vmatprep.subr.mxu0 0.0
    %167 = vmatpush1.xpose.msra.mxu0 %v164
    %168 = vmatprep.subr.mxu0 0.0
    %169 = vmatpush1.xpose.msra.mxu0 0.0
    %170 = vmatprep.subr.mxu0 0.0
    %171 = vmatpush1.xpose.msra.mxu0 0.0
    %172 = vmatprep.subr.mxu0 0.0
    %173 = vmatpush1.xpose.msra.mxu0 0.0
    %174 = vmatprep.subr.mxu0 0.0
    %175 = vmatpush1.xpose.msra.mxu0 0.0
    %176 = vmatprep.subr.mxu0 0.0
    %177 = vmatpush1.xpose.msra.mxu0 0.0
    %178 = vmatprep.subr.mxu0 0.0
    %179 = vmatpush1.xpose.msra.mxu0 0.0
    %180 = vmatprep.subr.mxu0 0.0
    %181 = vmatpush1.xpose.msra.mxu0 0.0
    %182 = vmatprep.subr.mxu0 0.0
    %183 = vmatpush1.xpose.msra.mxu0 0.0
    %184 = vmatprep.subr.mxu0 0.0
    %185 = vmatpush1.xpose.msra.mxu0 0.0
    %186 = vmatprep.subr.mxu0 0.0
    %187 = vmatpush1.xpose.msra.mxu0 0.0
    %188 = vmatprep.subr.mxu0 0.0
    %189 = vmatpush1.xpose.msra.mxu0 0.0
    %190 = vmatprep.subr.mxu0 0.0
    %191 = vmatpush1.xpose.msra.mxu0 0.0
    %192 = vmatprep.subr.mxu0 0.0
    %193 = vmatpush1.xpose.msra.mxu0 0.0
    %194 = vmatprep.subr.mxu0 0.0
    %195 = vmatpush1.xpose.msra.mxu0 0.0
    %196 = vmatprep.subr.mxu0 0.0
    %197 = vmatpush1.xpose.msra.mxu0 0.0
    %198 = vmatprep.subr.mxu0 0.0
    %199 = vmatpush1.xpose.msra.mxu0 0.0
    %200 = vmatprep.subr.mxu0 0.0
    %201 = vmatpush1.xpose.msra.mxu0 0.0
    %202 = vmatprep.subr.mxu0 0.0
    %203 = vmatpush1.xpose.msra.mxu0 0.0
    %204 = vmatprep.subr.mxu0 0.0
    %205 = vmatpush1.xpose.msra.mxu0 0.0
    %206 = vmatprep.subr.mxu0 0.0
    %207 = vmatpush1.xpose.msra.mxu0 0.0
    %208 = vmatprep.subr.mxu0 0.0
    %209 = vmatpush1.xpose.msra.mxu0 0.0
    %210 = vmatprep.subr.mxu0 0.0
    %211 = vmatpush1.xpose.msra.mxu0 0.0
    %212 = vmatprep.subr.mxu0 0.0
    %213 = vmatpush1.xpose.msra.mxu0 0.0
    %214 = vmatprep.subr.mxu0 0.0
    %215 = vmatpush1.xpose.msra.mxu0 0.0
    %216 = vmatprep.subr.mxu0 0.0
    %217 = vmatpush1.xpose.msra.mxu0 0.0
    %218 = vmatprep.subr.mxu0 0.0
    %219 = vmatpush1.xpose.msra.mxu0 0.0
    %220 = vmatprep.subr.mxu0 0.0
    %221 = vmatpush1.xpose.msra.mxu0 0.0
    %222 = vmatprep.subr.mxu0 0.0
    %223 = vmatpush1.xpose.msra.mxu0 0.0
    %224 = vmatprep.subr.mxu0 0.0
    %225 = vmatpush1.xpose.msra.mxu0 0.0
    %226 = vmatprep.subr.mxu0 0.0
    %227 = vmatpush1.xpose.msra.mxu0 0.0
    %228 = vmatprep.subr.mxu0 0.0
    %229 = vmatpush1.xpose.msra.mxu0 0.0
    %230 = vmatprep.mubr.f32.mxu0 0.0
    %231 = vmatmul.mubr.f32.gmra.mrb[0].mxu0 %v162
    %v232 = vpop.f32.mrb[0].mxu0
    %v233 = vadd.f32 0.0, %v232
    %v234 = vpop.f32.mrb[0].mxu0
    %235 = vdwg.mxu0
    %v236 = vmul.f32 %v233, 0.35355338
    %v237 = vadd.f32 %v236, %v67
    %v238 = vsel %vm161, %v237, -inf
    %239 = vmax.xlane.f32.xlu0 %v238
    %v240 = vpop.xlane.xlu0 %239
    %v241 = vsub.f32 %v237, %v240
    %v242 = vmul.f32 %v241, 1.442695
    %v243 = vpow.pop %v242
    %v244 = vsel %vm161, %v243, 0.0
    %245 = vadd.xlane.f32.xlu0 %v244
    %v246 = vpop.xlane.xlu0 %245
    %v247 = vrcp.pop %v246
    %v248 = vmul.f32 %v243, %v247
    %249 = vrot.lane.b32.xlu0 %v146, 64
    %v250 = vpop.permute.xlu0 %249
    %v253 = vsel %vm161, %v248, 0
    %255 = vmatprep.subr.mxu0 0.0
    %256 = vmatpush1.msra.mxu0 %v250
    %257 = vmatprep.subr.mxu0 0.0
    %258 = vmatpush1.msra.mxu0 0.0
    %259 = vmatprep.subr.mxu0 0.0
    %260 = vmatpush1.msra.mxu0 0.0
    %261 = vmatprep.subr.mxu0 0.0
    %262 = vmatpush1.msra.mxu0 0.0
    %263 = vmatprep.subr.mxu0 0.0
    %264 = vmatpush1.msra.mxu0 0.0
    %265 = vmatprep.subr.mxu0 0.0
    %266 = vmatpush1.msra.mxu0 0.0
    %267 = vmatprep.subr.mxu0 0.0
    %268 = vmatpush1.msra.mxu0 0.0
    %269 = vmatprep.subr.mxu0 0.0
    %270 = vmatpush1.msra.mxu0 0.0
    %271 = vmatprep.subr.mxu0 0.0
    %272 = vmatpush1.msra.mxu0 0.0
    %273 = vmatprep.subr.mxu0 0.0
    %274 = vmatpush1.msra.mxu0 0.0
    %275 = vmatprep.subr.mxu0 0.0
    %276 = vmatpush1.msra.mxu0 0.0
    %277 = vmatprep.subr.mxu0 0.0
    %278 = vmatpush1.msra.mxu0 0.0
    %279 = vmatprep.subr.mxu0 0.0
    %280 = vmatpush1.msra.mxu0 0.0
    %281 = vmatprep.subr.mxu0 0.0
    %282 = vmatpush1.msra.mxu0 0.0
    %283 = vmatprep.subr.mxu0 0.0
    %284 = vmatpush1.msra.mxu0 0.0
    %285 = vmatprep.subr.mxu0 0.0
    %286 = vmatpush1.msra.mxu0 0.0
    %287 = vmatprep.subr.mxu0 0.0
    %288 = vmatpush1.msra.mxu0 0.0
    %289 = vmatprep.subr.mxu0 0.0
    %290 = vmatpush1.msra.mxu0 0.0
    %291 = vmatprep.subr.mxu0 0.0
    %292 = vmatpush1.msra.mxu0 0.0
    %293 = vmatprep.subr.mxu0 0.0
    %294 = vmatpush1.msra.mxu0 0.0
    %295 = vmatprep.subr.mxu0 0.0
    %296 = vmatpush1.msra.mxu0 0.0
    %297 = vmatprep.subr.mxu0 0.0
    %298 = vmatpush1.msra.mxu0 0.0
    %299 = vmatprep.subr.mxu0 0.0
    %300 = vmatpush1.msra.mxu0 0.0
    %301 = vmatprep.subr.mxu0 0.0
    %302 = vmatpush1.msra.mxu0 0.0
    %303 = vmatprep.subr.mxu0 0.0
    %304 = vmatpush1.msra.mxu0 0.0
    %305 = vmatprep.subr.mxu0 0.0
    %306 = vmatpush1.msra.mxu0 0.0
    %307 = vmatprep.subr.mxu0 0.0
    %308 = vmatpush1.msra.mxu0 0.0
    %309 = vmatprep.subr.mxu0 0.0
    %310 = vmatpush1.msra.mxu0 0.0
    %311 = vmatprep.subr.mxu0 0.0
    %312 = vmatpush1.msra.mxu0 0.0
    %313 = vmatprep.subr.mxu0 0.0
    %314 = vmatpush1.msra.mxu0 0.0
    %315 = vmatprep.subr.mxu0 0.0
    %316 = vmatpush1.msra.mxu0 0.0
    %317 = vmatprep.subr.mxu0 0.0
    %318 = vmatpush1.msra.mxu0 0.0
    %319 = vmatprep.mubr.f32.mxu0 0.0
    %320 = vmatmul.mubr.f32.gmra.mrb[0].mxu0 %v253
    %v321 = vpop.f32.mrb[0].mxu0
    %v322 = vadd.f32 0.0, %v321
    %v323 = vpop.f32.mrb[0].mxu0
    %324 = vdwg.mxu0
    %325 = vrot.lane.b32.xlu0 %v146, 120
    %v326 = vpop.permute.xlu0 %325
    %327 = vrot.lane.b32.xlu0 %v146, 88
    %v328 = vpop.permute.xlu0 %327
    %v329 = vsel %vm161, %v326, 0
    %v331 = vsel %vm161, %v328, 0
    %333 = vmatprep.subr.mxu0 0.0
    %334 = vmatpush1.xpose.msra.mxu0 %v331
    %335 = vmatprep.subr.mxu0 0.0
    %336 = vmatpush1.xpose.msra.mxu0 0.0
    %337 = vmatprep.subr.mxu0 0.0
    %338 = vmatpush1.xpose.msra.mxu0 0.0
    %339 = vmatprep.subr.mxu0 0.0
    %340 = vmatpush1.xpose.msra.mxu0 0.0
    %341 = vmatprep.subr.mxu0 0.0
    %342 = vmatpush1.xpose.msra.mxu0 0.0
    %343 = vmatprep.subr.mxu0 0.0
    %344 = vmatpush1.xpose.msra.mxu0 0.0
    %345 = vmatprep.subr.mxu0 0.0
    %346 = vmatpush1.xpose.msra.mxu0 0.0
    %347 = vmatprep.subr.mxu0 0.0
    %348 = vmatpush1.xpose.msra.mxu0 0.0
    %349 = vmatprep.subr.mxu0 0.0
    %350 = vmatpush1.xpose.msra.mxu0 0.0
    %351 = vmatprep.subr.mxu0 0.0
    %352 = vmatpush1.xpose.msra.mxu0 0.0
    %353 = vmatprep.subr.mxu0 0.0
    %354 = vmatpush1.xpose.msra.mxu0 0.0
    %355 = vmatprep.subr.mxu0 0.0
    %356 = vmatpush1.xpose.msra.mxu0 0.0
    %357 = vmatprep.subr.mxu0 0.0
    %358 = vmatpush1.xpose.msra.mxu0 0.0
    %359 = vmatprep.subr.mxu0 0.0
    %360 = vmatpush1.xpose.msra.mxu0 0.0
    %361 = vmatprep.subr.mxu0 0.0
    %362 = vmatpush1.xpose.msra.mxu0 0.0
    %363 = vmatprep.subr.mxu0 0.0
    %364 = vmatpush1.xpose.msra.mxu0 0.0
    %365 = vmatprep.subr.mxu0 0.0
    %366 = vmatpush1.xpose.msra.mxu0 0.0
    %367 = vmatprep.subr.mxu0 0.0
    %368 = vmatpush1.xpose.msra.mxu0 0.0
    %369 = vmatprep.subr.mxu0 0.0
    %370 = vmatpush1.xpose.msra.mxu0 0.0
    %371 = vmatprep.subr.mxu0 0.0
    %372 = vmatpush1.xpose.msra.mxu0 0.0
    %373 = vmatprep.subr.mxu0 0.0
    %374 = vmatpush1.xpose.msra.mxu0 0.0
    %375 = vmatprep.subr.mxu0 0.0
    %376 = vmatpush1.xpose.msra.mxu0 0.0
    %377 = vmatprep.subr.mxu0 0.0
    %378 = vmatpush1.xpose.msra.mxu0 0.0
    %379 = vmatprep.subr.mxu0 0.0
    %380 = vmatpush1.xpose.msra.mxu0 0.0
    %381 = vmatprep.subr.mxu0 0.0
    %382 = vmatpush1.xpose.msra.mxu0 0.0
    %383 = vmatprep.subr.mxu0 0.0
    %384 = vmatpush1.xpose.msra.mxu0 0.0
    %385 = vmatprep.subr.mxu0 0.0
    %386 = vmatpush1.xpose.msra.mxu0 0.0
    %387 = vmatprep.subr.mxu0 0.0
    %388 = vmatpush1.xpose.msra.mxu0 0.0
    %389 = vmatprep.subr.mxu0 0.0
    %390 = vmatpush1.xpose.msra.mxu0 0.0
    %391 = vmatprep.subr.mxu0 0.0
    %392 = vmatpush1.xpose.msra.mxu0 0.0
    %393 = vmatprep.subr.mxu0 0.0
    %394 = vmatpush1.xpose.msra.mxu0 0.0
    %395 = vmatprep.subr.mxu0 0.0
    %396 = vmatpush1.xpose.msra.mxu0 0.0
    %397 = vmatprep.mubr.f32.mxu0 0.0
    %398 = vmatmul.mubr.f32.gmra.mrb[0].mxu0 %v329
    %v399 = vpop.f32.mrb[0].mxu0
    %v400 = vadd.f32 0.0, %v399
    %v401 = vpop.f32.mrb[0].mxu0
    %402 = vdwg.mxu0
    %v403 = vmul.f32 %v400, 0.35355338
    %v404 = vadd.f32 %v403, %v67
    %v405 = vsel %vm161, %v404, -inf
    %406 = vmax.xlane.f32.xlu0 %v405
    %v407 = vpop.xlane.xlu0 %406
    %v408 = vsub.f32 %v404, %v407
    %v409 = vmul.f32 %v408, 1.442695
    %v410 = vpow.pop %v409
    %v411 = vsel %vm161, %v410, 0.0
    %412 = vadd.xlane.f32.xlu0 %v411
    %v413 = vpop.xlane.xlu0 %412
    %v414 = vrcp.pop %v413
    %v415 = vmul.f32 %v410, %v414
    %416 = vrot.lane.b32.xlu0 %v146, 56
    %v417 = vpop.permute.xlu0 %416
    %v420 = vsel %vm161, %v415, 0
    %422 = vmatprep.subr.mxu0 0.0
    %423 = vmatpush1.msra.mxu0 %v417
    %424 = vmatprep.subr.mxu0 0.0
    %425 = vmatpush1.msra.mxu0 0.0
    %426 = vmatprep.subr.mxu0 0.0
    %427 = vmatpush1.msra.mxu0 0.0
    %428 = vmatprep.subr.mxu0 0.0
    %429 = vmatpush1.msra.mxu0 0.0
    %430 = vmatprep.subr.mxu0 0.0
    %431 = vmatpush1.msra.mxu0 0.0
    %432 = vmatprep.subr.mxu0 0.0
    %433 = vmatpush1.msra.mxu0 0.0
    %434 = vmatprep.subr.mxu0 0.0
    %435 = vmatpush1.msra.mxu0 0.0
    %436 = vmatprep.subr.mxu0 0.0
    %437 = vmatpush1.msra.mxu0 0.0
    %438 = vmatprep.subr.mxu0 0.0
    %439 = vmatpush1.msra.mxu0 0.0
    %440 = vmatprep.subr.mxu0 0.0
    %441 = vmatpush1.msra.mxu0 0.0
    %442 = vmatprep.subr.mxu0 0.0
    %443 = vmatpush1.msra.mxu0 0.0
    %444 = vmatprep.subr.mxu0 0.0
    %445 = vmatpush1.msra.mxu0 0.0
    %446 = vmatprep.subr.mxu0 0.0
    %447 = vmatpush1.msra.mxu0 0.0
    %448 = vmatprep.subr.mxu0 0.0
    %449 = vmatpush1.msra.mxu0 0.0
    %450 = vmatprep.subr.mxu0 0.0
    %451 = vmatpush1.msra.mxu0 0.0
    %452 = vmatprep.subr.mxu0 0.0
    %453 = vmatpush1.msra.mxu0 0.0
    %454 = vmatprep.subr.mxu0 0.0
    %455 = vmatpush1.msra.mxu0 0.0
    %456 = vmatprep.subr.mxu0 0.0
    %457 = vmatpush1.msra.mxu0 0.0
    %458 = vmatprep.subr.mxu0 0.0
    %459 = vmatpush1.msra.mxu0 0.0
    %460 = vmatprep.subr.mxu0 0.0
    %461 = vmatpush1.msra.mxu0 0.0
    %462 = vmatprep.subr.mxu0 0.0
    %463 = vmatpush1.msra.mxu0 0.0
    %464 = vmatprep.subr.mxu0 0.0
    %465 = vmatpush1.msra.mxu0 0.0
    %466 = vmatprep.subr.mxu0 0.0
    %467 = vmatpush1.msra.mxu0 0.0
    %468 = vmatprep.subr.mxu0 0.0
    %469 = vmatpush1.msra.mxu0 0.0
    %470 = vmatprep.subr.mxu0 0.0
    %471 = vmatpush1.msra.mxu0 0.0
    %472 = vmatprep.subr.mxu0 0.0
    %473 = vmatpush1.msra.mxu0 0.0
    %474 = vmatprep.subr.mxu0 0.0
    %475 = vmatpush1.msra.mxu0 0.0
    %476 = vmatprep.subr.mxu0 0.0
    %477 = vmatpush1.msra.mxu0 0.0
    %478 = vmatprep.subr.mxu0 0.0
    %479 = vmatpush1.msra.mxu0 0.0
    %480 = vmatprep.subr.mxu0 0.0
    %481 = vmatpush1.msra.mxu0 0.0
    %482 = vmatprep.subr.mxu0 0.0
    %483 = vmatpush1.msra.mxu0 0.0
    %484 = vmatprep.subr.mxu0 0.0
    %485 = vmatpush1.msra.mxu0 0.0
    %486 = vmatprep.mubr.f32.mxu0 0.0
    %487 = vmatmul.mubr.f32.gmra.mrb[0].mxu0 %v420
    %v488 = vpop.f32.mrb[0].mxu0
    %v489 = vadd.f32 0.0, %v488
    %v490 = vpop.f32.mrb[0].mxu0
    %491 = vdwg.mxu0
    %v493 = vsel %vm161, %v489, 0
    %495 = vmatprep.subr.mxu0 0.0
    %496 = vmatpush1.msra.mxu0 %v155
    %497 = vmatprep.subr.mxu0 0.0
    %498 = vmatpush1.msra.mxu0 0.0
    %499 = vmatprep.subr.mxu0 0.0
    %500 = vmatpush1.msra.mxu0 0.0
    %501 = vmatprep.subr.mxu0 0.0
    %502 = vmatpush1.msra.mxu0 0.0
    %503 = vmatprep.subr.mxu0 0.0
    %504 = vmatpush1.msra.mxu0 0.0
    %505 = vmatprep.subr.mxu0 0.0
    %506 = vmatpush1.msra.mxu0 0.0
    %507 = vmatprep.subr.mxu0 0.0
    %508 = vmatpush1.msra.mxu0 0.0
    %509 = vmatprep.subr.mxu0 0.0
    %510 = vmatpush1.msra.mxu0 0.0
    %511 = vmatprep.subr.mxu0 0.0
    %512 = vmatpush1.msra.mxu0 0.0
    %513 = vmatprep.subr.mxu0 0.0
    %514 = vmatpush1.msra.mxu0 0.0
    %515 = vmatprep.subr.mxu0 0.0
    %516 = vmatpush1.msra.mxu0 0.0
    %517 = vmatprep.subr.mxu0 0.0
    %518 = vmatpush1.msra.mxu0 0.0
    %519 = vmatprep.subr.mxu0 0.0
    %520 = vmatpush1.msra.mxu0 0.0
    %521 = vmatprep.subr.mxu0 0.0
    %522 = vmatpush1.msra.mxu0 0.0
    %523 = vmatprep.subr.mxu0 0.0
    %524 = vmatpush1.msra.mxu0 0.0
    %525 = vmatprep.subr.mxu0 0.0
    %526 = vmatpush1.msra.mxu0 0.0
    %527 = vmatprep.subr.mxu0 0.0
    %528 = vmatpush1.msra.mxu0 0.0
    %529 = vmatprep.subr.mxu0 0.0
    %530 = vmatpush1.msra.mxu0 0.0
    %531 = vmatprep.subr.mxu0 0.0
    %532 = vmatpush1.msra.mxu0 0.0
    %533 = vmatprep.subr.mxu0 0.0
    %534 = vmatpush1.msra.mxu0 0.0
    %535 = vmatprep.subr.mxu0 0.0
    %536 = vmatpush1.msra.mxu0 0.0
    %537 = vmatprep.subr.mxu0 0.0
    %538 = vmatpush1.msra.mxu0 0.0
    %539 = vmatprep.subr.mxu0 0.0
    %540 = vmatpush1.msra.mxu0 0.0
    %541 = vmatprep.subr.mxu0 0.0
    %542 = vmatpush1.msra.mxu0 0.0
    %543 = vmatprep.subr.mxu0 0.0
    %544 = vmatpush1.msra.mxu0 0.0
    %545 = vmatprep.subr.mxu0 0.0
    %546 = vmatpush1.msra.mxu0 0.0
    %547 = vmatprep.subr.mxu0 0.0
    %548 = vmatpush1.msra.mxu0 0.0
    %549 = vmatprep.subr.mxu0 0.0
    %550 = vmatpush1.msra.mxu0 0.0
    %551 = vmatprep.subr.mxu0 0.0
    %552 = vmatpush1.msra.mxu0 0.0
    %553 = vmatprep.subr.mxu0 0.0
    %554 = vmatpush1.msra.mxu0 0.0
    %555 = vmatprep.subr.mxu0 0.0
    %556 = vmatpush1.msra.mxu0 0.0
    %557 = vmatprep.subr.mxu0 0.0
    %558 = vmatpush1.msra.mxu0 0.0
    %559 = vmatprep.mubr.f32.mxu0 0.0
    %560 = vmatmul.mubr.f32.gmra.mrb[0].mxu0 %v493
    %v561 = vpop.f32.mrb[0].mxu0
    %v562 = vadd.f32 0.0, %v561
    %v563 = vpop.f32.mrb[0].mxu0
    %564 = vdwg.mxu0
    %v566 = vsel %vm161, %v322, 0
    %568 = vmatprep.subr.mxu0 0.0
    %569 = vmatpush1.msra.mxu0 %v154
    %570 = vmatprep.subr.mxu0 0.0
    %571 = vmatpush1.msra.mxu0 0.0
    %572 = vmatprep.subr.mxu0 0.0
    %573 = vmatpush1.msra.mxu0 0.0
    %574 = vmatprep.subr.mxu0 0.0
    %575 = vmatpush1.msra.mxu0 0.0
    %576 = vmatprep.subr.mxu0 0.0
    %577 = vmatpush1.msra.mxu0 0.0
    %578 = vmatprep.subr.mxu0 0.0
    %579 = vmatpush1.msra.mxu0 0.0
    %580 = vmatprep.subr.mxu0 0.0
    %581 = vmatpush1.msra.mxu0 0.0
    %582 = vmatprep.subr.mxu0 0.0
    %583 = vmatpush1.msra.mxu0 0.0
    %584 = vmatprep.subr.mxu0 0.0
    %585 = vmatpush1.msra.mxu0 0.0
    %586 = vmatprep.subr.mxu0 0.0
    %587 = vmatpush1.msra.mxu0 0.0
    %588 = vmatprep.subr.mxu0 0.0
    %589 = vmatpush1.msra.mxu0 0.0
    %590 = vmatprep.subr.mxu0 0.0
    %591 = vmatpush1.msra.mxu0 0.0
    %592 = vmatprep.subr.mxu0 0.0
    %593 = vmatpush1.msra.mxu0 0.0
    %594 = vmatprep.subr.mxu0 0.0
    %595 = vmatpush1.msra.mxu0 0.0
    %596 = vmatprep.subr.mxu0 0.0
    %597 = vmatpush1.msra.mxu0 0.0
    %598 = vmatprep.subr.mxu0 0.0
    %599 = vmatpush1.msra.mxu0 0.0
    %600 = vmatprep.subr.mxu0 0.0
    %601 = vmatpush1.msra.mxu0 0.0
    %602 = vmatprep.subr.mxu0 0.0
    %603 = vmatpush1.msra.mxu0 0.0
    %604 = vmatprep.subr.mxu0 0.0
    %605 = vmatpush1.msra.mxu0 0.0
    %606 = vmatprep.subr.mxu0 0.0
    %607 = vmatpush1.msra.mxu0 0.0
    %608 = vmatprep.subr.mxu0 0.0
    %609 = vmatpush1.msra.mxu0 0.0
    %610 = vmatprep.subr.mxu0 0.0
    %611 = vmatpush1.msra.mxu0 0.0
    %612 = vmatprep.subr.mxu0 0.0
    %613 = vmatpush1.msra.mxu0 0.0
    %614 = vmatprep.subr.mxu0 0.0
    %615 = vmatpush1.msra.mxu0 0.0
    %616 = vmatprep.subr.mxu0 0.0
    %617 = vmatpush1.msra.mxu0 0.0
    %618 = vmatprep.subr.mxu0 0.0
    %619 = vmatpush1.msra.mxu0 0.0
    %620 = vmatprep.subr.mxu0 0.0
    %621 = vmatpush1.msra.mxu0 0.0
    %622 = vmatprep.subr.mxu0 0.0
    %623 = vmatpush1.msra.mxu0 0.0
    %624 = vmatprep.subr.mxu0 0.0
    %625 = vmatpush1.msra.mxu0 0.0
    %626 = vmatprep.subr.mxu0 0.0
    %627 = vmatpush1.msra.mxu0 0.0
    %628 = vmatprep.subr.mxu0 0.0
    %629 = vmatpush1.msra.mxu0 0.0
    %630 = vmatprep.subr.mxu0 0.0
    %631 = vmatpush1.msra.mxu0 0.0
    %632 = vmatprep.mubr.f32.mxu0 0.0
    %633 = vmatmul.mubr.f32.gmra.mrb[0].mxu0 %v566
    %v634 = vpop.f32.mrb[0].mxu0
    %v635 = vadd.f32 %v562, %v634
    %v636 = vpop.f32.mrb[0].mxu0
    %637 = vdwg.mxu0
    %638 = vrot.lane.b32.xlu0 %v146, 112
    %v639 = vpop.permute.xlu0 %638
    %640 = vrot.lane.b32.xlu0 %v146, 80
    %v641 = vpop.permute.xlu0 %640
    %v642 = vsel %vm161, %v639, 0
    %v644 = vsel %vm161, %v641, 0
    %646 = vmatprep.subr.mxu0 0.0
    %647 = vmatpush1.xpose.msra.mxu0 %v644
    %648 = vmatprep.subr.mxu0 0.0
    %649 = vmatpush1.xpose.msra.mxu0 0.0
    %650 = vmatprep.subr.mxu0 0.0
    %651 = vmatpush1.xpose.msra.mxu0 0.0
    %652 = vmatprep.subr.mxu0 0.0
    %653 = vmatpush1.xpose.msra.mxu0 0.0
    %654 = vmatprep.subr.mxu0 0.0
    %655 = vmatpush1.xpose.msra.mxu0 0.0
    %656 = vmatprep.subr.mxu0 0.0
    %657 = vmatpush1.xpose.msra.mxu0 0.0
    %658 = vmatprep.subr.mxu0 0.0
    %659 = vmatpush1.xpose.msra.mxu0 0.0
    %660 = vmatprep.subr.mxu0 0.0
    %661 = vmatpush1.xpose.msra.mxu0 0.0
    %662 = vmatprep.subr.mxu0 0.0
    %663 = vmatpush1.xpose.msra.mxu0 0.0
    %664 = vmatprep.subr.mxu0 0.0
    %665 = vmatpush1.xpose.msra.mxu0 0.0
    %666 = vmatprep.subr.mxu0 0.0
    %667 = vmatpush1.xpose.msra.mxu0 0.0
    %668 = vmatprep.subr.mxu0 0.0
    %669 = vmatpush1.xpose.msra.mxu0 0.0
    %670 = vmatprep.subr.mxu0 0.0
    %671 = vmatpush1.xpose.msra.mxu0 0.0
    %672 = vmatprep.subr.mxu0 0.0
    %673 = vmatpush1.xpose.msra.mxu0 0.0
    %674 = vmatprep.subr.mxu0 0.0
    %675 = vmatpush1.xpose.msra.mxu0 0.0
    %676 = vmatprep.subr.mxu0 0.0
    %677 = vmatpush1.xpose.msra.mxu0 0.0
    %678 = vmatprep.subr.mxu0 0.0
    %679 = vmatpush1.xpose.msra.mxu0 0.0
    %680 = vmatprep.subr.mxu0 0.0
    %681 = vmatpush1.xpose.msra.mxu0 0.0
    %682 = vmatprep.subr.mxu0 0.0
    %683 = vmatpush1.xpose.msra.mxu0 0.0
    %684 = vmatprep.subr.mxu0 0.0
    %685 = vmatpush1.xpose.msra.mxu0 0.0
    %686 = vmatprep.subr.mxu0 0.0
    %687 = vmatpush1.xpose.msra.mxu0 0.0
    %688 = vmatprep.subr.mxu0 0.0
    %689 = vmatpush1.xpose.msra.mxu0 0.0
    %690 = vmatprep.subr.mxu0 0.0
    %691 = vmatpush1.xpose.msra.mxu0 0.0
    %692 = vmatprep.subr.mxu0 0.0
    %693 = vmatpush1.xpose.msra.mxu0 0.0
    %694 = vmatprep.subr.mxu0 0.0
    %695 = vmatpush1.xpose.msra.mxu0 0.0
    %696 = vmatprep.subr.mxu0 0.0
    %697 = vmatpush1.xpose.msra.mxu0 0.0
    %698 = vmatprep.subr.mxu0 0.0
    %699 = vmatpush1.xpose.msra.mxu0 0.0
    %700 = vmatprep.subr.mxu0 0.0
    %701 = vmatpush1.xpose.msra.mxu0 0.0
    %702 = vmatprep.subr.mxu0 0.0
    %703 = vmatpush1.xpose.msra.mxu0 0.0
    %704 = vmatprep.subr.mxu0 0.0
    %705 = vmatpush1.xpose.msra.mxu0 0.0
    %706 = vmatprep.subr.mxu0 0.0
    %707 = vmatpush1.xpose.msra.mxu0 0.0
    %708 = vmatprep.subr.mxu0 0.0
    %709 = vmatpush1.xpose.msra.mxu0 0.0
    %710 = vmatprep.mubr.f32.mxu0 0.0
    %711 = vmatmul.mubr.f32.gmra.mrb[0].mxu0 %v642
    %v712 = vpop.f32.mrb[0].mxu0
    %v713 = vadd.f32 0.0, %v712
    %v714 = vpop.f32.mrb[0].mxu0
    %715 = vdwg.mxu0
    %v716 = vmul.f32 %v713, 0.35355338
    %v717 = vadd.f32 %v716, %v67
    %v718 = vsel %vm161, %v717, -inf
    %719 = vmax.xlane.f32.xlu0 %v718
    %v720 = vpop.xlane.xlu0 %719
    %v721 = vsub.f32 %v717, %v720
    %v722 = vmul.f32 %v721, 1.442695
    %v723 = vpow.pop %v722
    %v724 = vsel %vm161, %v723, 0.0
    %725 = vadd.xlane.f32.xlu0 %v724
    %v726 = vpop.xlane.xlu0 %725
    %v727 = vrcp.pop %v726
    %v728 = vmul.f32 %v723, %v727
    %729 = vrot.lane.b32.xlu0 %v146, 48
    %v730 = vpop.permute.xlu0 %729
    %v733 = vsel %vm161, %v728, 0
    %735 = vmatprep.subr.mxu0 0.0
    %736 = vmatpush1.msra.mxu0 %v730
    %737 = vmatprep.subr.mxu0 0.0
    %738 = vmatpush1.msra.mxu0 0.0
    %739 = vmatprep.subr.mxu0 0.0
    %740 = vmatpush1.msra.mxu0 0.0
    %741 = vmatprep.subr.mxu0 0.0
    %742 = vmatpush1.msra.mxu0 0.0
    %743 = vmatprep.subr.mxu0 0.0
    %744 = vmatpush1.msra.mxu0 0.0
    %745 = vmatprep.subr.mxu0 0.0
    %746 = vmatpush1.msra.mxu0 0.0
    %747 = vmatprep.subr.mxu0 0.0
    %748 = vmatpush1.msra.mxu0 0.0
    %749 = vmatprep.subr.mxu0 0.0
    %750 = vmatpush1.msra.mxu0 0.0
    %751 = vmatprep.subr.mxu0 0.0
    %752 = vmatpush1.msra.mxu0 0.0
    %753 = vmatprep.subr.mxu0 0.0
    %754 = vmatpush1.msra.mxu0 0.0
    %755 = vmatprep.subr.mxu0 0.0
    %756 = vmatpush1.msra.mxu0 0.0
    %757 = vmatprep.subr.mxu0 0.0
    %758 = vmatpush1.msra.mxu0 0.0
    %759 = vmatprep.subr.mxu0 0.0
    %760 = vmatpush1.msra.mxu0 0.0
    %761 = vmatprep.subr.mxu0 0.0
    %762 = vmatpush1.msra.mxu0 0.0
    %763 = vmatprep.subr.mxu0 0.0
    %764 = vmatpush1.msra.mxu0 0.0
    %765 = vmatprep.subr.mxu0 0.0
    %766 = vmatpush1.msra.mxu0 0.0
    %767 = vmatprep.subr.mxu0 0.0
    %768 = vmatpush1.msra.mxu0 0.0
    %769 = vmatprep.subr.mxu0 0.0
    %770 = vmatpush1.msra.mxu0 0.0
    %771 = vmatprep.subr.mxu0 0.0
    %772 = vmatpush1.msra.mxu0 0.0
    %773 = vmatprep.subr.mxu0 0.0
    %774 = vmatpush1.msra.mxu0 0.0
    %775 = vmatprep.subr.mxu0 0.0
    %776 = vmatpush1.msra.mxu0 0.0
    %777 = vmatprep.subr.mxu0 0.0
    %778 = vmatpush1.msra.mxu0 0.0
    %779 = vmatprep.subr.mxu0 0.0
    %780 = vmatpush1.msra.mxu0 0.0
    %781 = vmatprep.subr.mxu0 0.0
    %782 = vmatpush1.msra.mxu0 0.0
    %783 = vmatprep.subr.mxu0 0.0
    %784 = vmatpush1.msra.mxu0 0.0
    %785 = vmatprep.subr.mxu0 0.0
    %786 = vmatpush1.msra.mxu0 0.0
    %787 = vmatprep.subr.mxu0 0.0
    %788 = vmatpush1.msra.mxu0 0.0
    %789 = vmatprep.subr.mxu0 0.0
    %790 = vmatpush1.msra.mxu0 0.0
    %791 = vmatprep.subr.mxu0 0.0
    %792 = vmatpush1.msra.mxu0 0.0
    %793 = vmatprep.subr.mxu0 0.0
    %794 = vmatpush1.msra.mxu0 0.0
    %795 = vmatprep.subr.mxu0 0.0
    %796 = vmatpush1.msra.mxu0 0.0
    %797 = vmatprep.subr.mxu0 0.0
    %798 = vmatpush1.msra.mxu0 0.0
    %799 = vmatprep.mubr.f32.mxu0 0.0
    %800 = vmatmul.mubr.f32.gmra.mrb[0].mxu0 %v733
    %v801 = vpop.f32.mrb[0].mxu0
    %v802 = vadd.f32 0.0, %v801
    %v803 = vpop.f32.mrb[0].mxu0
    %804 = vdwg.mxu0
    %v806 = vsel %vm161, %v802, 0
    %808 = vmatprep.subr.mxu0 0.0
    %809 = vmatpush1.msra.mxu0 %v156
    %810 = vmatprep.subr.mxu0 0.0
    %811 = vmatpush1.msra.mxu0 0.0
    %812 = vmatprep.subr.mxu0 0.0
    %813 = vmatpush1.msra.mxu0 0.0
    %814 = vmatprep.subr.mxu0 0.0
    %815 = vmatpush1.msra.mxu0 0.0
    %816 = vmatprep.subr.mxu0 0.0
    %817 = vmatpush1.msra.mxu0 0.0
    %818 = vmatprep.subr.mxu0 0.0
    %819 = vmatpush1.msra.mxu0 0.0
    %820 = vmatprep.subr.mxu0 0.0
    %821 = vmatpush1.msra.mxu0 0.0
    %822 = vmatprep.subr.mxu0 0.0
    %823 = vmatpush1.msra.mxu0 0.0
    %824 = vmatprep.subr.mxu0 0.0
    %825 = vmatpush1.msra.mxu0 0.0
    %826 = vmatprep.subr.mxu0 0.0
    %827 = vmatpush1.msra.mxu0 0.0
    %828 = vmatprep.subr.mxu0 0.0
    %829 = vmatpush1.msra.mxu0 0.0
    %830 = vmatprep.subr.mxu0 0.0
    %831 = vmatpush1.msra.mxu0 0.0
    %832 = vmatprep.subr.mxu0 0.0
    %833 = vmatpush1.msra.mxu0 0.0
    %834 = vmatprep.subr.mxu0 0.0
    %835 = vmatpush1.msra.mxu0 0.0
    %836 = vmatprep.subr.mxu0 0.0
    %837 = vmatpush1.msra.mxu0 0.0
    %838 = vmatprep.subr.mxu0 0.0
    %839 = vmatpush1.msra.mxu0 0.0
    %840 = vmatprep.subr.mxu0 0.0
    %841 = vmatpush1.msra.mxu0 0.0
    %842 = vmatprep.subr.mxu0 0.0
    %843 = vmatpush1.msra.mxu0 0.0
    %844 = vmatprep.subr.mxu0 0.0
    %845 = vmatpush1.msra.mxu0 0.0
    %846 = vmatprep.subr.mxu0 0.0
    %847 = vmatpush1.msra.mxu0 0.0
    %848 = vmatprep.subr.mxu0 0.0
    %849 = vmatpush1.msra.mxu0 0.0
    %850 = vmatprep.subr.mxu0 0.0
    %851 = vmatpush1.msra.mxu0 0.0
    %852 = vmatprep.subr.mxu0 0.0
    %853 = vmatpush1.msra.mxu0 0.0
    %854 = vmatprep.subr.mxu0 0.0
    %855 = vmatpush1.msra.mxu0 0.0
    %856 = vmatprep.subr.mxu0 0.0
    %857 = vmatpush1.msra.mxu0 0.0
    %858 = vmatprep.subr.mxu0 0.0
    %859 = vmatpush1.msra.mxu0 0.0
    %860 = vmatprep.subr.mxu0 0.0
    %861 = vmatpush1.msra.mxu0 0.0
    %862 = vmatprep.subr.mxu0 0.0
    %863 = vmatpush1.msra.mxu0 0.0
    %864 = vmatprep.subr.mxu0 0.0
    %865 = vmatpush1.msra.mxu0 0.0
    %866 = vmatprep.subr.mxu0 0.0
    %867 = vmatpush1.msra.mxu0 0.0
    %868 = vmatprep.subr.mxu0 0.0
    %869 = vmatpush1.msra.mxu0 0.0
    %870 = vmatprep.subr.mxu0 0.0
    %871 = vmatpush1.msra.mxu0 0.0
    %872 = vmatprep.mubr.f32.mxu0 0.0
    %873 = vmatmul.mubr.f32.gmra.mrb[0].mxu0 %v806
    %v874 = vpop.f32.mrb[0].mxu0
    %v875 = vadd.f32 0.0, %v874
    %v876 = vpop.f32.mrb[0].mxu0
    %877 = vdwg.mxu0
    %v878 = vadd.f32 %v635, %v875
    %879 = vrot.lane.b32.xlu0 %v146, 104
    %v880 = vpop.permute.xlu0 %879
    %881 = vrot.lane.b32.xlu0 %v146, 72
    %v882 = vpop.permute.xlu0 %881
    %v883 = vsel %vm161, %v880, 0
    %v885 = vsel %vm161, %v882, 0
    %887 = vmatprep.subr.mxu0 0.0
    %888 = vmatpush1.xpose.msra.mxu0 %v885
    %889 = vmatprep.subr.mxu0 0.0
    %890 = vmatpush1.xpose.msra.mxu0 0.0
    %891 = vmatprep.subr.mxu0 0.0
    %892 = vmatpush1.xpose.msra.mxu0 0.0
    %893 = vmatprep.subr.mxu0 0.0
    %894 = vmatpush1.xpose.msra.mxu0 0.0
    %895 = vmatprep.subr.mxu0 0.0
    %896 = vmatpush1.xpose.msra.mxu0 0.0
    %897 = vmatprep.subr.mxu0 0.0
    %898 = vmatpush1.xpose.msra.mxu0 0.0
    %899 = vmatprep.subr.mxu0 0.0
    %900 = vmatpush1.xpose.msra.mxu0 0.0
    %901 = vmatprep.subr.mxu0 0.0
    %902 = vmatpush1.xpose.msra.mxu0 0.0
    %903 = vmatprep.subr.mxu0 0.0
    %904 = vmatpush1.xpose.msra.mxu0 0.0
    %905 = vmatprep.subr.mxu0 0.0
    %906 = vmatpush1.xpose.msra.mxu0 0.0
    %907 = vmatprep.subr.mxu0 0.0
    %908 = vmatpush1.xpose.msra.mxu0 0.0
    %909 = vmatprep.subr.mxu0 0.0
    %910 = vmatpush1.xpose.msra.mxu0 0.0
    %911 = vmatprep.subr.mxu0 0.0
    %912 = vmatpush1.xpose.msra.mxu0 0.0
    %913 = vmatprep.subr.mxu0 0.0
    %914 = vmatpush1.xpose.msra.mxu0 0.0
    %915 = vmatprep.subr.mxu0 0.0
    %916 = vmatpush1.xpose.msra.mxu0 0.0
    %917 = vmatprep.subr.mxu0 0.0
    %918 = vmatpush1.xpose.msra.mxu0 0.0
    %919 = vmatprep.subr.mxu0 0.0
    %920 = vmatpush1.xpose.msra.mxu0 0.0
    %921 = vmatprep.subr.mxu0 0.0
    %922 = vmatpush1.xpose.msra.mxu0 0.0
    %923 = vmatprep.subr.mxu0 0.0
    %924 = vmatpush1.xpose.msra.mxu0 0.0
    %925 = vmatprep.subr.mxu0 0.0
    %926 = vmatpush1.xpose.msra.mxu0 0.0
    %927 = vmatprep.subr.mxu0 0.0
    %928 = vmatpush1.xpose.msra.mxu0 0.0
    %929 = vmatprep.subr.mxu0 0.0
    %930 = vmatpush1.xpose.msra.mxu0 0.0
    %931 = vmatprep.subr.mxu0 0.0
    %932 = vmatpush1.xpose.msra.mxu0 0.0
    %933 = vmatprep.subr.mxu0 0.0
    %934 = vmatpush1.xpose.msra.mxu0 0.0
    %935 = vmatprep.subr.mxu0 0.0
    %936 = vmatpush1.xpose.msra.mxu0 0.0
    %937 = vmatprep.subr.mxu0 0.0
    %938 = vmatpush1.xpose.msra.mxu0 0.0
    %939 = vmatprep.subr.mxu0 0.0
    %940 = vmatpush1.xpose.msra.mxu0 0.0
    %941 = vmatprep.subr.mxu0 0.0
    %942 = vmatpush1.xpose.msra.mxu0 0.0
    %943 = vmatprep.subr.mxu0 0.0
    %944 = vmatpush1.xpose.msra.mxu0 0.0
    %945 = vmatprep.subr.mxu0 0.0
    %946 = vmatpush1.xpose.msra.mxu0 0.0
    %947 = vmatprep.subr.mxu0 0.0
    %948 = vmatpush1.xpose.msra.mxu0 0.0
    %949 = vmatprep.subr.mxu0 0.0
    %950 = vmatpush1.xpose.msra.mxu0 0.0
    %951 = vmatprep.mubr.f32.mxu0 0.0
    %952 = vmatmul.mubr.f32.gmra.mrb[0].mxu0 %v883
    %v953 = vpop.f32.mrb[0].mxu0
    %v954 = vadd.f32 0.0, %v953
    %v955 = vpop.f32.mrb[0].mxu0
    %956 = vdwg.mxu0
    %v957 = vmul.f32 %v954, 0.35355338
    %v958 = vadd.f32 %v957, %v67
    %v959 = vsel %vm161, %v958, -inf
    %960 = vmax.xlane.f32.xlu0 %v959
    %v961 = vpop.xlane.xlu0 %960
    %v962 = vsub.f32 %v958, %v961
    %v963 = vmul.f32 %v962, 1.442695
    %v964 = vpow.pop %v963
    %v965 = vsel %vm161, %v964, 0.0
    %966 = vadd.xlane.f32.xlu0 %v965
    %v967 = vpop.xlane.xlu0 %966
    %v968 = vrcp.pop %v967
    %v969 = vmul.f32 %v964, %v968
    %970 = vrot.lane.b32.xlu0 %v146, 40
    %v971 = vpop.permute.xlu0 %970
    %v974 = vsel %vm161, %v969, 0
    %976 = vmatprep.subr.mxu0 0.0
    %977 = vmatpush1.msra.mxu0 %v971
    %978 = vmatprep.subr.mxu0 0.0
    %979 = vmatpush1.msra.mxu0 0.0
    %980 = vmatprep.subr.mxu0 0.0
    %981 = vmatpush1.msra.mxu0 0.0
    %982 = vmatprep.subr.mxu0 0.0
    %983 = vmatpush1.msra.mxu0 0.0
    %984 = vmatprep.subr.mxu0 0.0
    %985 = vmatpush1.msra.mxu0 0.0
    %986 = vmatprep.subr.mxu0 0.0
    %987 = vmatpush1.msra.mxu0 0.0
    %988 = vmatprep.subr.mxu0 0.0
    %989 = vmatpush1.msra.mxu0 0.0
    %990 = vmatprep.subr.mxu0 0.0
    %991 = vmatpush1.msra.mxu0 0.0
    %992 = vmatprep.subr.mxu0 0.0
    %993 = vmatpush1.msra.mxu0 0.0
    %994 = vmatprep.subr.mxu0 0.0
    %995 = vmatpush1.msra.mxu0 0.0
    %996 = vmatprep.subr.mxu0 0.0
    %997 = vmatpush1.msra.mxu0 0.0
    %998 = vmatprep.subr.mxu0 0.0
    %999 = vmatpush1.msra.mxu0 0.0
    %1000 = vmatprep.subr.mxu0 0.0
    %1001 = vmatpush1.msra.mxu0 0.0
    %1002 = vmatprep.subr.mxu0 0.0
    %1003 = vmatpush1.msra.mxu0 0.0
    %1004 = vmatprep.subr.mxu0 0.0
    %1005 = vmatpush1.msra.mxu0 0.0
    %1006 = vmatprep.subr.mxu0 0.0
    %1007 = vmatpush1.msra.mxu0 0.0
    %1008 = vmatprep.subr.mxu0 0.0
    %1009 = vmatpush1.msra.mxu0 0.0
    %1010 = vmatprep.subr.mxu0 0.0
    %1011 = vmatpush1.msra.mxu0 0.0
    %1012 = vmatprep.subr.mxu0 0.0
    %1013 = vmatpush1.msra.mxu0 0.0
    %1014 = vmatprep.subr.mxu0 0.0
    %1015 = vmatpush1.msra.mxu0 0.0
    %1016 = vmatprep.subr.mxu0 0.0
    %1017 = vmatpush1.msra.mxu0 0.0
    %1018 = vmatprep.subr.mxu0 0.0
    %1019 = vmatpush1.msra.mxu0 0.0
    %1020 = vmatprep.subr.mxu0 0.0
    %1021 = vmatpush1.msra.mxu0 0.0
    %1022 = vmatprep.subr.mxu0 0.0
    %1023 = vmatpush1.msra.mxu0 0.0
    %1024 = vmatprep.subr.mxu0 0.0
    %1025 = vmatpush1.msra.mxu0 0.0
    %1026 = vmatprep.subr.mxu0 0.0
    %1027 = vmatpush1.msra.mxu0 0.0
    %1028 = vmatprep.subr.mxu0 0.0
    %1029 = vmatpush1.msra.mxu0 0.0
    %1030 = vmatprep.subr.mxu0 0.0
    %1031 = vmatpush1.msra.mxu0 0.0
    %1032 = vmatprep.subr.mxu0 0.0
    %1033 = vmatpush1.msra.mxu0 0.0
    %1034 = vmatprep.subr.mxu0 0.0
    %1035 = vmatpush1.msra.mxu0 0.0
    %1036 = vmatprep.subr.mxu0 0.0
    %1037 = vmatpush1.msra.mxu0 0.0
    %1038 = vmatprep.subr.mxu0 0.0
    %1039 = vmatpush1.msra.mxu0 0.0
    %1040 = vmatprep.mubr.f32.mxu0 0.0
    %1041 = vmatmul.mubr.f32.gmra.mrb[0].mxu0 %v974
    %v1042 = vpop.f32.mrb[0].mxu0
    %v1043 = vadd.f32 0.0, %v1042
    %v1044 = vpop.f32.mrb[0].mxu0
    %1045 = vdwg.mxu0
    %v1047 = vsel %vm161, %v1043, 0
    %1049 = vmatprep.subr.mxu0 0.0
    %1050 = vmatpush1.msra.mxu0 %v157
    %1051 = vmatprep.subr.mxu0 0.0
    %1052 = vmatpush1.msra.mxu0 0.0
    %1053 = vmatprep.subr.mxu0 0.0
    %1054 = vmatpush1.msra.mxu0 0.0
    %1055 = vmatprep.subr.mxu0 0.0
    %1056 = vmatpush1.msra.mxu0 0.0
    %1057 = vmatprep.subr.mxu0 0.0
    %1058 = vmatpush1.msra.mxu0 0.0
    %1059 = vmatprep.subr.mxu0 0.0
    %1060 = vmatpush1.msra.mxu0 0.0
    %1061 = vmatprep.subr.mxu0 0.0
    %1062 = vmatpush1.msra.mxu0 0.0
    %1063 = vmatprep.subr.mxu0 0.0
    %1064 = vmatpush1.msra.mxu0 0.0
    %1065 = vmatprep.subr.mxu0 0.0
    %1066 = vmatpush1.msra.mxu0 0.0
    %1067 = vmatprep.subr.mxu0 0.0
    %1068 = vmatpush1.msra.mxu0 0.0
    %1069 = vmatprep.subr.mxu0 0.0
    %1070 = vmatpush1.msra.mxu0 0.0
    %1071 = vmatprep.subr.mxu0 0.0
    %1072 = vmatpush1.msra.mxu0 0.0
    %1073 = vmatprep.subr.mxu0 0.0
    %1074 = vmatpush1.msra.mxu0 0.0
    %1075 = vmatprep.subr.mxu0 0.0
    %1076 = vmatpush1.msra.mxu0 0.0
    %1077 = vmatprep.subr.mxu0 0.0
    %1078 = vmatpush1.msra.mxu0 0.0
    %1079 = vmatprep.subr.mxu0 0.0
    %1080 = vmatpush1.msra.mxu0 0.0
    %1081 = vmatprep.subr.mxu0 0.0
    %1082 = vmatpush1.msra.mxu0 0.0
    %1083 = vmatprep.subr.mxu0 0.0
    %1084 = vmatpush1.msra.mxu0 0.0
    %1085 = vmatprep.subr.mxu0 0.0
    %1086 = vmatpush1.msra.mxu0 0.0
    %1087 = vmatprep.subr.mxu0 0.0
    %1088 = vmatpush1.msra.mxu0 0.0
    %1089 = vmatprep.subr.mxu0 0.0
    %1090 = vmatpush1.msra.mxu0 0.0
    %1091 = vmatprep.subr.mxu0 0.0
    %1092 = vmatpush1.msra.mxu0 0.0
    %1093 = vmatprep.subr.mxu0 0.0
    %1094 = vmatpush1.msra.mxu0 0.0
    %1095 = vmatprep.subr.mxu0 0.0
    %1096 = vmatpush1.msra.mxu0 0.0
    %1097 = vmatprep.subr.mxu0 0.0
    %1098 = vmatpush1.msra.mxu0 0.0
    %1099 = vmatprep.subr.mxu0 0.0
    %1100 = vmatpush1.msra.mxu0 0.0
    %1101 = vmatprep.subr.mxu0 0.0
    %1102 = vmatpush1.msra.mxu0 0.0
    %1103 = vmatprep.subr.mxu0 0.0
    %1104 = vmatpush1.msra.mxu0 0.0
    %1105 = vmatprep.subr.mxu0 0.0
    %1106 = vmatpush1.msra.mxu0 0.0
    %1107 = vmatprep.subr.mxu0 0.0
    %1108 = vmatpush1.msra.mxu0 0.0
    %1109 = vmatprep.subr.mxu0 0.0
    %1110 = vmatpush1.msra.mxu0 0.0
    %1111 = vmatprep.subr.mxu0 0.0
    %1112 = vmatpush1.msra.mxu0 0.0
    %1113 = vmatprep.mubr.f32.mxu0 0.0
    %1114 = vmatmul.mubr.f32.gmra.mrb[0].mxu0 %v1047
    %v1115 = vpop.f32.mrb[0].mxu0
    %v1116 = vadd.f32 0.0, %v1115
    %v1117 = vpop.f32.mrb[0].mxu0
    %1118 = vdwg.mxu0
    %v1119 = vadd.f32 %v878, %v1116
    %1120 = vrot.lane.b32.xlu0 %v415, 8
    %v1121 = vpop.permute.xlu0 %1120
    %1123 = vrot.lane.b32.xlu0 %v728, 16
    %v1124 = vpop.permute.xlu0 %1123
    %1126 = vrot.lane.b32.xlu0 %v969, 24
    %v1127 = vpop.permute.xlu0 %1126
    %v1129 = vsel %vm161, %v248, %v1121
    %vm1130 = vcmask 130048
    %v1131 = vsel %vm1130, %v1129, %v1124
    %vm1132 = vcmask 195584
    %v1133 = vsel %vm1132, %v1131, %v1127
    %1134 = vst.msk [vmem:[#allocation8] sm:$0xff] %vm72, %v1133
    %1136 = vrot.lane.b32.xlu0 %v151, 96
    %v1137 = vpop.permute.xlu0 %1136
    %v1138 = vsel %vm161, %v151, 0
    %v1140 = vsel %vm161, %v1137, 0
    %1142 = vmatprep.subr.mxu0 0.0
    %1143 = vmatpush1.xpose.msra.mxu0 %v1140
    %1144 = vmatprep.subr.mxu0 0.0
    %1145 = vmatpush1.xpose.msra.mxu0 0.0
    %1146 = vmatprep.subr.mxu0 0.0
    %1147 = vmatpush1.xpose.msra.mxu0 0.0
    %1148 = vmatprep.subr.mxu0 0.0
    %1149 = vmatpush1.xpose.msra.mxu0 0.0
    %1150 = vmatprep.subr.mxu0 0.0
    %1151 = vmatpush1.xpose.msra.mxu0 0.0
    %1152 = vmatprep.subr.mxu0 0.0
    %1153 = vmatpush1.xpose.msra.mxu0 0.0
    %1154 = vmatprep.subr.mxu0 0.0
    %1155 = vmatpush1.xpose.msra.mxu0 0.0
    %1156 = vmatprep.subr.mxu0 0.0
    %1157 = vmatpush1.xpose.msra.mxu0 0.0
    %1158 = vmatprep.subr.mxu0 0.0
    %1159 = vmatpush1.xpose.msra.mxu0 0.0
    %1160 = vmatprep.subr.mxu0 0.0
    %1161 = vmatpush1.xpose.msra.mxu0 0.0
    %1162 = vmatprep.subr.mxu0 0.0
    %1163 = vmatpush1.xpose.msra.mxu0 0.0
    %1164 = vmatprep.subr.mxu0 0.0
    %1165 = vmatpush1.xpose.msra.mxu0 0.0
    %1166 = vmatprep.subr.mxu0 0.0
    %1167 = vmatpush1.xpose.msra.mxu0 0.0
    %1168 = vmatprep.subr.mxu0 0.0
    %1169 = vmatpush1.xpose.msra.mxu0 0.0
    %1170 = vmatprep.subr.mxu0 0.0
    %1171 = vmatpush1.xpose.msra.mxu0 0.0
    %1172 = vmatprep.subr.mxu0 0.0
    %1173 = vmatpush1.xpose.msra.mxu0 0.0
    %1174 = vmatprep.subr.mxu0 0.0
    %1175 = vmatpush1.xpose.msra.mxu0 0.0
    %1176 = vmatprep.subr.mxu0 0.0
    %1177 = vmatpush1.xpose.msra.mxu0 0.0
    %1178 = vmatprep.subr.mxu0 0.0
    %1179 = vmatpush1.xpose.msra.mxu0 0.0
    %1180 = vmatprep.subr.mxu0 0.0
    %1181 = vmatpush1.xpose.msra.mxu0 0.0
    %1182 = vmatprep.subr.mxu0 0.0
    %1183 = vmatpush1.xpose.msra.mxu0 0.0
    %1184 = vmatprep.subr.mxu0 0.0
    %1185 = vmatpush1.xpose.msra.mxu0 0.0
    %1186 = vmatprep.subr.mxu0 0.0
    %1187 = vmatpush1.xpose.msra.mxu0 0.0
    %1188 = vmatprep.subr.mxu0 0.0
    %1189 = vmatpush1.xpose.msra.mxu0 0.0
    %1190 = vmatprep.subr.mxu0 0.0
    %1191 = vmatpush1.xpose.msra.mxu0 0.0
    %1192 = vmatprep.subr.mxu0 0.0
    %1193 = vmatpush1.xpose.msra.mxu0 0.0
    %1194 = vmatprep.subr.mxu0 0.0
    %1195 = vmatpush1.xpose.msra.mxu0 0.0
    %1196 = vmatprep.subr.mxu0 0.0
    %1197 = vmatpush1.xpose.msra.mxu0 0.0
    %1198 = vmatprep.subr.mxu0 0.0
    %1199 = vmatpush1.xpose.msra.mxu0 0.0
    %1200 = vmatprep.subr.mxu0 0.0
    %1201 = vmatpush1.xpose.msra.mxu0 0.0
    %1202 = vmatprep.subr.mxu0 0.0
    %1203 = vmatpush1.xpose.msra.mxu0 0.0
    %1204 = vmatprep.subr.mxu0 0.0
    %1205 = vmatpush1.xpose.msra.mxu0 0.0
    %1206 = vmatprep.mubr.f32.mxu0 0.0
    %1207 = vmatmul.mubr.f32.gmra.mrb[0].mxu0 %v1138
    %v1208 = vpop.f32.mrb[0].mxu0
    %v1209 = vadd.f32 0.0, %v1208
    %v1210 = vpop.f32.mrb[0].mxu0
    %1211 = vdwg.mxu0
    %v1212 = vmul.f32 %v1209, 0.35355338
    %v1213 = vadd.f32 %v1212, %v67
    %v1214 = vsel %vm161, %v1213, -inf
    %1215 = vmax.xlane.f32.xlu0 %v1214
    %v1216 = vpop.xlane.xlu0 %1215
    %v1217 = vsub.f32 %v1213, %v1216
    %v1218 = vmul.f32 %v1217, 1.442695
    %v1219 = vpow.pop %v1218
    %v1220 = vsel %vm161, %v1219, 0.0
    %1221 = vadd.xlane.f32.xlu0 %v1220
    %v1222 = vpop.xlane.xlu0 %1221
    %v1223 = vrcp.pop %v1222
    %v1224 = vmul.f32 %v1219, %v1223
    %1225 = vrot.lane.b32.xlu0 %v151, 64
    %v1226 = vpop.permute.xlu0 %1225
    %v1229 = vsel %vm161, %v1224, 0
    %1231 = vmatprep.subr.mxu0 0.0
    %1232 = vmatpush1.msra.mxu0 %v1226
    %1233 = vmatprep.subr.mxu0 0.0
    %1234 = vmatpush1.msra.mxu0 0.0
    %1235 = vmatprep.subr.mxu0 0.0
    %1236 = vmatpush1.msra.mxu0 0.0
    %1237 = vmatprep.subr.mxu0 0.0
    %1238 = vmatpush1.msra.mxu0 0.0
    %1239 = vmatprep.subr.mxu0 0.0
    %1240 = vmatpush1.msra.mxu0 0.0
    %1241 = vmatprep.subr.mxu0 0.0
    %1242 = vmatpush1.msra.mxu0 0.0
    %1243 = vmatprep.subr.mxu0 0.0
    %1244 = vmatpush1.msra.mxu0 0.0
    %1245 = vmatprep.subr.mxu0 0.0
    %1246 = vmatpush1.msra.mxu0 0.0
    %1247 = vmatprep.subr.mxu0 0.0
    %1248 = vmatpush1.msra.mxu0 0.0
    %1249 = vmatprep.subr.mxu0 0.0
    %1250 = vmatpush1.msra.mxu0 0.0
    %1251 = vmatprep.subr.mxu0 0.0
    %1252 = vmatpush1.msra.mxu0 0.0
    %1253 = vmatprep.subr.mxu0 0.0
    %1254 = vmatpush1.msra.mxu0 0.0
    %1255 = vmatprep.subr.mxu0 0.0
    %1256 = vmatpush1.msra.mxu0 0.0
    %1257 = vmatprep.subr.mxu0 0.0
    %1258 = vmatpush1.msra.mxu0 0.0
    %1259 = vmatprep.subr.mxu0 0.0
    %1260 = vmatpush1.msra.mxu0 0.0
    %1261 = vmatprep.subr.mxu0 0.0
    %1262 = vmatpush1.msra.mxu0 0.0
    %1263 = vmatprep.subr.mxu0 0.0
    %1264 = vmatpush1.msra.mxu0 0.0
    %1265 = vmatprep.subr.mxu0 0.0
    %1266 = vmatpush1.msra.mxu0 0.0
    %1267 = vmatprep.subr.mxu0 0.0
    %1268 = vmatpush1.msra.mxu0 0.0
    %1269 = vmatprep.subr.mxu0 0.0
    %1270 = vmatpush1.msra.mxu0 0.0
    %1271 = vmatprep.subr.mxu0 0.0
    %1272 = vmatpush1.msra.mxu0 0.0
    %1273 = vmatprep.subr.mxu0 0.0
    %1274 = vmatpush1.msra.mxu0 0.0
    %1275 = vmatprep.subr.mxu0 0.0
    %1276 = vmatpush1.msra.mxu0 0.0
    %1277 = vmatprep.subr.mxu0 0.0
    %1278 = vmatpush1.msra.mxu0 0.0
    %1279 = vmatprep.subr.mxu0 0.0
    %1280 = vmatpush1.msra.mxu0 0.0
    %1281 = vmatprep.subr.mxu0 0.0
    %1282 = vmatpush1.msra.mxu0 0.0
    %1283 = vmatprep.subr.mxu0 0.0
    %1284 = vmatpush1.msra.mxu0 0.0
    %1285 = vmatprep.subr.mxu0 0.0
    %1286 = vmatpush1.msra.mxu0 0.0
    %1287 = vmatprep.subr.mxu0 0.0
    %1288 = vmatpush1.msra.mxu0 0.0
    %1289 = vmatprep.subr.mxu0 0.0
    %1290 = vmatpush1.msra.mxu0 0.0
    %1291 = vmatprep.subr.mxu0 0.0
    %1292 = vmatpush1.msra.mxu0 0.0
    %1293 = vmatprep.subr.mxu0 0.0
    %1294 = vmatpush1.msra.mxu0 0.0
    %1295 = vmatprep.mubr.f32.mxu0 0.0
    %1296 = vmatmul.mubr.f32.gmra.mrb[0].mxu0 %v1229
    %v1297 = vpop.f32.mrb[0].mxu0
    %v1298 = vadd.f32 0.0, %v1297
    %v1299 = vpop.f32.mrb[0].mxu0
    %1300 = vdwg.mxu0
    %1301 = vrot.lane.b32.xlu0 %v151, 120
    %v1302 = vpop.permute.xlu0 %1301
    %1303 = vrot.lane.b32.xlu0 %v151, 88
    %v1304 = vpop.permute.xlu0 %1303
    %v1305 = vsel %vm161, %v1302, 0
    %v1307 = vsel %vm161, %v1304, 0
    %1309 = vmatprep.subr.mxu0 0.0
    %1310 = vmatpush1.xpose.msra.mxu0 %v1307
    %1311 = vmatprep.subr.mxu0 0.0
    %1312 = vmatpush1.xpose.msra.mxu0 0.0
    %1313 = vmatprep.subr.mxu0 0.0
    %1314 = vmatpush1.xpose.msra.mxu0 0.0
    %1315 = vmatprep.subr.mxu0 0.0
    %1316 = vmatpush1.xpose.msra.mxu0 0.0
    %1317 = vmatprep.subr.mxu0 0.0
    %1318 = vmatpush1.xpose.msra.mxu0 0.0
    %1319 = vmatprep.subr.mxu0 0.0
    %1320 = vmatpush1.xpose.msra.mxu0 0.0
    %1321 = vmatprep.subr.mxu0 0.0
    %1322 = vmatpush1.xpose.msra.mxu0 0.0
    %1323 = vmatprep.subr.mxu0 0.0
    %1324 = vmatpush1.xpose.msra.mxu0 0.0
    %1325 = vmatprep.subr.mxu0 0.0
    %1326 = vmatpush1.xpose.msra.mxu0 0.0
    %1327 = vmatprep.subr.mxu0 0.0
    %1328 = vmatpush1.xpose.msra.mxu0 0.0
    %1329 = vmatprep.subr.mxu0 0.0
    %1330 = vmatpush1.xpose.msra.mxu0 0.0
    %1331 = vmatprep.subr.mxu0 0.0
    %1332 = vmatpush1.xpose.msra.mxu0 0.0
    %1333 = vmatprep.subr.mxu0 0.0
    %1334 = vmatpush1.xpose.msra.mxu0 0.0
    %1335 = vmatprep.subr.mxu0 0.0
    %1336 = vmatpush1.xpose.msra.mxu0 0.0
    %1337 = vmatprep.subr.mxu0 0.0
    %1338 = vmatpush1.xpose.msra.mxu0 0.0
    %1339 = vmatprep.subr.mxu0 0.0
    %1340 = vmatpush1.xpose.msra.mxu0 0.0
    %1341 = vmatprep.subr.mxu0 0.0
    %1342 = vmatpush1.xpose.msra.mxu0 0.0
    %1343 = vmatprep.subr.mxu0 0.0
    %1344 = vmatpush1.xpose.msra.mxu0 0.0
    %1345 = vmatprep.subr.mxu0 0.0
    %1346 = vmatpush1.xpose.msra.mxu0 0.0
    %1347 = vmatprep.subr.mxu0 0.0
    %1348 = vmatpush1.xpose.msra.mxu0 0.0
    %1349 = vmatprep.subr.mxu0 0.0
    %1350 = vmatpush1.xpose.msra.mxu0 0.0
    %1351 = vmatprep.subr.mxu0 0.0
    %1352 = vmatpush1.xpose.msra.mxu0 0.0
    %1353 = vmatprep.subr.mxu0 0.0
    %1354 = vmatpush1.xpose.msra.mxu0 0.0
    %1355 = vmatprep.subr.mxu0 0.0
    %1356 = vmatpush1.xpose.msra.mxu0 0.0
    %1357 = vmatprep.subr.mxu0 0.0
    %1358 = vmatpush1.xpose.msra.mxu0 0.0
    %1359 = vmatprep.subr.mxu0 0.0
    %1360 = vmatpush1.xpose.msra.mxu0 0.0
    %1361 = vmatprep.subr.mxu0 0.0
    %1362 = vmatpush1.xpose.msra.mxu0 0.0
    %1363 = vmatprep.subr.mxu0 0.0
    %1364 = vmatpush1.xpose.msra.mxu0 0.0
    %1365 = vmatprep.subr.mxu0 0.0
    %1366 = vmatpush1.xpose.msra.mxu0 0.0
    %1367 = vmatprep.subr.mxu0 0.0
    %1368 = vmatpush1.xpose.msra.mxu0 0.0
    %1369 = vmatprep.subr.mxu0 0.0
    %1370 = vmatpush1.xpose.msra.mxu0 0.0
    %1371 = vmatprep.subr.mxu0 0.0
    %1372 = vmatpush1.xpose.msra.mxu0 0.0
    %1373 = vmatprep.mubr.f32.mxu0 0.0
    %1374 = vmatmul.mubr.f32.gmra.mrb[0].mxu0 %v1305
    %v1375 = vpop.f32.mrb[0].mxu0
    %v1376 = vadd.f32 0.0, %v1375
    %v1377 = vpop.f32.mrb[0].mxu0
    %1378 = vdwg.mxu0
    %v1379 = vmul.f32 %v1376, 0.35355338
    %v1380 = vadd.f32 %v1379, %v67
    %v1381 = vsel %vm161, %v1380, -inf
    %1382 = vmax.xlane.f32.xlu0 %v1381
    %v1383 = vpop.xlane.xlu0 %1382
    %v1384 = vsub.f32 %v1380, %v1383
    %v1385 = vmul.f32 %v1384, 1.442695
    %v1386 = vpow.pop %v1385
    %v1387 = vsel %vm161, %v1386, 0.0
    %1388 = vadd.xlane.f32.xlu0 %v1387
    %v1389 = vpop.xlane.xlu0 %1388
    %v1390 = vrcp.pop %v1389
    %v1391 = vmul.f32 %v1386, %v1390
    %1392 = vrot.lane.b32.xlu0 %v151, 56
    %v1393 = vpop.permute.xlu0 %1392
    %v1396 = vsel %vm161, %v1391, 0
    %1398 = vmatprep.subr.mxu0 0.0
    %1399 = vmatpush1.msra.mxu0 %v1393
    %1400 = vmatprep.subr.mxu0 0.0
    %1401 = vmatpush1.msra.mxu0 0.0
    %1402 = vmatprep.subr.mxu0 0.0
    %1403 = vmatpush1.msra.mxu0 0.0
    %1404 = vmatprep.subr.mxu0 0.0
    %1405 = vmatpush1.msra.mxu0 0.0
    %1406 = vmatprep.subr.mxu0 0.0
    %1407 = vmatpush1.msra.mxu0 0.0
    %1408 = vmatprep.subr.mxu0 0.0
    %1409 = vmatpush1.msra.mxu0 0.0
    %1410 = vmatprep.subr.mxu0 0.0
    %1411 = vmatpush1.msra.mxu0 0.0
    %1412 = vmatprep.subr.mxu0 0.0
    %1413 = vmatpush1.msra.mxu0 0.0
    %1414 = vmatprep.subr.mxu0 0.0
    %1415 = vmatpush1.msra.mxu0 0.0
    %1416 = vmatprep.subr.mxu0 0.0
    %1417 = vmatpush1.msra.mxu0 0.0
    %1418 = vmatprep.subr.mxu0 0.0
    %1419 = vmatpush1.msra.mxu0 0.0
    %1420 = vmatprep.subr.mxu0 0.0
    %1421 = vmatpush1.msra.mxu0 0.0
    %1422 = vmatprep.subr.mxu0 0.0
    %1423 = vmatpush1.msra.mxu0 0.0
    %1424 = vmatprep.subr.mxu0 0.0
    %1425 = vmatpush1.msra.mxu0 0.0
    %1426 = vmatprep.subr.mxu0 0.0
    %1427 = vmatpush1.msra.mxu0 0.0
    %1428 = vmatprep.subr.mxu0 0.0
    %1429 = vmatpush1.msra.mxu0 0.0
    %1430 = vmatprep.subr.mxu0 0.0
    %1431 = vmatpush1.msra.mxu0 0.0
    %1432 = vmatprep.subr.mxu0 0.0
    %1433 = vmatpush1.msra.mxu0 0.0
    %1434 = vmatprep.subr.mxu0 0.0
    %1435 = vmatpush1.msra.mxu0 0.0
    %1436 = vmatprep.subr.mxu0 0.0
    %1437 = vmatpush1.msra.mxu0 0.0
    %1438 = vmatprep.subr.mxu0 0.0
    %1439 = vmatpush1.msra.mxu0 0.0
    %1440 = vmatprep.subr.mxu0 0.0
    %1441 = vmatpush1.msra.mxu0 0.0
    %1442 = vmatprep.subr.mxu0 0.0
    %1443 = vmatpush1.msra.mxu0 0.0
    %1444 = vmatprep.subr.mxu0 0.0
    %1445 = vmatpush1.msra.mxu0 0.0
    %1446 = vmatprep.subr.mxu0 0.0
    %1447 = vmatpush1.msra.mxu0 0.0
    %1448 = vmatprep.subr.mxu0 0.0
    %1449 = vmatpush1.msra.mxu0 0.0
    %1450 = vmatprep.subr.mxu0 0.0
    %1451 = vmatpush1.msra.mxu0 0.0
    %1452 = vmatprep.subr.mxu0 0.0
    %1453 = vmatpush1.msra.mxu0 0.0
    %1454 = vmatprep.subr.mxu0 0.0
    %1455 = vmatpush1.msra.mxu0 0.0
    %1456 = vmatprep.subr.mxu0 0.0
    %1457 = vmatpush1.msra.mxu0 0.0
    %1458 = vmatprep.subr.mxu0 0.0
    %1459 = vmatpush1.msra.mxu0 0.0
    %1460 = vmatprep.subr.mxu0 0.0
    %1461 = vmatpush1.msra.mxu0 0.0
    %1462 = vmatprep.mubr.f32.mxu0 0.0
    %1463 = vmatmul.mubr.f32.gmra.mrb[0].mxu0 %v1396
    %v1464 = vpop.f32.mrb[0].mxu0
    %v1465 = vadd.f32 0.0, %v1464
    %v1466 = vpop.f32.mrb[0].mxu0
    %1467 = vdwg.mxu0
    %v1469 = vsel %vm161, %v1465, 0
    %1471 = vmatprep.subr.mxu0 0.0
    %1472 = vmatpush1.msra.mxu0 %v155
    %1473 = vmatprep.subr.mxu0 0.0
    %1474 = vmatpush1.msra.mxu0 0.0
    %1475 = vmatprep.subr.mxu0 0.0
    %1476 = vmatpush1.msra.mxu0 0.0
    %1477 = vmatprep.subr.mxu0 0.0
    %1478 = vmatpush1.msra.mxu0 0.0
    %1479 = vmatprep.subr.mxu0 0.0
    %1480 = vmatpush1.msra.mxu0 0.0
    %1481 = vmatprep.subr.mxu0 0.0
    %1482 = vmatpush1.msra.mxu0 0.0
    %1483 = vmatprep.subr.mxu0 0.0
    %1484 = vmatpush1.msra.mxu0 0.0
    %1485 = vmatprep.subr.mxu0 0.0
    %1486 = vmatpush1.msra.mxu0 0.0
    %1487 = vmatprep.subr.mxu0 0.0
    %1488 = vmatpush1.msra.mxu0 0.0
    %1489 = vmatprep.subr.mxu0 0.0
    %1490 = vmatpush1.msra.mxu0 0.0
    %1491 = vmatprep.subr.mxu0 0.0
    %1492 = vmatpush1.msra.mxu0 0.0
    %1493 = vmatprep.subr.mxu0 0.0
    %1494 = vmatpush1.msra.mxu0 0.0
    %1495 = vmatprep.subr.mxu0 0.0
    %1496 = vmatpush1.msra.mxu0 0.0
    %1497 = vmatprep.subr.mxu0 0.0
    %1498 = vmatpush1.msra.mxu0 0.0
    %1499 = vmatprep.subr.mxu0 0.0
    %1500 = vmatpush1.msra.mxu0 0.0
    %1501 = vmatprep.subr.mxu0 0.0
    %1502 = vmatpush1.msra.mxu0 0.0
    %1503 = vmatprep.subr.mxu0 0.0
    %1504 = vmatpush1.msra.mxu0 0.0
    %1505 = vmatprep.subr.mxu0 0.0
    %1506 = vmatpush1.msra.mxu0 0.0
    %1507 = vmatprep.subr.mxu0 0.0
    %1508 = vmatpush1.msra.mxu0 0.0
    %1509 = vmatprep.subr.mxu0 0.0
    %1510 = vmatpush1.msra.mxu0 0.0
    %1511 = vmatprep.subr.mxu0 0.0
    %1512 = vmatpush1.msra.mxu0 0.0
    %1513 = vmatprep.subr.mxu0 0.0
    %1514 = vmatpush1.msra.mxu0 0.0
    %1515 = vmatprep.subr.mxu0 0.0
    %1516 = vmatpush1.msra.mxu0 0.0
    %1517 = vmatprep.subr.mxu0 0.0
    %1518 = vmatpush1.msra.mxu0 0.0
    %1519 = vmatprep.subr.mxu0 0.0
    %1520 = vmatpush1.msra.mxu0 0.0
    %1521 = vmatprep.subr.mxu0 0.0
    %1522 = vmatpush1.msra.mxu0 0.0
    %1523 = vmatprep.subr.mxu0 0.0
    %1524 = vmatpush1.msra.mxu0 0.0
    %1525 = vmatprep.subr.mxu0 0.0
    %1526 = vmatpush1.msra.mxu0 0.0
    %1527 = vmatprep.subr.mxu0 0.0
    %1528 = vmatpush1.msra.mxu0 0.0
    %1529 = vmatprep.subr.mxu0 0.0
    %1530 = vmatpush1.msra.mxu0 0.0
    %1531 = vmatprep.subr.mxu0 0.0
    %1532 = vmatpush1.msra.mxu0 0.0
    %1533 = vmatprep.subr.mxu0 0.0
    %1534 = vmatpush1.msra.mxu0 0.0
    %1535 = vmatprep.mubr.f32.mxu0 0.0
    %1536 = vmatmul.mubr.f32.gmra.mrb[0].mxu0 %v1469
    %v1537 = vpop.f32.mrb[0].mxu0
    %v1538 = vadd.f32 0.0, %v1537
    %v1539 = vpop.f32.mrb[0].mxu0
    %1540 = vdwg.mxu0
    %v1542 = vsel %vm161, %v1298, 0
    %1544 = vmatprep.subr.mxu0 0.0
    %1545 = vmatpush1.msra.mxu0 %v154
    %1546 = vmatprep.subr.mxu0 0.0
    %1547 = vmatpush1.msra.mxu0 0.0
    %1548 = vmatprep.subr.mxu0 0.0
    %1549 = vmatpush1.msra.mxu0 0.0
    %1550 = vmatprep.subr.mxu0 0.0
    %1551 = vmatpush1.msra.mxu0 0.0
    %1552 = vmatprep.subr.mxu0 0.0
    %1553 = vmatpush1.msra.mxu0 0.0
    %1554 = vmatprep.subr.mxu0 0.0
    %1555 = vmatpush1.msra.mxu0 0.0
    %1556 = vmatprep.subr.mxu0 0.0
    %1557 = vmatpush1.msra.mxu0 0.0
    %1558 = vmatprep.subr.mxu0 0.0
    %1559 = vmatpush1.msra.mxu0 0.0
    %1560 = vmatprep.subr.mxu0 0.0
    %1561 = vmatpush1.msra.mxu0 0.0
    %1562 = vmatprep.subr.mxu0 0.0
    %1563 = vmatpush1.msra.mxu0 0.0
    %1564 = vmatprep.subr.mxu0 0.0
    %1565 = vmatpush1.msra.mxu0 0.0
    %1566 = vmatprep.subr.mxu0 0.0
    %1567 = vmatpush1.msra.mxu0 0.0
    %1568 = vmatprep.subr.mxu0 0.0
    %1569 = vmatpush1.msra.mxu0 0.0
    %1570 = vmatprep.subr.mxu0 0.0
    %1571 = vmatpush1.msra.mxu0 0.0
    %1572 = vmatprep.subr.mxu0 0.0
    %1573 = vmatpush1.msra.mxu0 0.0
    %1574 = vmatprep.subr.mxu0 0.0
    %1575 = vmatpush1.msra.mxu0 0.0
    %1576 = vmatprep.subr.mxu0 0.0
    %1577 = vmatpush1.msra.mxu0 0.0
    %1578 = vmatprep.subr.mxu0 0.0
    %1579 = vmatpush1.msra.mxu0 0.0
    %1580 = vmatprep.subr.mxu0 0.0
    %1581 = vmatpush1.msra.mxu0 0.0
    %1582 = vmatprep.subr.mxu0 0.0
    %1583 = vmatpush1.msra.mxu0 0.0
    %1584 = vmatprep.subr.mxu0 0.0
    %1585 = vmatpush1.msra.mxu0 0.0
    %1586 = vmatprep.subr.mxu0 0.0
    %1587 = vmatpush1.msra.mxu0 0.0
    %1588 = vmatprep.subr.mxu0 0.0
    %1589 = vmatpush1.msra.mxu0 0.0
    %1590 = vmatprep.subr.mxu0 0.0
    %1591 = vmatpush1.msra.mxu0 0.0
    %1592 = vmatprep.subr.mxu0 0.0
    %1593 = vmatpush1.msra.mxu0 0.0
    %1594 = vmatprep.subr.mxu0 0.0
    %1595 = vmatpush1.msra.mxu0 0.0
    %1596 = vmatprep.subr.mxu0 0.0
    %1597 = vmatpush1.msra.mxu0 0.0
    %1598 = vmatprep.subr.mxu0 0.0
    %1599 = vmatpush1.msra.mxu0 0.0
    %1600 = vmatprep.subr.mxu0 0.0
    %1601 = vmatpush1.msra.mxu0 0.0
    %1602 = vmatprep.subr.mxu0 0.0
    %1603 = vmatpush1.msra.mxu0 0.0
    %1604 = vmatprep.subr.mxu0 0.0
    %1605 = vmatpush1.msra.mxu0 0.0
    %1606 = vmatprep.subr.mxu0 0.0
    %1607 = vmatpush1.msra.mxu0 0.0
    %1608 = vmatprep.mubr.f32.mxu0 0.0
    %1609 = vmatmul.mubr.f32.gmra.mrb[0].mxu0 %v1542
    %v1610 = vpop.f32.mrb[0].mxu0
    %v1611 = vadd.f32 %v1538, %v1610
    %v1612 = vpop.f32.mrb[0].mxu0
    %1613 = vdwg.mxu0
    %1614 = vrot.lane.b32.xlu0 %v151, 112
    %v1615 = vpop.permute.xlu0 %1614
    %1616 = vrot.lane.b32.xlu0 %v151, 80
    %v1617 = vpop.permute.xlu0 %1616
    %v1618 = vsel %vm161, %v1615, 0
    %v1620 = vsel %vm161, %v1617, 0
    %1622 = vmatprep.subr.mxu0 0.0
    %1623 = vmatpush1.xpose.msra.mxu0 %v1620
    %1624 = vmatprep.subr.mxu0 0.0
    %1625 = vmatpush1.xpose.msra.mxu0 0.0
    %1626 = vmatprep.subr.mxu0 0.0
    %1627 = vmatpush1.xpose.msra.mxu0 0.0
    %1628 = vmatprep.subr.mxu0 0.0
    %1629 = vmatpush1.xpose.msra.mxu0 0.0
    %1630 = vmatprep.subr.mxu0 0.0
    %1631 = vmatpush1.xpose.msra.mxu0 0.0
    %1632 = vmatprep.subr.mxu0 0.0
    %1633 = vmatpush1.xpose.msra.mxu0 0.0
    %1634 = vmatprep.subr.mxu0 0.0
    %1635 = vmatpush1.xpose.msra.mxu0 0.0
    %1636 = vmatprep.subr.mxu0 0.0
    %1637 = vmatpush1.xpose.msra.mxu0 0.0
    %1638 = vmatprep.subr.mxu0 0.0
    %1639 = vmatpush1.xpose.msra.mxu0 0.0
    %1640 = vmatprep.subr.mxu0 0.0
    %1641 = vmatpush1.xpose.msra.mxu0 0.0
    %1642 = vmatprep.subr.mxu0 0.0
    %1643 = vmatpush1.xpose.msra.mxu0 0.0
    %1644 = vmatprep.subr.mxu0 0.0
    %1645 = vmatpush1.xpose.msra.mxu0 0.0
    %1646 = vmatprep.subr.mxu0 0.0
    %1647 = vmatpush1.xpose.msra.mxu0 0.0
    %1648 = vmatprep.subr.mxu0 0.0
    %1649 = vmatpush1.xpose.msra.mxu0 0.0
    %1650 = vmatprep.subr.mxu0 0.0
    %1651 = vmatpush1.xpose.msra.mxu0 0.0
    %1652 = vmatprep.subr.mxu0 0.0
    %1653 = vmatpush1.xpose.msra.mxu0 0.0
    %1654 = vmatprep.subr.mxu0 0.0
    %1655 = vmatpush1.xpose.msra.mxu0 0.0
    %1656 = vmatprep.subr.mxu0 0.0
    %1657 = vmatpush1.xpose.msra.mxu0 0.0
    %1658 = vmatprep.subr.mxu0 0.0
    %1659 = vmatpush1.xpose.msra.mxu0 0.0
    %1660 = vmatprep.subr.mxu0 0.0
    %1661 = vmatpush1.xpose.msra.mxu0 0.0
    %1662 = vmatprep.subr.mxu0 0.0
    %1663 = vmatpush1.xpose.msra.mxu0 0.0
    %1664 = vmatprep.subr.mxu0 0.0
    %1665 = vmatpush1.xpose.msra.mxu0 0.0
    %1666 = vmatprep.subr.mxu0 0.0
    %1667 = vmatpush1.xpose.msra.mxu0 0.0
    %1668 = vmatprep.subr.mxu0 0.0
    %1669 = vmatpush1.xpose.msra.mxu0 0.0
    %1670 = vmatprep.subr.mxu0 0.0
    %1671 = vmatpush1.xpose.msra.mxu0 0.0
    %1672 = vmatprep.subr.mxu0 0.0
    %1673 = vmatpush1.xpose.msra.mxu0 0.0
    %1674 = vmatprep.subr.mxu0 0.0
    %1675 = vmatpush1.xpose.msra.mxu0 0.0
    %1676 = vmatprep.subr.mxu0 0.0
    %1677 = vmatpush1.xpose.msra.mxu0 0.0
    %1678 = vmatprep.subr.mxu0 0.0
    %1679 = vmatpush1.xpose.msra.mxu0 0.0
    %1680 = vmatprep.subr.mxu0 0.0
    %1681 = vmatpush1.xpose.msra.mxu0 0.0
    %1682 = vmatprep.subr.mxu0 0.0
    %1683 = vmatpush1.xpose.msra.mxu0 0.0
    %1684 = vmatprep.subr.mxu0 0.0
    %1685 = vmatpush1.xpose.msra.mxu0 0.0
    %1686 = vmatprep.mubr.f32.mxu0 0.0
    %1687 = vmatmul.mubr.f32.gmra.mrb[0].mxu0 %v1618
    %v1688 = vpop.f32.mrb[0].mxu0
    %v1689 = vadd.f32 0.0, %v1688
    %v1690 = vpop.f32.mrb[0].mxu0
    %1691 = vdwg.mxu0
    %v1692 = vmul.f32 %v1689, 0.35355338
    %v1693 = vadd.f32 %v1692, %v67
    %v1694 = vsel %vm161, %v1693, -inf
    %1695 = vmax.xlane.f32.xlu0 %v1694
    %v1696 = vpop.xlane.xlu0 %1695
    %v1697 = vsub.f32 %v1693, %v1696
    %v1698 = vmul.f32 %v1697, 1.442695
    %v1699 = vpow.pop %v1698
    %v1700 = vsel %vm161, %v1699, 0.0
    %1701 = vadd.xlane.f32.xlu0 %v1700
    %v1702 = vpop.xlane.xlu0 %1701
    %v1703 = vrcp.pop %v1702
    %v1704 = vmul.f32 %v1699, %v1703
    %1705 = vrot.lane.b32.xlu0 %v151, 48
    %v1706 = vpop.permute.xlu0 %1705
    %v1709 = vsel %vm161, %v1704, 0
    %1711 = vmatprep.subr.mxu0 0.0
    %1712 = vmatpush1.msra.mxu0 %v1706
    %1713 = vmatprep.subr.mxu0 0.0
    %1714 = vmatpush1.msra.mxu0 0.0
    %1715 = vmatprep.subr.mxu0 0.0
    %1716 = vmatpush1.msra.mxu0 0.0
    %1717 = vmatprep.subr.mxu0 0.0
    %1718 = vmatpush1.msra.mxu0 0.0
    %1719 = vmatprep.subr.mxu0 0.0
    %1720 = vmatpush1.msra.mxu0 0.0
    %1721 = vmatprep.subr.mxu0 0.0
    %1722 = vmatpush1.msra.mxu0 0.0
    %1723 = vmatprep.subr.mxu0 0.0
    %1724 = vmatpush1.msra.mxu0 0.0
    %1725 = vmatprep.subr.mxu0 0.0
    %1726 = vmatpush1.msra.mxu0 0.0
    %1727 = vmatprep.subr.mxu0 0.0
    %1728 = vmatpush1.msra.mxu0 0.0
    %1729 = vmatprep.subr.mxu0 0.0
    %1730 = vmatpush1.msra.mxu0 0.0
    %1731 = vmatprep.subr.mxu0 0.0
    %1732 = vmatpush1.msra.mxu0 0.0
    %1733 = vmatprep.subr.mxu0 0.0
    %1734 = vmatpush1.msra.mxu0 0.0
    %1735 = vmatprep.subr.mxu0 0.0
    %1736 = vmatpush1.msra.mxu0 0.0
    %1737 = vmatprep.subr.mxu0 0.0
    %1738 = vmatpush1.msra.mxu0 0.0
    %1739 = vmatprep.subr.mxu0 0.0
    %1740 = vmatpush1.msra.mxu0 0.0
    %1741 = vmatprep.subr.mxu0 0.0
    %1742 = vmatpush1.msra.mxu0 0.0
    %1743 = vmatprep.subr.mxu0 0.0
    %1744 = vmatpush1.msra.mxu0 0.0
    %1745 = vmatprep.subr.mxu0 0.0
    %1746 = vmatpush1.msra.mxu0 0.0
    %1747 = vmatprep.subr.mxu0 0.0
    %1748 = vmatpush1.msra.mxu0 0.0
    %1749 = vmatprep.subr.mxu0 0.0
    %1750 = vmatpush1.msra.mxu0 0.0
    %1751 = vmatprep.subr.mxu0 0.0
    %1752 = vmatpush1.msra.mxu0 0.0
    %1753 = vmatprep.subr.mxu0 0.0
    %1754 = vmatpush1.msra.mxu0 0.0
    %1755 = vmatprep.subr.mxu0 0.0
    %1756 = vmatpush1.msra.mxu0 0.0
    %1757 = vmatprep.subr.mxu0 0.0
    %1758 = vmatpush1.msra.mxu0 0.0
    %1759 = vmatprep.subr.mxu0 0.0
    %1760 = vmatpush1.msra.mxu0 0.0
    %1761 = vmatprep.subr.mxu0 0.0
    %1762 = vmatpush1.msra.mxu0 0.0
    %1763 = vmatprep.subr.mxu0 0.0
    %1764 = vmatpush1.msra.mxu0 0.0
    %1765 = vmatprep.subr.mxu0 0.0
    %1766 = vmatpush1.msra.mxu0 0.0
    %1767 = vmatprep.subr.mxu0 0.0
    %1768 = vmatpush1.msra.mxu0 0.0
    %1769 = vmatprep.subr.mxu0 0.0
    %1770 = vmatpush1.msra.mxu0 0.0
    %1771 = vmatprep.subr.mxu0 0.0
    %1772 = vmatpush1.msra.mxu0 0.0
    %1773 = vmatprep.subr.mxu0 0.0
    %1774 = vmatpush1.msra.mxu0 0.0
    %1775 = vmatprep.mubr.f32.mxu0 0.0
    %1776 = vmatmul.mubr.f32.gmra.mrb[0].mxu0 %v1709
    %v1777 = vpop.f32.mrb[0].mxu0
    %v1778 = vadd.f32 0.0, %v1777
    %v1779 = vpop.f32.mrb[0].mxu0
    %1780 = vdwg.mxu0
    %v1782 = vsel %vm161, %v1778, 0
    %1784 = vmatprep.subr.mxu0 0.0
    %1785 = vmatpush1.msra.mxu0 %v156
    %1786 = vmatprep.subr.mxu0 0.0
    %1787 = vmatpush1.msra.mxu0 0.0
    %1788 = vmatprep.subr.mxu0 0.0
    %1789 = vmatpush1.msra.mxu0 0.0
    %1790 = vmatprep.subr.mxu0 0.0
    %1791 = vmatpush1.msra.mxu0 0.0
    %1792 = vmatprep.subr.mxu0 0.0
    %1793 = vmatpush1.msra.mxu0 0.0
    %1794 = vmatprep.subr.mxu0 0.0
    %1795 = vmatpush1.msra.mxu0 0.0
    %1796 = vmatprep.subr.mxu0 0.0
    %1797 = vmatpush1.msra.mxu0 0.0
    %1798 = vmatprep.subr.mxu0 0.0
    %1799 = vmatpush1.msra.mxu0 0.0
    %1800 = vmatprep.subr.mxu0 0.0
    %1801 = vmatpush1.msra.mxu0 0.0
    %1802 = vmatprep.subr.mxu0 0.0
    %1803 = vmatpush1.msra.mxu0 0.0
    %1804 = vmatprep.subr.mxu0 0.0
    %1805 = vmatpush1.msra.mxu0 0.0
    %1806 = vmatprep.subr.mxu0 0.0
    %1807 = vmatpush1.msra.mxu0 0.0
    %1808 = vmatprep.subr.mxu0 0.0
    %1809 = vmatpush1.msra.mxu0 0.0
    %1810 = vmatprep.subr.mxu0 0.0
    %1811 = vmatpush1.msra.mxu0 0.0
    %1812 = vmatprep.subr.mxu0 0.0
    %1813 = vmatpush1.msra.mxu0 0.0
    %1814 = vmatprep.subr.mxu0 0.0
    %1815 = vmatpush1.msra.mxu0 0.0
    %1816 = vmatprep.subr.mxu0 0.0
    %1817 = vmatpush1.msra.mxu0 0.0
    %1818 = vmatprep.subr.mxu0 0.0
    %1819 = vmatpush1.msra.mxu0 0.0
    %1820 = vmatprep.subr.mxu0 0.0
    %1821 = vmatpush1.msra.mxu0 0.0
    %1822 = vmatprep.subr.mxu0 0.0
    %1823 = vmatpush1.msra.mxu0 0.0
    %1824 = vmatprep.subr.mxu0 0.0
    %1825 = vmatpush1.msra.mxu0 0.0
    %1826 = vmatprep.subr.mxu0 0.0
    %1827 = vmatpush1.msra.mxu0 0.0
    %1828 = vmatprep.subr.mxu0 0.0
    %1829 = vmatpush1.msra.mxu0 0.0
    %1830 = vmatprep.subr.mxu0 0.0
    %1831 = vmatpush1.msra.mxu0 0.0
    %1832 = vmatprep.subr.mxu0 0.0
    %1833 = vmatpush1.msra.mxu0 0.0
    %1834 = vmatprep.subr.mxu0 0.0
    %1835 = vmatpush1.msra.mxu0 0.0
    %1836 = vmatprep.subr.mxu0 0.0
    %1837 = vmatpush1.msra.mxu0 0.0
    %1838 = vmatprep.subr.mxu0 0.0
    %1839 = vmatpush1.msra.mxu0 0.0
    %1840 = vmatprep.subr.mxu0 0.0
    %1841 = vmatpush1.msra.mxu0 0.0
    %1842 = vmatprep.subr.mxu0 0.0
    %1843 = vmatpush1.msra.mxu0 0.0
    %1844 = vmatprep.subr.mxu0 0.0
    %1845 = vmatpush1.msra.mxu0 0.0
    %1846 = vmatprep.subr.mxu0 0.0
    %1847 = vmatpush1.msra.mxu0 0.0
    %1848 = vmatprep.mubr.f32.mxu0 0.0
    %1849 = vmatmul.mubr.f32.gmra.mrb[0].mxu0 %v1782
    %v1850 = vpop.f32.mrb[0].mxu0
    %v1851 = vadd.f32 0.0, %v1850
    %v1852 = vpop.f32.mrb[0].mxu0
    %1853 = vdwg.mxu0
    %v1854 = vadd.f32 %v1611, %v1851
    %1855 = vrot.lane.b32.xlu0 %v151, 104
    %v1856 = vpop.permute.xlu0 %1855
    %1857 = vrot.lane.b32.xlu0 %v151, 72
    %v1858 = vpop.permute.xlu0 %1857
    %v1859 = vsel %vm161, %v1856, 0
    %v1861 = vsel %vm161, %v1858, 0
    %1863 = vmatprep.subr.mxu0 0.0
    %1864 = vmatpush1.xpose.msra.mxu0 %v1861
    %1865 = vmatprep.subr.mxu0 0.0
    %1866 = vmatpush1.xpose.msra.mxu0 0.0
    %1867 = vmatprep.subr.mxu0 0.0
    %1868 = vmatpush1.xpose.msra.mxu0 0.0
    %1869 = vmatprep.subr.mxu0 0.0
    %1870 = vmatpush1.xpose.msra.mxu0 0.0
    %1871 = vmatprep.subr.mxu0 0.0
    %1872 = vmatpush1.xpose.msra.mxu0 0.0
    %1873 = vmatprep.subr.mxu0 0.0
    %1874 = vmatpush1.xpose.msra.mxu0 0.0
    %1875 = vmatprep.subr.mxu0 0.0
    %1876 = vmatpush1.xpose.msra.mxu0 0.0
    %1877 = vmatprep.subr.mxu0 0.0
    %1878 = vmatpush1.xpose.msra.mxu0 0.0
    %1879 = vmatprep.subr.mxu0 0.0
    %1880 = vmatpush1.xpose.msra.mxu0 0.0
    %1881 = vmatprep.subr.mxu0 0.0
    %1882 = vmatpush1.xpose.msra.mxu0 0.0
    %1883 = vmatprep.subr.mxu0 0.0
    %1884 = vmatpush1.xpose.msra.mxu0 0.0
    %1885 = vmatprep.subr.mxu0 0.0
    %1886 = vmatpush1.xpose.msra.mxu0 0.0
    %1887 = vmatprep.subr.mxu0 0.0
    %1888 = vmatpush1.xpose.msra.mxu0 0.0
    %1889 = vmatprep.subr.mxu0 0.0
    %1890 = vmatpush1.xpose.msra.mxu0 0.0
    %1891 = vmatprep.subr.mxu0 0.0
    %1892 = vmatpush1.xpose.msra.mxu0 0.0
    %1893 = vmatprep.subr.mxu0 0.0
    %1894 = vmatpush1.xpose.msra.mxu0 0.0
    %1895 = vmatprep.subr.mxu0 0.0
    %1896 = vmatpush1.xpose.msra.mxu0 0.0
    %1897 = vmatprep.subr.mxu0 0.0
    %1898 = vmatpush1.xpose.msra.mxu0 0.0
    %1899 = vmatprep.subr.mxu0 0.0
    %1900 = vmatpush1.xpose.msra.mxu0 0.0
    %1901 = vmatprep.subr.mxu0 0.0
    %1902 = vmatpush1.xpose.msra.mxu0 0.0
    %1903 = vmatprep.subr.mxu0 0.0
    %1904 = vmatpush1.xpose.msra.mxu0 0.0
    %1905 = vmatprep.subr.mxu0 0.0
    %1906 = vmatpush1.xpose.msra.mxu0 0.0
    %1907 = vmatprep.subr.mxu0 0.0
    %1908 = vmatpush1.xpose.msra.mxu0 0.0
    %1909 = vmatprep.subr.mxu0 0.0
    %1910 = vmatpush1.xpose.msra.mxu0 0.0
    %1911 = vmatprep.subr.mxu0 0.0
    %1912 = vmatpush1.xpose.msra.mxu0 0.0
    %1913 = vmatprep.subr.mxu0 0.0
    %1914 = vmatpush1.xpose.msra.mxu0 0.0
    %1915 = vmatprep.subr.mxu0 0.0
    %1916 = vmatpush1.xpose.msra.mxu0 0.0
    %1917 = vmatprep.subr.mxu0 0.0
    %1918 = vmatpush1.xpose.msra.mxu0 0.0
    %1919 = vmatprep.subr.mxu0 0.0
    %1920 = vmatpush1.xpose.msra.mxu0 0.0
    %1921 = vmatprep.subr.mxu0 0.0
    %1922 = vmatpush1.xpose.msra.mxu0 0.0
    %1923 = vmatprep.subr.mxu0 0.0
    %1924 = vmatpush1.xpose.msra.mxu0 0.0
    %1925 = vmatprep.subr.mxu0 0.0
    %1926 = vmatpush1.xpose.msra.mxu0 0.0
    %1927 = vmatprep.mubr.f32.mxu0 0.0
    %1928 = vmatmul.mubr.f32.gmra.mrb[0].mxu0 %v1859
    %v1929 = vpop.f32.mrb[0].mxu0
    %v1930 = vadd.f32 0.0, %v1929
    %v1931 = vpop.f32.mrb[0].mxu0
    %1932 = vdwg.mxu0
    %v1933 = vmul.f32 %v1930, 0.35355338
    %v1934 = vadd.f32 %v1933, %v67
    %v1935 = vsel %vm161, %v1934, -inf
    %1936 = vmax.xlane.f32.xlu0 %v1935
    %v1937 = vpop.xlane.xlu0 %1936
    %v1938 = vsub.f32 %v1934, %v1937
    %v1939 = vmul.f32 %v1938, 1.442695
    %v1940 = vpow.pop %v1939
    %v1941 = vsel %vm161, %v1940, 0.0
    %1942 = vadd.xlane.f32.xlu0 %v1941
    %v1943 = vpop.xlane.xlu0 %1942
    %v1944 = vrcp.pop %v1943
    %v1945 = vmul.f32 %v1940, %v1944
    %1946 = vrot.lane.b32.xlu0 %v151, 40
    %v1947 = vpop.permute.xlu0 %1946
    %v1950 = vsel %vm161, %v1945, 0
    %1952 = vmatprep.subr.mxu0 0.0
    %1953 = vmatpush1.msra.mxu0 %v1947
    %1954 = vmatprep.subr.mxu0 0.0
    %1955 = vmatpush1.msra.mxu0 0.0
    %1956 = vmatprep.subr.mxu0 0.0
    %1957 = vmatpush1.msra.mxu0 0.0
    %1958 = vmatprep.subr.mxu0 0.0
    %1959 = vmatpush1.msra.mxu0 0.0
    %1960 = vmatprep.subr.mxu0 0.0
    %1961 = vmatpush1.msra.mxu0 0.0
    %1962 = vmatprep.subr.mxu0 0.0
    %1963 = vmatpush1.msra.mxu0 0.0
    %1964 = vmatprep.subr.mxu0 0.0
    %1965 = vmatpush1.msra.mxu0 0.0
    %1966 = vmatprep.subr.mxu0 0.0
    %1967 = vmatpush1.msra.mxu0 0.0
    %1968 = vmatprep.subr.mxu0 0.0
    %1969 = vmatpush1.msra.mxu0 0.0
    %1970 = vmatprep.subr.mxu0 0.0
    %1971 = vmatpush1.msra.mxu0 0.0
    %1972 = vmatprep.subr.mxu0 0.0
    %1973 = vmatpush1.msra.mxu0 0.0
    %1974 = vmatprep.subr.mxu0 0.0
    %1975 = vmatpush1.msra.mxu0 0.0
    %1976 = vmatprep.subr.mxu0 0.0
    %1977 = vmatpush1.msra.mxu0 0.0
    %1978 = vmatprep.subr.mxu0 0.0
    %1979 = vmatpush1.msra.mxu0 0.0
    %1980 = vmatprep.subr.mxu0 0.0
    %1981 = vmatpush1.msra.mxu0 0.0
    %1982 = vmatprep.subr.mxu0 0.0
    %1983 = vmatpush1.msra.mxu0 0.0
    %1984 = vmatprep.subr.mxu0 0.0
    %1985 = vmatpush1.msra.mxu0 0.0
    %1986 = vmatprep.subr.mxu0 0.0
    %1987 = vmatpush1.msra.mxu0 0.0
    %1988 = vmatprep.subr.mxu0 0.0
    %1989 = vmatpush1.msra.mxu0 0.0
    %1990 = vmatprep.subr.mxu0 0.0
    %1991 = vmatpush1.msra.mxu0 0.0
    %1992 = vmatprep.subr.mxu0 0.0
    %1993 = vmatpush1.msra.mxu0 0.0
    %1994 = vmatprep.subr.mxu0 0.0
    %1995 = vmatpush1.msra.mxu0 0.0
    %1996 = vmatprep.subr.mxu0 0.0
    %1997 = vmatpush1.msra.mxu0 0.0
    %1998 = vmatprep.subr.mxu0 0.0
    %1999 = vmatpush1.msra.mxu0 0.0
    %2000 = vmatprep.subr.mxu0 0.0
    %2001 = vmatpush1.msra.mxu0 0.0
    %2002 = vmatprep.subr.mxu0 0.0
    %2003 = vmatpush1.msra.mxu0 0.0
    %2004 = vmatprep.subr.mxu0 0.0
    %2005 = vmatpush1.msra.mxu0 0.0
    %2006 = vmatprep.subr.mxu0 0.0
    %2007 = vmatpush1.msra.mxu0 0.0
    %2008 = vmatprep.subr.mxu0 0.0
    %2009 = vmatpush1.msra.mxu0 0.0
    %2010 = vmatprep.subr.mxu0 0.0
    %2011 = vmatpush1.msra.mxu0 0.0
    %2012 = vmatprep.subr.mxu0 0.0
    %2013 = vmatpush1.msra.mxu0 0.0
    %2014 = vmatprep.subr.mxu0 0.0
    %2015 = vmatpush1.msra.mxu0 0.0
    %2016 = vmatprep.mubr.f32.mxu0 0.0
    %2017 = vmatmul.mubr.f32.gmra.mrb[0].mxu0 %v1950
    %v2018 = vpop.f32.mrb[0].mxu0
    %v2019 = vadd.f32 0.0, %v2018
    %v2020 = vpop.f32.mrb[0].mxu0
    %2021 = vdwg.mxu0
    %v2023 = vsel %vm161, %v2019, 0
    %2025 = vmatprep.subr.mxu0 0.0
    %2026 = vmatpush1.msra.mxu0 %v157
    %2027 = vmatprep.subr.mxu0 0.0
    %2028 = vmatpush1.msra.mxu0 0.0
    %2029 = vmatprep.subr.mxu0 0.0
    %2030 = vmatpush1.msra.mxu0 0.0
    %2031 = vmatprep.subr.mxu0 0.0
    %2032 = vmatpush1.msra.mxu0 0.0
    %2033 = vmatprep.subr.mxu0 0.0
    %2034 = vmatpush1.msra.mxu0 0.0
    %2035 = vmatprep.subr.mxu0 0.0
    %2036 = vmatpush1.msra.mxu0 0.0
    %2037 = vmatprep.subr.mxu0 0.0
    %2038 = vmatpush1.msra.mxu0 0.0
    %2039 = vmatprep.subr.mxu0 0.0
    %2040 = vmatpush1.msra.mxu0 0.0
    %2041 = vmatprep.subr.mxu0 0.0
    %2042 = vmatpush1.msra.mxu0 0.0
    %2043 = vmatprep.subr.mxu0 0.0
    %2044 = vmatpush1.msra.mxu0 0.0
    %2045 = vmatprep.subr.mxu0 0.0
    %2046 = vmatpush1.msra.mxu0 0.0
    %2047 = vmatprep.subr.mxu0 0.0
    %2048 = vmatpush1.msra.mxu0 0.0
    %2049 = vmatprep.subr.mxu0 0.0
    %2050 = vmatpush1.msra.mxu0 0.0
    %2051 = vmatprep.subr.mxu0 0.0
    %2052 = vmatpush1.msra.mxu0 0.0
    %2053 = vmatprep.subr.mxu0 0.0
    %2054 = vmatpush1.msra.mxu0 0.0
    %2055 = vmatprep.subr.mxu0 0.0
    %2056 = vmatpush1.msra.mxu0 0.0
    %2057 = vmatprep.subr.mxu0 0.0
    %2058 = vmatpush1.msra.mxu0 0.0
    %2059 = vmatprep.subr.mxu0 0.0
    %2060 = vmatpush1.msra.mxu0 0.0
    %2061 = vmatprep.subr.mxu0 0.0
    %2062 = vmatpush1.msra.mxu0 0.0
    %2063 = vmatprep.subr.mxu0 0.0
    %2064 = vmatpush1.msra.mxu0 0.0
    %2065 = vmatprep.subr.mxu0 0.0
    %2066 = vmatpush1.msra.mxu0 0.0
    %2067 = vmatprep.subr.mxu0 0.0
    %2068 = vmatpush1.msra.mxu0 0.0
    %2069 = vmatprep.subr.mxu0 0.0
    %2070 = vmatpush1.msra.mxu0 0.0
    %2071 = vmatprep.subr.mxu0 0.0
    %2072 = vmatpush1.msra.mxu0 0.0
    %2073 = vmatprep.subr.mxu0 0.0
    %2074 = vmatpush1.msra.mxu0 0.0
    %2075 = vmatprep.subr.mxu0 0.0
    %2076 = vmatpush1.msra.mxu0 0.0
    %2077 = vmatprep.subr.mxu0 0.0
    %2078 = vmatpush1.msra.mxu0 0.0
    %2079 = vmatprep.subr.mxu0 0.0
    %2080 = vmatpush1.msra.mxu0 0.0
    %2081 = vmatprep.subr.mxu0 0.0
    %2082 = vmatpush1.msra.mxu0 0.0
    %2083 = vmatprep.subr.mxu0 0.0
    %2084 = vmatpush1.msra.mxu0 0.0
    %2085 = vmatprep.subr.mxu0 0.0
    %2086 = vmatpush1.msra.mxu0 0.0
    %2087 = vmatprep.subr.mxu0 0.0
    %2088 = vmatpush1.msra.mxu0 0.0
    %2089 = vmatprep.mubr.f32.mxu0 0.0
    %2090 = vmatmul.mubr.f32.gmra.mrb[0].mxu0 %v2023
    %v2091 = vpop.f32.mrb[0].mxu0
    %v2092 = vadd.f32 0.0, %v2091
    %v2093 = vpop.f32.mrb[0].mxu0
    %2094 = vdwg.mxu0
    %v2095 = vadd.f32 %v1854, %v2092
    %2096 = vrot.lane.b32.xlu0 %v1391, 8
    %v2097 = vpop.permute.xlu0 %2096
    %2099 = vrot.lane.b32.xlu0 %v1704, 16
    %v2100 = vpop.permute.xlu0 %2099
    %2102 = vrot.lane.b32.xlu0 %v1945, 24
    %v2103 = vpop.permute.xlu0 %2102
    %v2105 = vsel %vm161, %v1224, %v2097
    %v2106 = vsel %vm1130, %v2105, %v2100
    %v2107 = vsel %vm1132, %v2106, %v2103
    %s2108 = scalar_lea.vmem [#allocation8], 8
    %2109 = vst.msk [vmem:[%s2108] sm:$0xff] %vm72, %v2107
    %v2110 = vld [vmem:[%s4] sm:$0x1]
    %v2111 = vld [vmem:[%s5] sm:$0x1]
    %v2112 = vadd.f32 %v1119, %v65
    %v2113 = vadd.f32 %v2095, %v66
    %v2114 = vsel %vm72, %v2112, 0.0
    %2115 = vadd.xlane.f32.xlu0 %v2114
    %v2116 = vpop.xlane.xlu0 %2115
    %v2117 = vsel %vm72, %v2113, 0.0
    %2118 = vadd.xlane.f32.xlu0 %v2117
    %v2119 = vpop.xlane.xlu0 %2118
    %v2120 = vrcp.pop 32.0
    %v2121 = vmul.f32 %v2116, %v2120
    %v2122 = vmul.f32 %v2119, %v2120
    %v2123 = vmul.f32 %v2112, %v2112
    %v2124 = vmul.f32 %v2113, %v2113
    %v2125 = vsel %vm72, %v2123, 0.0
    %2126 = vadd.xlane.f32.xlu0 %v2125
    %v2127 = vpop.xlane.xlu0 %2126
    %v2128 = vsel %vm72, %v2124, 0.0
    %2129 = vadd.xlane.f32.xlu0 %v2128
    %v2130 = vpop.xlane.xlu0 %2129
    %v2131 = vmul.f32 %v2127, %v2120
    %v2132 = vmul.f32 %v2130, %v2120
    %v2133 = vsub.f32 %v2112, %v2121
    %v2134 = vsub.f32 %v2113, %v2122
    %v2135 = vmul.f32 %v2121, %v2121
    %v2136 = vmul.f32 %v2122, %v2122
    %v2137 = vsub.f32 %v2131, %v2135
    %v2138 = vsub.f32 %v2132, %v2136
    %v2139 = vadd.f32 %v2137, 1e-05
    %v2140 = vadd.f32 %v2138, 1e-05
    %v2141 = vrsqrt.pop %v2139
    %v2142 = vrsqrt.pop %v2140
    %v2143 = vmul.f32 %v2133, %v2141
    %v2144 = vmul.f32 %v2134, %v2142
    %v2146 = vlaneseq
    %v2147 = vshrl.u32 %v2146, 7
    %v2148 = vsub.s32 0, %v2147
    %v2149 = vrot.slane %v2110, %v2148
    %v2151 = vmul.f32 %v2143, %v2149
    %v2152 = vmul.f32 %v2144, %v2149
    %v2154 = vlaneseq
    %v2155 = vshrl.u32 %v2154, 7
    %v2156 = vsub.s32 0, %v2155
    %v2157 = vrot.slane %v2111, %v2156
    %v2159 = vadd.f32 %v2151, %v2157
    %v2160 = vadd.f32 %v2152, %v2157
    %v2161 = vld [vmem:[%s6] sm:$0xff]
    %v2162 = vld [vmem:[%s6 + $0x8] sm:$0xff]
    %v2163 = vld [vmem:[%s6 + $0x10] sm:$0xff]
    %v2164 = vld [vmem:[%s6 + $0x18] sm:$0xff]
    %v2165 = vld [vmem:[%s7] sm:$0x1]
    %v2167 = vlaneseq
    %v2168 = vshrl.u32 %v2167, 7
    %v2169 = vsub.s32 0, %v2168
    %v2170 = vrot.slane %v2165, %v2169
    %v2173 = vsel %vm72, %v2159, 0
    %v2176 = vsel %vm72, %v2160, 0
    %2178 = vmatprep.subr.mxu0 0.0
    %2179 = vmatpush1.msra.mxu0 %v2161
    %2180 = vmatprep.subr.mxu0 0.0
    %2181 = vmatpush1.msra.mxu0 %v2162
    %2182 = vmatprep.subr.mxu0 0.0
    %2183 = vmatpush1.msra.mxu0 %v2163
    %2184 = vmatprep.subr.mxu0 0.0
    %2185 = vmatpush1.msra.mxu0 %v2164
    %2186 = vmatprep.subr.mxu0 0.0
    %2187 = vmatpush1.msra.mxu0 0.0
    %2188 = vmatprep.subr.mxu0 0.0
    %2189 = vmatpush1.msra.mxu0 0.0
    %2190 = vmatprep.subr.mxu0 0.0
    %2191 = vmatpush1.msra.mxu0 0.0
    %2192 = vmatprep.subr.mxu0 0.0
    %2193 = vmatpush1.msra.mxu0 0.0
    %2194 = vmatprep.subr.mxu0 0.0
    %2195 = vmatpush1.msra.mxu0 0.0
    %2196 = vmatprep.subr.mxu0 0.0
    %2197 = vmatpush1.msra.mxu0 0.0
    %2198 = vmatprep.subr.mxu0 0.0
    %2199 = vmatpush1.msra.mxu0 0.0
    %2200 = vmatprep.subr.mxu0 0.0
    %2201 = vmatpush1.msra.mxu0 0.0
    %2202 = vmatprep.subr.mxu0 0.0
    %2203 = vmatpush1.msra.mxu0 0.0
    %2204 = vmatprep.subr.mxu0 0.0
    %2205 = vmatpush1.msra.mxu0 0.0
    %2206 = vmatprep.subr.mxu0 0.0
    %2207 = vmatpush1.msra.mxu0 0.0
    %2208 = vmatprep.subr.mxu0 0.0
    %2209 = vmatpush1.msra.mxu0 0.0
    %2210 = vmatprep.subr.mxu0 0.0
    %2211 = vmatpush1.msra.mxu0 0.0
    %2212 = vmatprep.subr.mxu0 0.0
    %2213 = vmatpush1.msra.mxu0 0.0
    %2214 = vmatprep.subr.mxu0 0.0
    %2215 = vmatpush1.msra.mxu0 0.0
    %2216 = vmatprep.subr.mxu0 0.0
    %2217 = vmatpush1.msra.mxu0 0.0
    %2218 = vmatprep.subr.mxu0 0.0
    %2219 = vmatpush1.msra.mxu0 0.0
    %2220 = vmatprep.subr.mxu0 0.0
    %2221 = vmatpush1.msra.mxu0 0.0
    %2222 = vmatprep.subr.mxu0 0.0
    %2223 = vmatpush1.msra.mxu0 0.0
    %2224 = vmatprep.subr.mxu0 0.0
    %2225 = vmatpush1.msra.mxu0 0.0
    %2226 = vmatprep.subr.mxu0 0.0
    %2227 = vmatpush1.msra.mxu0 0.0
    %2228 = vmatprep.subr.mxu0 0.0
    %2229 = vmatpush1.msra.mxu0 0.0
    %2230 = vmatprep.subr.mxu0 0.0
    %2231 = vmatpush1.msra.mxu0 0.0
    %2232 = vmatprep.subr.mxu0 0.0
    %2233 = vmatpush1.msra.mxu0 0.0
    %2234 = vmatprep.subr.mxu0 0.0
    %2235 = vmatpush1.msra.mxu0 0.0
    %2236 = vmatprep.subr.mxu0 0.0
    %2237 = vmatpush1.msra.mxu0 0.0
    %2238 = vmatprep.subr.mxu0 0.0
    %2239 = vmatpush1.msra.mxu0 0.0
    %2240 = vmatprep.subr.mxu0 0.0
    %2241 = vmatpush1.msra.mxu0 0.0
    %2242 = vmatprep.mubr.f32.mxu0 0.0
    %2243 = vmatmul.mubr.f32.gmra.mrb[0].mxu0 %v2173
    %v2244 = vpop.f32.mrb[0].mxu0
    %v2245 = vadd.f32 %v2170, %v2244
    %v2246 = vpop.f32.mrb[0].mxu0
    %2247 = vmatprep.mubr.f32.mxu0 0.0
    %2248 = vmatmul.mubr.f32.gmra.mrb[0].mxu0 %v2176
    %v2249 = vpop.f32.mrb[0].mxu0
    %v2250 = vadd.f32 %v2170, %v2249
    %v2251 = vpop.f32.mrb[0].mxu0
    %2252 = vdwg.mxu0
    %v2253 = vmax.f32 %v2245, 0.0
    %v2254 = vmax.f32 %v2250, 0.0
    %v2255 = vld [vmem:[%s8] sm:$0xff]
    %v2256 = vld [vmem:[%s8 + $0x8] sm:$0xff]
    %v2257 = vld [vmem:[%s8 + $0x10] sm:$0xff]
    %v2258 = vld [vmem:[%s8 + $0x18] sm:$0xff]
    %v2259 = vld [vmem:[%s8 + $0x20] sm:$0xff]
    %v2260 = vld [vmem:[%s8 + $0x28] sm:$0xff]
    %v2261 = vld [vmem:[%s8 + $0x30] sm:$0xff]
    %v2262 = vld [vmem:[%s8 + $0x38] sm:$0xff]
    %v2263 = vld [vmem:[%s9] sm:$0x1]
    %v2265 = vlaneseq
    %v2266 = vshrl.u32 %v2265, 7
    %v2267 = vsub.s32 0, %v2266
    %v2268 = vrot.slane %v2263, %v2267
    %vm2270 = vcmask 523264
    %v2272 = vsel %vm2270, %v2253, 0
    %v2275 = vsel %vm2270, %v2254, 0
    %2277 = vmatprep.subr.mxu0 0.0
    %2278 = vmatpush1.msra.mxu0 %v2255
    %2279 = vmatprep.subr.mxu0 0.0
    %2280 = vmatpush1.msra.mxu0 %v2256
    %2281 = vmatprep.subr.mxu0 0.0
    %2282 = vmatpush1.msra.mxu0 %v2257
    %2283 = vmatprep.subr.mxu0 0.0
    %2284 = vmatpush1.msra.mxu0 %v2258
    %2285 = vmatprep.subr.mxu0 0.0
    %2286 = vmatpush1.msra.mxu0 %v2259
    %2287 = vmatprep.subr.mxu0 0.0
    %2288 = vmatpush1.msra.mxu0 %v2260
    %2289 = vmatprep.subr.mxu0 0.0
    %2290 = vmatpush1.msra.mxu0 %v2261
    %2291 = vmatprep.subr.mxu0 0.0
    %2292 = vmatpush1.msra.mxu0 %v2262
    %2293 = vmatprep.subr.mxu0 0.0
    %2294 = vmatpush1.msra.mxu0 0.0
    %2295 = vmatprep.subr.mxu0 0.0
    %2296 = vmatpush1.msra.mxu0 0.0
    %2297 = vmatprep.subr.mxu0 0.0
    %2298 = vmatpush1.msra.mxu0 0.0
    %2299 = vmatprep.subr.mxu0 0.0
    %2300 = vmatpush1.msra.mxu0 0.0
    %2301 = vmatprep.subr.mxu0 0.0
    %2302 = vmatpush1.msra.mxu0 0.0
    %2303 = vmatprep.subr.mxu0 0.0
    %2304 = vmatpush1.msra.mxu0 0.0
    %2305 = vmatprep.subr.mxu0 0.0
    %2306 = vmatpush1.msra.mxu0 0.0
    %2307 = vmatprep.subr.mxu0 0.0
    %2308 = vmatpush1.msra.mxu0 0.0
    %2309 = vmatprep.subr.mxu0 0.0
    %2310 = vmatpush1.msra.mxu0 0.0
    %2311 = vmatprep.subr.mxu0 0.0
    %2312 = vmatpush1.msra.mxu0 0.0
    %2313 = vmatprep.subr.mxu0 0.0
    %2314 = vmatpush1.msra.mxu0 0.0
    %2315 = vmatprep.subr.mxu0 0.0
    %2316 = vmatpush1.msra.mxu0 0.0
    %2317 = vmatprep.subr.mxu0 0.0
    %2318 = vmatpush1.msra.mxu0 0.0
    %2319 = vmatprep.subr.mxu0 0.0
    %2320 = vmatpush1.msra.mxu0 0.0
    %2321 = vmatprep.subr.mxu0 0.0
    %2322 = vmatpush1.msra.mxu0 0.0
    %2323 = vmatprep.subr.mxu0 0.0
    %2324 = vmatpush1.msra.mxu0 0.0
    %2325 = vmatprep.subr.mxu0 0.0
    %2326 = vmatpush1.msra.mxu0 0.0
    %2327 = vmatprep.subr.mxu0 0.0
    %2328 = vmatpush1.msra.mxu0 0.0
    %2329 = vmatprep.subr.mxu0 0.0
    %2330 = vmatpush1.msra.mxu0 0.0
    %2331 = vmatprep.subr.mxu0 0.0
    %2332 = vmatpush1.msra.mxu0 0.0
    %2333 = vmatprep.subr.mxu0 0.0
    %2334 = vmatpush1.msra.mxu0 0.0
    %2335 = vmatprep.subr.mxu0 0.0
    %2336 = vmatpush1.msra.mxu0 0.0
    %2337 = vmatprep.subr.mxu0 0.0
    %2338 = vmatpush1.msra.mxu0 0.0
    %2339 = vmatprep.subr.mxu0 0.0
    %2340 = vmatpush1.msra.mxu0 0.0
    %2341 = vmatprep.mubr.f32.mxu0 0.0
    %2342 = vmatmul.mubr.f32.gmra.mrb[0].mxu0 %v2272
    %v2343 = vpop.f32.mrb[0].mxu0
    %v2344 = vadd.f32 %v2268, %v2343
    %v2345 = vpop.f32.mrb[0].mxu0
    %2346 = vmatprep.mubr.f32.mxu0 0.0
    %2347 = vmatmul.mubr.f32.gmra.mrb[0].mxu0 %v2275
    %v2348 = vpop.f32.mrb[0].mxu0
    %v2349 = vadd.f32 %v2268, %v2348
    %v2350 = vpop.f32.mrb[0].mxu0
    %2351 = vdwg.mxu0
    %v2352 = vadd.f32 %v2344, %v2159
    %v2353 = vadd.f32 %v2349, %v2160
    %v2354 = vsel %vm72, %v2352, 0.0
    %2355 = vadd.xlane.f32.xlu0 %v2354
    %v2356 = vpop.xlane.xlu0 %2355
    %v2357 = vsel %vm72, %v2353, 0.0
    %2358 = vadd.xlane.f32.xlu0 %v2357
    %v2359 = vpop.xlane.xlu0 %2358
    %v2360 = vmul.f32 %v2356, %v2120
    %v2361 = vmul.f32 %v2359, %v2120
    %v2362 = vmul.f32 %v2352, %v2352
    %v2363 = vmul.f32 %v2353, %v2353
    %v2364 = vsel %vm72, %v2362, 0.0
    %2365 = vadd.xlane.f32.xlu0 %v2364
    %v2366 = vpop.xlane.xlu0 %2365
    %v2367 = vsel %vm72, %v2363, 0.0
    %2368 = vadd.xlane.f32.xlu0 %v2367
    %v2369 = vpop.xlane.xlu0 %2368
    %v2370 = vmul.f32 %v2366, %v2120
    %v2371 = vmul.f32 %v2369, %v2120
    %v2372 = vsub.f32 %v2352, %v2360
    %v2373 = vsub.f32 %v2353, %v2361
    %v2374 = vmul.f32 %v2360, %v2360
    %v2375 = vmul.f32 %v2361, %v2361
    %v2376 = vsub.f32 %v2370, %v2374
    %v2377 = vsub.f32 %v2371, %v2375
    %v2378 = vadd.f32 %v2376, 1e-05
    %v2379 = vadd.f32 %v2377, 1e-05
    %v2380 = vrsqrt.pop %v2378
    %v2381 = vrsqrt.pop %v2379
    %v2382 = vmul.f32 %v2372, %v2380
    %v2383 = vmul.f32 %v2373, %v2381
    %v2384 = vmul.f32 %v2382, %v2149
    %v2385 = vmul.f32 %v2383, %v2149
    %v2386 = vadd.f32 %v2384, %v2157
    %v2387 = vadd.f32 %v2385, %v2157
    %s2388 = scalar_lea.vmem %s2, 32
    %v2389 = vld [vmem:[%s2388] sm:$0xff]
    %v2390 = vld [vmem:[%s2388 + $0x8] sm:$0xff]
    %v2391 = vld [vmem:[%s2388 + $0x10] sm:$0xff]
    %v2392 = vld [vmem:[%s2388 + $0x18] sm:$0xff]
    %v2394 = vsel %vm72, %v2386, 0
    %v2397 = vsel %vm72, %v2387, 0
    %2399 = vmatprep.subr.mxu0 0.0
    %2400 = vmatpush1.msra.mxu0 %v2389
    %2401 = vmatprep.subr.mxu0 0.0
    %2402 = vmatpush1.msra.mxu0 %v2390
    %2403 = vmatprep.subr.mxu0 0.0
    %2404 = vmatpush1.msra.mxu0 %v2391
    %2405 = vmatprep.subr.mxu0 0.0
    %2406 = vmatpush1.msra.mxu0 %v2392
    %2407 = vmatprep.subr.mxu0 0.0
    %2408 = vmatpush1.msra.mxu0 0.0
    %2409 = vmatprep.subr.mxu0 0.0
    %2410 = vmatpush1.msra.mxu0 0.0
    %2411 = vmatprep.subr.mxu0 0.0
    %2412 = vmatpush1.msra.mxu0 0.0
    %2413 = vmatprep.subr.mxu0 0.0
    %2414 = vmatpush1.msra.mxu0 0.0
    %2415 = vmatprep.subr.mxu0 0.0
    %2416 = vmatpush1.msra.mxu0 0.0
    %2417 = vmatprep.subr.mxu0 0.0
    %2418 = vmatpush1.msra.mxu0 0.0
    %2419 = vmatprep.subr.mxu0 0.0
    %2420 = vmatpush1.msra.mxu0 0.0
    %2421 = vmatprep.subr.mxu0 0.0
    %2422 = vmatpush1.msra.mxu0 0.0
    %2423 = vmatprep.subr.mxu0 0.0
    %2424 = vmatpush1.msra.mxu0 0.0
    %2425 = vmatprep.subr.mxu0 0.0
    %2426 = vmatpush1.msra.mxu0 0.0
    %2427 = vmatprep.subr.mxu0 0.0
    %2428 = vmatpush1.msra.mxu0 0.0
    %2429 = vmatprep.subr.mxu0 0.0
    %2430 = vmatpush1.msra.mxu0 0.0
    %2431 = vmatprep.subr.mxu0 0.0
    %2432 = vmatpush1.msra.mxu0 0.0
    %2433 = vmatprep.subr.mxu0 0.0
    %2434 = vmatpush1.msra.mxu0 0.0
    %2435 = vmatprep.subr.mxu0 0.0
    %2436 = vmatpush1.msra.mxu0 0.0
    %2437 = vmatprep.subr.mxu0 0.0
    %2438 = vmatpush1.msra.mxu0 0.0
    %2439 = vmatprep.subr.mxu0 0.0
    %2440 = vmatpush1.msra.mxu0 0.0
    %2441 = vmatprep.subr.mxu0 0.0
    %2442 = vmatpush1.msra.mxu0 0.0
    %2443 = vmatprep.subr.mxu0 0.0
    %2444 = vmatpush1.msra.mxu0 0.0
    %2445 = vmatprep.subr.mxu0 0.0
    %2446 = vmatpush1.msra.mxu0 0.0
    %2447 = vmatprep.subr.mxu0 0.0
    %2448 = vmatpush1.msra.mxu0 0.0
    %2449 = vmatprep.subr.mxu0 0.0
    %2450 = vmatpush1.msra.mxu0 0.0
    %2451 = vmatprep.subr.mxu0 0.0
    %2452 = vmatpush1.msra.mxu0 0.0
    %2453 = vmatprep.subr.mxu0 0.0
    %2454 = vmatpush1.msra.mxu0 0.0
    %2455 = vmatprep.subr.mxu0 0.0
    %2456 = vmatpush1.msra.mxu0 0.0
    %2457 = vmatprep.subr.mxu0 0.0
    %2458 = vmatpush1.msra.mxu0 0.0
    %2459 = vmatprep.subr.mxu0 0.0
    %2460 = vmatpush1.msra.mxu0 0.0
    %2461 = vmatprep.subr.mxu0 0.0
    %2462 = vmatpush1.msra.mxu0 0.0
    %2463 = vmatprep.mubr.f32.mxu0 0.0
    %2464 = vmatmul.mubr.f32.gmra.mrb[0].mxu0 %v2394
    %v2465 = vpop.f32.mrb[0].mxu0
    %v2466 = vadd.f32 0.0, %v2465
    %v2467 = vpop.f32.mrb[0].mxu0
    %2468 = vmatprep.mubr.f32.mxu0 0.0
    %2469 = vmatmul.mubr.f32.gmra.mrb[0].mxu0 %v2397
    %v2470 = vpop.f32.mrb[0].mxu0
    %v2471 = vadd.f32 0.0, %v2470
    %v2472 = vpop.f32.mrb[0].mxu0
    %2473 = vdwg.mxu0
    %s2474 = scalar_lea.vmem %s3, 32
    %v2475 = vld [vmem:[%s2474] sm:$0xff]
    %v2476 = vld [vmem:[%s2474 + $0x8] sm:$0xff]
    %v2477 = vld [vmem:[%s2474 + $0x10] sm:$0xff]
    %v2478 = vld [vmem:[%s2474 + $0x18] sm:$0xff]
    %2480 = vrot.lane.b32.xlu0 %v2466, 96
    %v2481 = vpop.permute.xlu0 %2480
    %v2482 = vsel %vm161, %v2466, 0
    %v2484 = vsel %vm161, %v2481, 0
    %2486 = vmatprep.subr.mxu0 0.0
    %2487 = vmatpush1.xpose.msra.mxu0 %v2484
    %2488 = vmatprep.subr.mxu0 0.0
    %2489 = vmatpush1.xpose.msra.mxu0 0.0
    %2490 = vmatprep.subr.mxu0 0.0
    %2491 = vmatpush1.xpose.msra.mxu0 0.0
    %2492 = vmatprep.subr.mxu0 0.0
    %2493 = vmatpush1.xpose.msra.mxu0 0.0
    %2494 = vmatprep.subr.mxu0 0.0
    %2495 = vmatpush1.xpose.msra.mxu0 0.0
    %2496 = vmatprep.subr.mxu0 0.0
    %2497 = vmatpush1.xpose.msra.mxu0 0.0
    %2498 = vmatprep.subr.mxu0 0.0
    %2499 = vmatpush1.xpose.msra.mxu0 0.0
    %2500 = vmatprep.subr.mxu0 0.0
    %2501 = vmatpush1.xpose.msra.mxu0 0.0
    %2502 = vmatprep.subr.mxu0 0.0
    %2503 = vmatpush1.xpose.msra.mxu0 0.0
    %2504 = vmatprep.subr.mxu0 0.0
    %2505 = vmatpush1.xpose.msra.mxu0 0.0
    %2506 = vmatprep.subr.mxu0 0.0
    %2507 = vmatpush1.xpose.msra.mxu0 0.0
    %2508 = vmatprep.subr.mxu0 0.0
    %2509 = vmatpush1.xpose.msra.mxu0 0.0
    %2510 = vmatprep.subr.mxu0 0.0
    %2511 = vmatpush1.xpose.msra.mxu0 0.0
    %2512 = vmatprep.subr.mxu0 0.0
    %2513 = vmatpush1.xpose.msra.mxu0 0.0
    %2514 = vmatprep.subr.mxu0 0.0
    %2515 = vmatpush1.xpose.msra.mxu0 0.0
    %2516 = vmatprep.subr.mxu0 0.0
    %2517 = vmatpush1.xpose.msra.mxu0 0.0
    %2518 = vmatprep.subr.mxu0 0.0
    %2519 = vmatpush1.xpose.msra.mxu0 0.0
    %2520 = vmatprep.subr.mxu0 0.0
    %2521 = vmatpush1.xpose.msra.mxu0 0.0
    %2522 = vmatprep.subr.mxu0 0.0
    %2523 = vmatpush1.xpose.msra.mxu0 0.0
    %2524 = vmatprep.subr.mxu0 0.0
    %2525 = vmatpush1.xpose.msra.mxu0 0.0
    %2526 = vmatprep.subr.mxu0 0.0
    %2527 = vmatpush1.xpose.msra.mxu0 0.0
    %2528 = vmatprep.subr.mxu0 0.0
    %2529 = vmatpush1.xpose.msra.mxu0 0.0
    %2530 = vmatprep.subr.mxu0 0.0
    %2531 = vmatpush1.xpose.msra.mxu0 0.0
    %2532 = vmatprep.subr.mxu0 0.0
    %2533 = vmatpush1.xpose.msra.mxu0 0.0
    %2534 = vmatprep.subr.mxu0 0.0
    %2535 = vmatpush1.xpose.msra.mxu0 0.0
    %2536 = vmatprep.subr.mxu0 0.0
    %2537 = vmatpush1.xpose.msra.mxu0 0.0
    %2538 = vmatprep.subr.mxu0 0.0
    %2539 = vmatpush1.xpose.msra.mxu0 0.0
    %2540 = vmatprep.subr.mxu0 0.0
    %2541 = vmatpush1.xpose.msra.mxu0 0.0
    %2542 = vmatprep.subr.mxu0 0.0
    %2543 = vmatpush1.xpose.msra.mxu0 0.0
    %2544 = vmatprep.subr.mxu0 0.0
    %2545 = vmatpush1.xpose.msra.mxu0 0.0
    %2546 = vmatprep.subr.mxu0 0.0
    %2547 = vmatpush1.xpose.msra.mxu0 0.0
    %2548 = vmatprep.subr.mxu0 0.0
    %2549 = vmatpush1.xpose.msra.mxu0 0.0
    %2550 = vmatprep.mubr.f32.mxu0 0.0
    %2551 = vmatmul.mubr.f32.gmra.mrb[0].mxu0 %v2482
    %v2552 = vpop.f32.mrb[0].mxu0
    %v2553 = vadd.f32 0.0, %v2552
    %v2554 = vpop.f32.mrb[0].mxu0
    %2555 = vdwg.mxu0
    %v2556 = vmul.f32 %v2553, 0.35355338
    %v2557 = vadd.f32 %v2556, %v67
    %v2558 = vsel %vm161, %v2557, -inf
    %2559 = vmax.xlane.f32.xlu0 %v2558
    %v2560 = vpop.xlane.xlu0 %2559
    %v2561 = vsub.f32 %v2557, %v2560
    %v2562 = vmul.f32 %v2561, 1.442695
    %v2563 = vpow.pop %v2562
    %v2564 = vsel %vm161, %v2563, 0.0
    %2565 = vadd.xlane.f32.xlu0 %v2564
    %v2566 = vpop.xlane.xlu0 %2565
    %v2567 = vrcp.pop %v2566
    %v2568 = vmul.f32 %v2563, %v2567
    %2569 = vrot.lane.b32.xlu0 %v2466, 64
    %v2570 = vpop.permute.xlu0 %2569
    %v2573 = vsel %vm161, %v2568, 0
    %2575 = vmatprep.subr.mxu0 0.0
    %2576 = vmatpush1.msra.mxu0 %v2570
    %2577 = vmatprep.subr.mxu0 0.0
    %2578 = vmatpush1.msra.mxu0 0.0
    %2579 = vmatprep.subr.mxu0 0.0
    %2580 = vmatpush1.msra.mxu0 0.0
    %2581 = vmatprep.subr.mxu0 0.0
    %2582 = vmatpush1.msra.mxu0 0.0
    %2583 = vmatprep.subr.mxu0 0.0
    %2584 = vmatpush1.msra.mxu0 0.0
    %2585 = vmatprep.subr.mxu0 0.0
    %2586 = vmatpush1.msra.mxu0 0.0
    %2587 = vmatprep.subr.mxu0 0.0
    %2588 = vmatpush1.msra.mxu0 0.0
    %2589 = vmatprep.subr.mxu0 0.0
    %2590 = vmatpush1.msra.mxu0 0.0
    %2591 = vmatprep.subr.mxu0 0.0
    %2592 = vmatpush1.msra.mxu0 0.0
    %2593 = vmatprep.subr.mxu0 0.0
    %2594 = vmatpush1.msra.mxu0 0.0
    %2595 = vmatprep.subr.mxu0 0.0
    %2596 = vmatpush1.msra.mxu0 0.0
    %2597 = vmatprep.subr.mxu0 0.0
    %2598 = vmatpush1.msra.mxu0 0.0
    %2599 = vmatprep.subr.mxu0 0.0
    %2600 = vmatpush1.msra.mxu0 0.0
    %2601 = vmatprep.subr.mxu0 0.0
    %2602 = vmatpush1.msra.mxu0 0.0
    %2603 = vmatprep.subr.mxu0 0.0
    %2604 = vmatpush1.msra.mxu0 0.0
    %2605 = vmatprep.subr.mxu0 0.0
    %2606 = vmatpush1.msra.mxu0 0.0
    %2607 = vmatprep.subr.mxu0 0.0
    %2608 = vmatpush1.msra.mxu0 0.0
    %2609 = vmatprep.subr.mxu0 0.0
    %2610 = vmatpush1.msra.mxu0 0.0
    %2611 = vmatprep.subr.mxu0 0.0
    %2612 = vmatpush1.msra.mxu0 0.0
    %2613 = vmatprep.subr.mxu0 0.0
    %2614 = vmatpush1.msra.mxu0 0.0
    %2615 = vmatprep.subr.mxu0 0.0
    %2616 = vmatpush1.msra.mxu0 0.0
    %2617 = vmatprep.subr.mxu0 0.0
    %2618 = vmatpush1.msra.mxu0 0.0
    %2619 = vmatprep.subr.mxu0 0.0
    %2620 = vmatpush1.msra.mxu0 0.0
    %2621 = vmatprep.subr.mxu0 0.0
    %2622 = vmatpush1.msra.mxu0 0.0
    %2623 = vmatprep.subr.mxu0 0.0
    %2624 = vmatpush1.msra.mxu0 0.0
    %2625 = vmatprep.subr.mxu0 0.0
    %2626 = vmatpush1.msra.mxu0 0.0
    %2627 = vmatprep.subr.mxu0 0.0
    %2628 = vmatpush1.msra.mxu0 0.0
    %2629 = vmatprep.subr.mxu0 0.0
    %2630 = vmatpush1.msra.mxu0 0.0
    %2631 = vmatprep.subr.mxu0 0.0
    %2632 = vmatpush1.msra.mxu0 0.0
    %2633 = vmatprep.subr.mxu0 0.0
    %2634 = vmatpush1.msra.mxu0 0.0
    %2635 = vmatprep.subr.mxu0 0.0
    %2636 = vmatpush1.msra.mxu0 0.0
    %2637 = vmatprep.subr.mxu0 0.0
    %2638 = vmatpush1.msra.mxu0 0.0
    %2639 = vmatprep.mubr.f32.mxu0 0.0
    %2640 = vmatmul.mubr.f32.gmra.mrb[0].mxu0 %v2573
    %v2641 = vpop.f32.mrb[0].mxu0
    %v2642 = vadd.f32 0.0, %v2641
    %v2643 = vpop.f32.mrb[0].mxu0
    %2644 = vdwg.mxu0
    %2645 = vrot.lane.b32.xlu0 %v2466, 120
    %v2646 = vpop.permute.xlu0 %2645
    %2647 = vrot.lane.b32.xlu0 %v2466, 88
    %v2648 = vpop.permute.xlu0 %2647
    %v2649 = vsel %vm161, %v2646, 0
    %v2651 = vsel %vm161, %v2648, 0
    %2653 = vmatprep.subr.mxu0 0.0
    %2654 = vmatpush1.xpose.msra.mxu0 %v2651
    %2655 = vmatprep.subr.mxu0 0.0
    %2656 = vmatpush1.xpose.msra.mxu0 0.0
    %2657 = vmatprep.subr.mxu0 0.0
    %2658 = vmatpush1.xpose.msra.mxu0 0.0
    %2659 = vmatprep.subr.mxu0 0.0
    %2660 = vmatpush1.xpose.msra.mxu0 0.0
    %2661 = vmatprep.subr.mxu0 0.0
    %2662 = vmatpush1.xpose.msra.mxu0 0.0
    %2663 = vmatprep.subr.mxu0 0.0
    %2664 = vmatpush1.xpose.msra.mxu0 0.0
    %2665 = vmatprep.subr.mxu0 0.0
    %2666 = vmatpush1.xpose.msra.mxu0 0.0
    %2667 = vmatprep.subr.mxu0 0.0
    %2668 = vmatpush1.xpose.msra.mxu0 0.0
    %2669 = vmatprep.subr.mxu0 0.0
    %2670 = vmatpush1.xpose.msra.mxu0 0.0
    %2671 = vmatprep.subr.mxu0 0.0
    %2672 = vmatpush1.xpose.msra.mxu0 0.0
    %2673 = vmatprep.subr.mxu0 0.0
    %2674 = vmatpush1.xpose.msra.mxu0 0.0
    %2675 = vmatprep.subr.mxu0 0.0
    %2676 = vmatpush1.xpose.msra.mxu0 0.0
    %2677 = vmatprep.subr.mxu0 0.0
    %2678 = vmatpush1.xpose.msra.mxu0 0.0
    %2679 = vmatprep.subr.mxu0 0.0
    %2680 = vmatpush1.xpose.msra.mxu0 0.0
    %2681 = vmatprep.subr.mxu0 0.0
    %2682 = vmatpush1.xpose.msra.mxu0 0.0
    %2683 = vmatprep.subr.mxu0 0.0
    %2684 = vmatpush1.xpose.msra.mxu0 0.0
    %2685 = vmatprep.subr.mxu0 0.0
    %2686 = vmatpush1.xpose.msra.mxu0 0.0
    %2687 = vmatprep.subr.mxu0 0.0
    %2688 = vmatpush1.xpose.msra.mxu0 0.0
    %2689 = vmatprep.subr.mxu0 0.0
    %2690 = vmatpush1.xpose.msra.mxu0 0.0
    %2691 = vmatprep.subr.mxu0 0.0
    %2692 = vmatpush1.xpose.msra.mxu0 0.0
    %2693 = vmatprep.subr.mxu0 0.0
    %2694 = vmatpush1.xpose.msra.mxu0 0.0
    %2695 = vmatprep.subr.mxu0 0.0
    %2696 = vmatpush1.xpose.msra.mxu0 0.0
    %2697 = vmatprep.subr.mxu0 0.0
    %2698 = vmatpush1.xpose.msra.mxu0 0.0
    %2699 = vmatprep.subr.mxu0 0.0
    %2700 = vmatpush1.xpose.msra.mxu0 0.0
    %2701 = vmatprep.subr.mxu0 0.0
    %2702 = vmatpush1.xpose.msra.mxu0 0.0
    %2703 = vmatprep.subr.mxu0 0.0
    %2704 = vmatpush1.xpose.msra.mxu0 0.0
    %2705 = vmatprep.subr.mxu0 0.0
    %2706 = vmatpush1.xpose.msra.mxu0 0.0
    %2707 = vmatprep.subr.mxu0 0.0
    %2708 = vmatpush1.xpose.msra.mxu0 0.0
    %2709 = vmatprep.subr.mxu0 0.0
    %2710 = vmatpush1.xpose.msra.mxu0 0.0
    %2711 = vmatprep.subr.mxu0 0.0
    %2712 = vmatpush1.xpose.msra.mxu0 0.0
    %2713 = vmatprep.subr.mxu0 0.0
    %2714 = vmatpush1.xpose.msra.mxu0 0.0
    %2715 = vmatprep.subr.mxu0 0.0
    %2716 = vmatpush1.xpose.msra.mxu0 0.0
    %2717 = vmatprep.mubr.f32.mxu0 0.0
    %2718 = vmatmul.mubr.f32.gmra.mrb[0].mxu0 %v2649
    %v2719 = vpop.f32.mrb[0].mxu0
    %v2720 = vadd.f32 0.0, %v2719
    %v2721 = vpop.f32.mrb[0].mxu0
    %2722 = vdwg.mxu0
    %v2723 = vmul.f32 %v2720, 0.35355338
    %v2724 = vadd.f32 %v2723, %v67
    %v2725 = vsel %vm161, %v2724, -inf
    %2726 = vmax.xlane.f32.xlu0 %v2725
    %v2727 = vpop.xlane.xlu0 %2726
    %v2728 = vsub.f32 %v2724, %v2727
    %v2729 = vmul.f32 %v2728, 1.442695
    %v2730 = vpow.pop %v2729
    %v2731 = vsel %vm161, %v2730, 0.0
    %2732 = vadd.xlane.f32.xlu0 %v2731
    %v2733 = vpop.xlane.xlu0 %2732
    %v2734 = vrcp.pop %v2733
    %v2735 = vmul.f32 %v2730, %v2734
    %2736 = vrot.lane.b32.xlu0 %v2466, 56
    %v2737 = vpop.permute.xlu0 %2736
    %v2740 = vsel %vm161, %v2735, 0
    %2742 = vmatprep.subr.mxu0 0.0
    %2743 = vmatpush1.msra.mxu0 %v2737
    %2744 = vmatprep.subr.mxu0 0.0
    %2745 = vmatpush1.msra.mxu0 0.0
    %2746 = vmatprep.subr.mxu0 0.0
    %2747 = vmatpush1.msra.mxu0 0.0
    %2748 = vmatprep.subr.mxu0 0.0
    %2749 = vmatpush1.msra.mxu0 0.0
    %2750 = vmatprep.subr.mxu0 0.0
    %2751 = vmatpush1.msra.mxu0 0.0
    %2752 = vmatprep.subr.mxu0 0.0
    %2753 = vmatpush1.msra.mxu0 0.0
    %2754 = vmatprep.subr.mxu0 0.0
    %2755 = vmatpush1.msra.mxu0 0.0
    %2756 = vmatprep.subr.mxu0 0.0
    %2757 = vmatpush1.msra.mxu0 0.0
    %2758 = vmatprep.subr.mxu0 0.0
    %2759 = vmatpush1.msra.mxu0 0.0
    %2760 = vmatprep.subr.mxu0 0.0
    %2761 = vmatpush1.msra.mxu0 0.0
    %2762 = vmatprep.subr.mxu0 0.0
    %2763 = vmatpush1.msra.mxu0 0.0
    %2764 = vmatprep.subr.mxu0 0.0
    %2765 = vmatpush1.msra.mxu0 0.0
    %2766 = vmatprep.subr.mxu0 0.0
    %2767 = vmatpush1.msra.mxu0 0.0
    %2768 = vmatprep.subr.mxu0 0.0
    %2769 = vmatpush1.msra.mxu0 0.0
    %2770 = vmatprep.subr.mxu0 0.0
    %2771 = vmatpush1.msra.mxu0 0.0
    %2772 = vmatprep.subr.mxu0 0.0
    %2773 = vmatpush1.msra.mxu0 0.0
    %2774 = vmatprep.subr.mxu0 0.0
    %2775 = vmatpush1.msra.mxu0 0.0
    %2776 = vmatprep.subr.mxu0 0.0
    %2777 = vmatpush1.msra.mxu0 0.0
    %2778 = vmatprep.subr.mxu0 0.0
    %2779 = vmatpush1.msra.mxu0 0.0
    %2780 = vmatprep.subr.mxu0 0.0
    %2781 = vmatpush1.msra.mxu0 0.0
    %2782 = vmatprep.subr.mxu0 0.0
    %2783 = vmatpush1.msra.mxu0 0.0
    %2784 = vmatprep.subr.mxu0 0.0
    %2785 = vmatpush1.msra.mxu0 0.0
    %2786 = vmatprep.subr.mxu0 0.0
    %2787 = vmatpush1.msra.mxu0 0.0
    %2788 = vmatprep.subr.mxu0 0.0
    %2789 = vmatpush1.msra.mxu0 0.0
    %2790 = vmatprep.subr.mxu0 0.0
    %2791 = vmatpush1.msra.mxu0 0.0
    %2792 = vmatprep.subr.mxu0 0.0
    %2793 = vmatpush1.msra.mxu0 0.0
    %2794 = vmatprep.subr.mxu0 0.0
    %2795 = vmatpush1.msra.mxu0 0.0
    %2796 = vmatprep.subr.mxu0 0.0
    %2797 = vmatpush1.msra.mxu0 0.0
    %2798 = vmatprep.subr.mxu0 0.0
    %2799 = vmatpush1.msra.mxu0 0.0
    %2800 = vmatprep.subr.mxu0 0.0
    %2801 = vmatpush1.msra.mxu0 0.0
    %2802 = vmatprep.subr.mxu0 0.0
    %2803 = vmatpush1.msra.mxu0 0.0
    %2804 = vmatprep.subr.mxu0 0.0
    %2805 = vmatpush1.msra.mxu0 0.0
    %2806 = vmatprep.mubr.f32.mxu0 0.0
    %2807 = vmatmul.mubr.f32.gmra.mrb[0].mxu0 %v2740
    %v2808 = vpop.f32.mrb[0].mxu0
    %v2809 = vadd.f32 0.0, %v2808
    %v2810 = vpop.f32.mrb[0].mxu0
    %2811 = vdwg.mxu0
    %v2813 = vsel %vm161, %v2809, 0
    %2815 = vmatprep.subr.mxu0 0.0
    %2816 = vmatpush1.msra.mxu0 %v2476
    %2817 = vmatprep.subr.mxu0 0.0
    %2818 = vmatpush1.msra.mxu0 0.0
    %2819 = vmatprep.subr.mxu0 0.0
    %2820 = vmatpush1.msra.mxu0 0.0
    %2821 = vmatprep.subr.mxu0 0.0
    %2822 = vmatpush1.msra.mxu0 0.0
    %2823 = vmatprep.subr.mxu0 0.0
    %2824 = vmatpush1.msra.mxu0 0.0
    %2825 = vmatprep.subr.mxu0 0.0
    %2826 = vmatpush1.msra.mxu0 0.0
    %2827 = vmatprep.subr.mxu0 0.0
    %2828 = vmatpush1.msra.mxu0 0.0
    %2829 = vmatprep.subr.mxu0 0.0
    %2830 = vmatpush1.msra.mxu0 0.0
    %2831 = vmatprep.subr.mxu0 0.0
    %2832 = vmatpush1.msra.mxu0 0.0
    %2833 = vmatprep.subr.mxu0 0.0
    %2834 = vmatpush1.msra.mxu0 0.0
    %2835 = vmatprep.subr.mxu0 0.0
    %2836 = vmatpush1.msra.mxu0 0.0
    %2837 = vmatprep.subr.mxu0 0.0
    %2838 = vmatpush1.msra.mxu0 0.0
    %2839 = vmatprep.subr.mxu0 0.0
    %2840 = vmatpush1.msra.mxu0 0.0
    %2841 = vmatprep.subr.mxu0 0.0
    %2842 = vmatpush1.msra.mxu0 0.0
    %2843 = vmatprep.subr.mxu0 0.0
    %2844 = vmatpush1.msra.mxu0 0.0
    %2845 = vmatprep.subr.mxu0 0.0
    %2846 = vmatpush1.msra.mxu0 0.0
    %2847 = vmatprep.subr.mxu0 0.0
    %2848 = vmatpush1.msra.mxu0 0.0
    %2849 = vmatprep.subr.mxu0 0.0
    %2850 = vmatpush1.msra.mxu0 0.0
    %2851 = vmatprep.subr.mxu0 0.0
    %2852 = vmatpush1.msra.mxu0 0.0
    %2853 = vmatprep.subr.mxu0 0.0
    %2854 = vmatpush1.msra.mxu0 0.0
    %2855 = vmatprep.subr.mxu0 0.0
    %2856 = vmatpush1.msra.mxu0 0.0
    %2857 = vmatprep.subr.mxu0 0.0
    %2858 = vmatpush1.msra.mxu0 0.0
    %2859 = vmatprep.subr.mxu0 0.0
    %2860 = vmatpush1.msra.mxu0 0.0
    %2861 = vmatprep.subr.mxu0 0.0
    %2862 = vmatpush1.msra.mxu0 0.0
    %2863 = vmatprep.subr.mxu0 0.0
    %2864 = vmatpush1.msra.mxu0 0.0
    %2865 = vmatprep.subr.mxu0 0.0
    %2866 = vmatpush1.msra.mxu0 0.0
    %2867 = vmatprep.subr.mxu0 0.0
    %2868 = vmatpush1.msra.mxu0 0.0
    %2869 = vmatprep.subr.mxu0 0.0
    %2870 = vmatpush1.msra.mxu0 0.0
    %2871 = vmatprep.subr.mxu0 0.0
    %2872 = vmatpush1.msra.mxu0 0.0
    %2873 = vmatprep.subr.mxu0 0.0
    %2874 = vmatpush1.msra.mxu0 0.0
    %2875 = vmatprep.subr.mxu0 0.0
    %2876 = vmatpush1.msra.mxu0 0.0
    %2877 = vmatprep.subr.mxu0 0.0
    %2878 = vmatpush1.msra.mxu0 0.0
    %2879 = vmatprep.mubr.f32.mxu0 0.0
    %2880 = vmatmul.mubr.f32.gmra.mrb[0].mxu0 %v2813
    %v2881 = vpop.f32.mrb[0].mxu0
    %v2882 = vadd.f32 0.0, %v2881
    %v2883 = vpop.f32.mrb[0].mxu0
    %2884 = vdwg.mxu0
    %v2886 = vsel %vm161, %v2642, 0
    %2888 = vmatprep.subr.mxu0 0.0
    %2889 = vmatpush1.msra.mxu0 %v2475
    %2890 = vmatprep.subr.mxu0 0.0
    %2891 = vmatpush1.msra.mxu0 0.0
    %2892 = vmatprep.subr.mxu0 0.0
    %2893 = vmatpush1.msra.mxu0 0.0
    %2894 = vmatprep.subr.mxu0 0.0
    %2895 = vmatpush1.msra.mxu0 0.0
    %2896 = vmatprep.subr.mxu0 0.0
    %2897 = vmatpush1.msra.mxu0 0.0
    %2898 = vmatprep.subr.mxu0 0.0
    %2899 = vmatpush1.msra.mxu0 0.0
    %2900 = vmatprep.subr.mxu0 0.0
    %2901 = vmatpush1.msra.mxu0 0.0
    %2902 = vmatprep.subr.mxu0 0.0
    %2903 = vmatpush1.msra.mxu0 0.0
    %2904 = vmatprep.subr.mxu0 0.0
    %2905 = vmatpush1.msra.mxu0 0.0
    %2906 = vmatprep.subr.mxu0 0.0
    %2907 = vmatpush1.msra.mxu0 0.0
    %2908 = vmatprep.subr.mxu0 0.0
    %2909 = vmatpush1.msra.mxu0 0.0
    %2910 = vmatprep.subr.mxu0 0.0
    %2911 = vmatpush1.msra.mxu0 0.0
    %2912 = vmatprep.subr.mxu0 0.0
    %2913 = vmatpush1.msra.mxu0 0.0
    %2914 = vmatprep.subr.mxu0 0.0
    %2915 = vmatpush1.msra.mxu0 0.0
    %2916 = vmatprep.subr.mxu0 0.0
    %2917 = vmatpush1.msra.mxu0 0.0
    %2918 = vmatprep.subr.mxu0 0.0
    %2919 = vmatpush1.msra.mxu0 0.0
    %2920 = vmatprep.subr.mxu0 0.0
    %2921 = vmatpush1.msra.mxu0 0.0
    %2922 = vmatprep.subr.mxu0 0.0
    %2923 = vmatpush1.msra.mxu0 0.0
    %2924 = vmatprep.subr.mxu0 0.0
    %2925 = vmatpush1.msra.mxu0 0.0
    %2926 = vmatprep.subr.mxu0 0.0
    %2927 = vmatpush1.msra.mxu0 0.0
    %2928 = vmatprep.subr.mxu0 0.0
    %2929 = vmatpush1.msra.mxu0 0.0
    %2930 = vmatprep.subr.mxu0 0.0
    %2931 = vmatpush1.msra.mxu0 0.0
    %2932 = vmatprep.subr.mxu0 0.0
    %2933 = vmatpush1.msra.mxu0 0.0
    %2934 = vmatprep.subr.mxu0 0.0
    %2935 = vmatpush1.msra.mxu0 0.0
    %2936 = vmatprep.subr.mxu0 0.0
    %2937 = vmatpush1.msra.mxu0 0.0
    %2938 = vmatprep.subr.mxu0 0.0
    %2939 = vmatpush1.msra.mxu0 0.0
    %2940 = vmatprep.subr.mxu0 0.0
    %2941 = vmatpush1.msra.mxu0 0.0
    %2942 = vmatprep.subr.mxu0 0.0
    %2943 = vmatpush1.msra.mxu0 0.0
    %2944 = vmatprep.subr.mxu0 0.0
    %2945 = vmatpush1.msra.mxu0 0.0
    %2946 = vmatprep.subr.mxu0 0.0
    %2947 = vmatpush1.msra.mxu0 0.0
    %2948 = vmatprep.subr.mxu0 0.0
    %2949 = vmatpush1.msra.mxu0 0.0
    %2950 = vmatprep.subr.mxu0 0.0
    %2951 = vmatpush1.msra.mxu0 0.0
    %2952 = vmatprep.mubr.f32.mxu0 0.0
    %2953 = vmatmul.mubr.f32.gmra.mrb[0].mxu0 %v2886
    %v2954 = vpop.f32.mrb[0].mxu0
    %v2955 = vadd.f32 %v2882, %v2954
    %v2956 = vpop.f32.mrb[0].mxu0
    %2957 = vdwg.mxu0
    %2958 = vrot.lane.b32.xlu0 %v2466, 112
    %v2959 = vpop.permute.xlu0 %2958
    %2960 = vrot.lane.b32.xlu0 %v2466, 80
    %v2961 = vpop.permute.xlu0 %2960
    %v2962 = vsel %vm161, %v2959, 0
    %v2964 = vsel %vm161, %v2961, 0
    %2966 = vmatprep.subr.mxu0 0.0
    %2967 = vmatpush1.xpose.msra.mxu0 %v2964
    %2968 = vmatprep.subr.mxu0 0.0
    %2969 = vmatpush1.xpose.msra.mxu0 0.0
    %2970 = vmatprep.subr.mxu0 0.0
    %2971 = vmatpush1.xpose.msra.mxu0 0.0
    %2972 = vmatprep.subr.mxu0 0.0
    %2973 = vmatpush1.xpose.msra.mxu0 0.0
    %2974 = vmatprep.subr.mxu0 0.0
    %2975 = vmatpush1.xpose.msra.mxu0 0.0
    %2976 = vmatprep.subr.mxu0 0.0
    %2977 = vmatpush1.xpose.msra.mxu0 0.0
    %2978 = vmatprep.subr.mxu0 0.0
    %2979 = vmatpush1.xpose.msra.mxu0 0.0
    %2980 = vmatprep.subr.mxu0 0.0
    %2981 = vmatpush1.xpose.msra.mxu0 0.0
    %2982 = vmatprep.subr.mxu0 0.0
    %2983 = vmatpush1.xpose.msra.mxu0 0.0
    %2984 = vmatprep.subr.mxu0 0.0
    %2985 = vmatpush1.xpose.msra.mxu0 0.0
    %2986 = vmatprep.subr.mxu0 0.0
    %2987 = vmatpush1.xpose.msra.mxu0 0.0
    %2988 = vmatprep.subr.mxu0 0.0
    %2989 = vmatpush1.xpose.msra.mxu0 0.0
    %2990 = vmatprep.subr.mxu0 0.0
    %2991 = vmatpush1.xpose.msra.mxu0 0.0
    %2992 = vmatprep.subr.mxu0 0.0
    %2993 = vmatpush1.xpose.msra.mxu0 0.0
    %2994 = vmatprep.subr.mxu0 0.0
    %2995 = vmatpush1.xpose.msra.mxu0 0.0
    %2996 = vmatprep.subr.mxu0 0.0
    %2997 = vmatpush1.xpose.msra.mxu0 0.0
    %2998 = vmatprep.subr.mxu0 0.0
    %2999 = vmatpush1.xpose.msra.mxu0 0.0
    %3000 = vmatprep.subr.mxu0 0.0
    %3001 = vmatpush1.xpose.msra.mxu0 0.0
    %3002 = vmatprep.subr.mxu0 0.0
    %3003 = vmatpush1.xpose.msra.mxu0 0.0
    %3004 = vmatprep.subr.mxu0 0.0
    %3005 = vmatpush1.xpose.msra.mxu0 0.0
    %3006 = vmatprep.subr.mxu0 0.0
    %3007 = vmatpush1.xpose.msra.mxu0 0.0
    %3008 = vmatprep.subr.mxu0 0.0
    %3009 = vmatpush1.xpose.msra.mxu0 0.0
    %3010 = vmatprep.subr.mxu0 0.0
    %3011 = vmatpush1.xpose.msra.mxu0 0.0
    %3012 = vmatprep.subr.mxu0 0.0
    %3013 = vmatpush1.xpose.msra.mxu0 0.0
    %3014 = vmatprep.subr.mxu0 0.0
    %3015 = vmatpush1.xpose.msra.mxu0 0.0
    %3016 = vmatprep.subr.mxu0 0.0
    %3017 = vmatpush1.xpose.msra.mxu0 0.0
    %3018 = vmatprep.subr.mxu0 0.0
    %3019 = vmatpush1.xpose.msra.mxu0 0.0
    %3020 = vmatprep.subr.mxu0 0.0
    %3021 = vmatpush1.xpose.msra.mxu0 0.0
    %3022 = vmatprep.subr.mxu0 0.0
    %3023 = vmatpush1.xpose.msra.mxu0 0.0
    %3024 = vmatprep.subr.mxu0 0.0
    %3025 = vmatpush1.xpose.msra.mxu0 0.0
    %3026 = vmatprep.subr.mxu0 0.0
    %3027 = vmatpush1.xpose.msra.mxu0 0.0
    %3028 = vmatprep.subr.mxu0 0.0
    %3029 = vmatpush1.xpose.msra.mxu0 0.0
    %3030 = vmatprep.mubr.f32.mxu0 0.0
    %3031 = vmatmul.mubr.f32.gmra.mrb[0].mxu0 %v2962
    %v3032 = vpop.f32.mrb[0].mxu0
    %v3033 = vadd.f32 0.0, %v3032
    %v3034 = vpop.f32.mrb[0].mxu0
    %3035 = vdwg.mxu0
    %v3036 = vmul.f32 %v3033, 0.35355338
    %v3037 = vadd.f32 %v3036, %v67
    %v3038 = vsel %vm161, %v3037, -inf
    %3039 = vmax.xlane.f32.xlu0 %v3038
    %v3040 = vpop.xlane.xlu0 %3039
    %v3041 = vsub.f32 %v3037, %v3040
    %v3042 = vmul.f32 %v3041, 1.442695
    %v3043 = vpow.pop %v3042
    %v3044 = vsel %vm161, %v3043, 0.0
    %3045 = vadd.xlane.f32.xlu0 %v3044
    %v3046 = vpop.xlane.xlu0 %3045
    %v3047 = vrcp.pop %v3046
    %v3048 = vmul.f32 %v3043, %v3047
    %3049 = vrot.lane.b32.xlu0 %v2466, 48
    %v3050 = vpop.permute.xlu0 %3049
    %v3053 = vsel %vm161, %v3048, 0
    %3055 = vmatprep.subr.mxu0 0.0
    %3056 = vmatpush1.msra.mxu0 %v3050
    %3057 = vmatprep.subr.mxu0 0.0
    %3058 = vmatpush1.msra.mxu0 0.0
    %3059 = vmatprep.subr.mxu0 0.0
    %3060 = vmatpush1.msra.mxu0 0.0
    %3061 = vmatprep.subr.mxu0 0.0
    %3062 = vmatpush1.msra.mxu0 0.0
    %3063 = vmatprep.subr.mxu0 0.0
    %3064 = vmatpush1.msra.mxu0 0.0
    %3065 = vmatprep.subr.mxu0 0.0
    %3066 = vmatpush1.msra.mxu0 0.0
    %3067 = vmatprep.subr.mxu0 0.0
    %3068 = vmatpush1.msra.mxu0 0.0
    %3069 = vmatprep.subr.mxu0 0.0
    %3070 = vmatpush1.msra.mxu0 0.0
    %3071 = vmatprep.subr.mxu0 0.0
    %3072 = vmatpush1.msra.mxu0 0.0
    %3073 = vmatprep.subr.mxu0 0.0
    %3074 = vmatpush1.msra.mxu0 0.0
    %3075 = vmatprep.subr.mxu0 0.0
    %3076 = vmatpush1.msra.mxu0 0.0
    %3077 = vmatprep.subr.mxu0 0.0
    %3078 = vmatpush1.msra.mxu0 0.0
    %3079 = vmatprep.subr.mxu0 0.0
    %3080 = vmatpush1.msra.mxu0 0.0
    %3081 = vmatprep.subr.mxu0 0.0
    %3082 = vmatpush1.msra.mxu0 0.0
    %3083 = vmatprep.subr.mxu0 0.0
    %3084 = vmatpush1.msra.mxu0 0.0
    %3085 = vmatprep.subr.mxu0 0.0
    %3086 = vmatpush1.msra.mxu0 0.0
    %3087 = vmatprep.subr.mxu0 0.0
    %3088 = vmatpush1.msra.mxu0 0.0
    %3089 = vmatprep.subr.mxu0 0.0
    %3090 = vmatpush1.msra.mxu0 0.0
    %3091 = vmatprep.subr.mxu0 0.0
    %3092 = vmatpush1.msra.mxu0 0.0
    %3093 = vmatprep.subr.mxu0 0.0
    %3094 = vmatpush1.msra.mxu0 0.0
    %3095 = vmatprep.subr.mxu0 0.0
    %3096 = vmatpush1.msra.mxu0 0.0
    %3097 = vmatprep.subr.mxu0 0.0
    %3098 = vmatpush1.msra.mxu0 0.0
    %3099 = vmatprep.subr.mxu0 0.0
    %3100 = vmatpush1.msra.mxu0 0.0
    %3101 = vmatprep.subr.mxu0 0.0
    %3102 = vmatpush1.msra.mxu0 0.0
    %3103 = vmatprep.subr.mxu0 0.0
    %3104 = vmatpush1.msra.mxu0 0.0
    %3105 = vmatprep.subr.mxu0 0.0
    %3106 = vmatpush1.msra.mxu0 0.0
    %3107 = vmatprep.subr.mxu0 0.0
    %3108 = vmatpush1.msra.mxu0 0.0
    %3109 = vmatprep.subr.mxu0 0.0
    %3110 = vmatpush1.msra.mxu0 0.0
    %3111 = vmatprep.subr.mxu0 0.0
    %3112 = vmatpush1.msra.mxu0 0.0
    %3113 = vmatprep.subr.mxu0 0.0
    %3114 = vmatpush1.msra.mxu0 0.0
    %3115 = vmatprep.subr.mxu0 0.0
    %3116 = vmatpush1.msra.mxu0 0.0
    %3117 = vmatprep.subr.mxu0 0.0
    %3118 = vmatpush1.msra.mxu0 0.0
    %3119 = vmatprep.mubr.f32.mxu0 0.0
    %3120 = vmatmul.mubr.f32.gmra.mrb[0].mxu0 %v3053
    %v3121 = vpop.f32.mrb[0].mxu0
    %v3122 = vadd.f32 0.0, %v3121
    %v3123 = vpop.f32.mrb[0].mxu0
    %3124 = vdwg.mxu0
    %v3126 = vsel %vm161, %v3122, 0
    %3128 = vmatprep.subr.mxu0 0.0
    %3129 = vmatpush1.msra.mxu0 %v2477
    %3130 = vmatprep.subr.mxu0 0.0
    %3131 = vmatpush1.msra.mxu0 0.0
    %3132 = vmatprep.subr.mxu0 0.0
    %3133 = vmatpush1.msra.mxu0 0.0
    %3134 = vmatprep.subr.mxu0 0.0
    %3135 = vmatpush1.msra.mxu0 0.0
    %3136 = vmatprep.subr.mxu0 0.0
    %3137 = vmatpush1.msra.mxu0 0.0
    %3138 = vmatprep.subr.mxu0 0.0
    %3139 = vmatpush1.msra.mxu0 0.0
    %3140 = vmatprep.subr.mxu0 0.0
    %3141 = vmatpush1.msra.mxu0 0.0
    %3142 = vmatprep.subr.mxu0 0.0
    %3143 = vmatpush1.msra.mxu0 0.0
    %3144 = vmatprep.subr.mxu0 0.0
    %3145 = vmatpush1.msra.mxu0 0.0
    %3146 = vmatprep.subr.mxu0 0.0
    %3147 = vmatpush1.msra.mxu0 0.0
    %3148 = vmatprep.subr.mxu0 0.0
    %3149 = vmatpush1.msra.mxu0 0.0
    %3150 = vmatprep.subr.mxu0 0.0
    %3151 = vmatpush1.msra.mxu0 0.0
    %3152 = vmatprep.subr.mxu0 0.0
    %3153 = vmatpush1.msra.mxu0 0.0
    %3154 = vmatprep.subr.mxu0 0.0
    %3155 = vmatpush1.msra.mxu0 0.0
    %3156 = vmatprep.subr.mxu0 0.0
    %3157 = vmatpush1.msra.mxu0 0.0
    %3158 = vmatprep.subr.mxu0 0.0
    %3159 = vmatpush1.msra.mxu0 0.0
    %3160 = vmatprep.subr.mxu0 0.0
    %3161 = vmatpush1.msra.mxu0 0.0
    %3162 = vmatprep.subr.mxu0 0.0
    %3163 = vmatpush1.msra.mxu0 0.0
    %3164 = vmatprep.subr.mxu0 0.0
    %3165 = vmatpush1.msra.mxu0 0.0
    %3166 = vmatprep.subr.mxu0 0.0
    %3167 = vmatpush1.msra.mxu0 0.0
    %3168 = vmatprep.subr.mxu0 0.0
    %3169 = vmatpush1.msra.mxu0 0.0
    %3170 = vmatprep.subr.mxu0 0.0
    %3171 = vmatpush1.msra.mxu0 0.0
    %3172 = vmatprep.subr.mxu0 0.0
    %3173 = vmatpush1.msra.mxu0 0.0
    %3174 = vmatprep.subr.mxu0 0.0
    %3175 = vmatpush1.msra.mxu0 0.0
    %3176 = vmatprep.subr.mxu0 0.0
    %3177 = vmatpush1.msra.mxu0 0.0
    %3178 = vmatprep.subr.mxu0 0.0
    %3179 = vmatpush1.msra.mxu0 0.0
    %3180 = vmatprep.subr.mxu0 0.0
    %3181 = vmatpush1.msra.mxu0 0.0
    %3182 = vmatprep.subr.mxu0 0.0
    %3183 = vmatpush1.msra.mxu0 0.0
    %3184 = vmatprep.subr.mxu0 0.0
    %3185 = vmatpush1.msra.mxu0 0.0
    %3186 = vmatprep.subr.mxu0 0.0
    %3187 = vmatpush1.msra.mxu0 0.0
    %3188 = vmatprep.subr.mxu0 0.0
    %3189 = vmatpush1.msra.mxu0 0.0
    %3190 = vmatprep.subr.mxu0 0.0
    %3191 = vmatpush1.msra.mxu0 0.0
    %3192 = vmatprep.mubr.f32.mxu0 0.0
    %3193 = vmatmul.mubr.f32.gmra.mrb[0].mxu0 %v3126
    %v3194 = vpop.f32.mrb[0].mxu0
    %v3195 = vadd.f32 0.0, %v3194
    %v3196 = vpop.f32.mrb[0].mxu0
    %3197 = vdwg.mxu0
    %v3198 = vadd.f32 %v2955, %v3195
    %3199 = vrot.lane.b32.xlu0 %v2466, 104
    %v3200 = vpop.permute.xlu0 %3199
    %3201 = vrot.lane.b32.xlu0 %v2466, 72
    %v3202 = vpop.permute.xlu0 %3201
    %v3203 = vsel %vm161, %v3200, 0
    %v3205 = vsel %vm161, %v3202, 0
    %3207 = vmatprep.subr.mxu0 0.0
    %3208 = vmatpush1.xpose.msra.mxu0 %v3205
    %3209 = vmatprep.subr.mxu0 0.0
    %3210 = vmatpush1.xpose.msra.mxu0 0.0
    %3211 = vmatprep.subr.mxu0 0.0
    %3212 = vmatpush1.xpose.msra.mxu0 0.0
    %3213 = vmatprep.subr.mxu0 0.0
    %3214 = vmatpush1.xpose.msra.mxu0 0.0
    %3215 = vmatprep.subr.mxu0 0.0
    %3216 = vmatpush1.xpose.msra.mxu0 0.0
    %3217 = vmatprep.subr.mxu0 0.0
    %3218 = vmatpush1.xpose.msra.mxu0 0.0
    %3219 = vmatprep.subr.mxu0 0.0
    %3220 = vmatpush1.xpose.msra.mxu0 0.0
    %3221 = vmatprep.subr.mxu0 0.0
    %3222 = vmatpush1.xpose.msra.mxu0 0.0
    %3223 = vmatprep.subr.mxu0 0.0
    %3224 = vmatpush1.xpose.msra.mxu0 0.0
    %3225 = vmatprep.subr.mxu0 0.0
    %3226 = vmatpush1.xpose.msra.mxu0 0.0
    %3227 = vmatprep.subr.mxu0 0.0
    %3228 = vmatpush1.xpose.msra.mxu0 0.0
    %3229 = vmatprep.subr.mxu0 0.0
    %3230 = vmatpush1.xpose.msra.mxu0 0.0
    %3231 = vmatprep.subr.mxu0 0.0
    %3232 = vmatpush1.xpose.msra.mxu0 0.0
    %3233 = vmatprep.subr.mxu0 0.0
    %3234 = vmatpush1.xpose.msra.mxu0 0.0
    %3235 = vmatprep.subr.mxu0 0.0
    %3236 = vmatpush1.xpose.msra.mxu0 0.0
    %3237 = vmatprep.subr.mxu0 0.0
    %3238 = vmatpush1.xpose.msra.mxu0 0.0
    %3239 = vmatprep.subr.mxu0 0.0
    %3240 = vmatpush1.xpose.msra.mxu0 0.0
    %3241 = vmatprep.subr.mxu0 0.0
    %3242 = vmatpush1.xpose.msra.mxu0 0.0
    %3243 = vmatprep.subr.mxu0 0.0
    %3244 = vmatpush1.xpose.msra.mxu0 0.0
    %3245 = vmatprep.subr.mxu0 0.0
    %3246 = vmatpush1.xpose.msra.mxu0 0.0
    %3247 = vmatprep.subr.mxu0 0.0
    %3248 = vmatpush1.xpose.msra.mxu0 0.0
    %3249 = vmatprep.subr.mxu0 0.0
    %3250 = vmatpush1.xpose.msra.mxu0 0.0
    %3251 = vmatprep.subr.mxu0 0.0
    %3252 = vmatpush1.xpose.msra.mxu0 0.0
    %3253 = vmatprep.subr.mxu0 0.0
    %3254 = vmatpush1.xpose.msra.mxu0 0.0
    %3255 = vmatprep.subr.mxu0 0.0
    %3256 = vmatpush1.xpose.msra.mxu0 0.0
    %3257 = vmatprep.subr.mxu0 0.0
    %3258 = vmatpush1.xpose.msra.mxu0 0.0
    %3259 = vmatprep.subr.mxu0 0.0
    %3260 = vmatpush1.xpose.msra.mxu0 0.0
    %3261 = vmatprep.subr.mxu0 0.0
    %3262 = vmatpush1.xpose.msra.mxu0 0.0
    %3263 = vmatprep.subr.mxu0 0.0
    %3264 = vmatpush1.xpose.msra.mxu0 0.0
    %3265 = vmatprep.subr.mxu0 0.0
    %3266 = vmatpush1.xpose.msra.mxu0 0.0
    %3267 = vmatprep.subr.mxu0 0.0
    %3268 = vmatpush1.xpose.msra.mxu0 0.0
    %3269 = vmatprep.subr.mxu0 0.0
    %3270 = vmatpush1.xpose.msra.mxu0 0.0
    %3271 = vmatprep.mubr.f32.mxu0 0.0
    %3272 = vmatmul.mubr.f32.gmra.mrb[0].mxu0 %v3203
    %v3273 = vpop.f32.mrb[0].mxu0
    %v3274 = vadd.f32 0.0, %v3273
    %v3275 = vpop.f32.mrb[0].mxu0
    %3276 = vdwg.mxu0
    %v3277 = vmul.f32 %v3274, 0.35355338
    %v3278 = vadd.f32 %v3277, %v67
    %v3279 = vsel %vm161, %v3278, -inf
    %3280 = vmax.xlane.f32.xlu0 %v3279
    %v3281 = vpop.xlane.xlu0 %3280
    %v3282 = vsub.f32 %v3278, %v3281
    %v3283 = vmul.f32 %v3282, 1.442695
    %v3284 = vpow.pop %v3283
    %v3285 = vsel %vm161, %v3284, 0.0
    %3286 = vadd.xlane.f32.xlu0 %v3285
    %v3287 = vpop.xlane.xlu0 %3286
    %v3288 = vrcp.pop %v3287
    %v3289 = vmul.f32 %v3284, %v3288
    %3290 = vrot.lane.b32.xlu0 %v2466, 40
    %v3291 = vpop.permute.xlu0 %3290
    %v3294 = vsel %vm161, %v3289, 0
    %3296 = vmatprep.subr.mxu0 0.0
    %3297 = vmatpush1.msra.mxu0 %v3291
    %3298 = vmatprep.subr.mxu0 0.0
    %3299 = vmatpush1.msra.mxu0 0.0
    %3300 = vmatprep.subr.mxu0 0.0
    %3301 = vmatpush1.msra.mxu0 0.0
    %3302 = vmatprep.subr.mxu0 0.0
    %3303 = vmatpush1.msra.mxu0 0.0
    %3304 = vmatprep.subr.mxu0 0.0
    %3305 = vmatpush1.msra.mxu0 0.0
    %3306 = vmatprep.subr.mxu0 0.0
    %3307 = vmatpush1.msra.mxu0 0.0
    %3308 = vmatprep.subr.mxu0 0.0
    %3309 = vmatpush1.msra.mxu0 0.0
    %3310 = vmatprep.subr.mxu0 0.0
    %3311 = vmatpush1.msra.mxu0 0.0
    %3312 = vmatprep.subr.mxu0 0.0
    %3313 = vmatpush1.msra.mxu0 0.0
    %3314 = vmatprep.subr.mxu0 0.0
    %3315 = vmatpush1.msra.mxu0 0.0
    %3316 = vmatprep.subr.mxu0 0.0
    %3317 = vmatpush1.msra.mxu0 0.0
    %3318 = vmatprep.subr.mxu0 0.0
    %3319 = vmatpush1.msra.mxu0 0.0
    %3320 = vmatprep.subr.mxu0 0.0
    %3321 = vmatpush1.msra.mxu0 0.0
    %3322 = vmatprep.subr.mxu0 0.0
    %3323 = vmatpush1.msra.mxu0 0.0
    %3324 = vmatprep.subr.mxu0 0.0
    %3325 = vmatpush1.msra.mxu0 0.0
    %3326 = vmatprep.subr.mxu0 0.0
    %3327 = vmatpush1.msra.mxu0 0.0
    %3328 = vmatprep.subr.mxu0 0.0
    %3329 = vmatpush1.msra.mxu0 0.0
    %3330 = vmatprep.subr.mxu0 0.0
    %3331 = vmatpush1.msra.mxu0 0.0
    %3332 = vmatprep.subr.mxu0 0.0
    %3333 = vmatpush1.msra.mxu0 0.0
    %3334 = vmatprep.subr.mxu0 0.0
    %3335 = vmatpush1.msra.mxu0 0.0
    %3336 = vmatprep.subr.mxu0 0.0
    %3337 = vmatpush1.msra.mxu0 0.0
    %3338 = vmatprep.subr.mxu0 0.0
    %3339 = vmatpush1.msra.mxu0 0.0
    %3340 = vmatprep.subr.mxu0 0.0
    %3341 = vmatpush1.msra.mxu0 0.0
    %3342 = vmatprep.subr.mxu0 0.0
    %3343 = vmatpush1.msra.mxu0 0.0
    %3344 = vmatprep.subr.mxu0 0.0
    %3345 = vmatpush1.msra.mxu0 0.0
    %3346 = vmatprep.subr.mxu0 0.0
    %3347 = vmatpush1.msra.mxu0 0.0
    %3348 = vmatprep.subr.mxu0 0.0
    %3349 = vmatpush1.msra.mxu0 0.0
    %3350 = vmatprep.subr.mxu0 0.0
    %3351 = vmatpush1.msra.mxu0 0.0
    %3352 = vmatprep.subr.mxu0 0.0
    %3353 = vmatpush1.msra.mxu0 0.0
    %3354 = vmatprep.subr.mxu0 0.0
    %3355 = vmatpush1.msra.mxu0 0.0
    %3356 = vmatprep.subr.mxu0 0.0
    %3357 = vmatpush1.msra.mxu0 0.0
    %3358 = vmatprep.subr.mxu0 0.0
    %3359 = vmatpush1.msra.mxu0 0.0
    %3360 = vmatprep.mubr.f32.mxu0 0.0
    %3361 = vmatmul.mubr.f32.gmra.mrb[0].mxu0 %v3294
    %v3362 = vpop.f32.mrb[0].mxu0
    %v3363 = vadd.f32 0.0, %v3362
    %v3364 = vpop.f32.mrb[0].mxu0
    %3365 = vdwg.mxu0
    %v3367 = vsel %vm161, %v3363, 0
    %3369 = vmatprep.subr.mxu0 0.0
    %3370 = vmatpush1.msra.mxu0 %v2478
    %3371 = vmatprep.subr.mxu0 0.0
    %3372 = vmatpush1.msra.mxu0 0.0
    %3373 = vmatprep.subr.mxu0 0.0
    %3374 = vmatpush1.msra.mxu0 0.0
    %3375 = vmatprep.subr.mxu0 0.0
    %3376 = vmatpush1.msra.mxu0 0.0
    %3377 = vmatprep.subr.mxu0 0.0
    %3378 = vmatpush1.msra.mxu0 0.0
    %3379 = vmatprep.subr.mxu0 0.0
    %3380 = vmatpush1.msra.mxu0 0.0
    %3381 = vmatprep.subr.mxu0 0.0
    %3382 = vmatpush1.msra.mxu0 0.0
    %3383 = vmatprep.subr.mxu0 0.0
    %3384 = vmatpush1.msra.mxu0 0.0
    %3385 = vmatprep.subr.mxu0 0.0
    %3386 = vmatpush1.msra.mxu0 0.0
    %3387 = vmatprep.subr.mxu0 0.0
    %3388 = vmatpush1.msra.mxu0 0.0
    %3389 = vmatprep.subr.mxu0 0.0
    %3390 = vmatpush1.msra.mxu0 0.0
    %3391 = vmatprep.subr.mxu0 0.0
    %3392 = vmatpush1.msra.mxu0 0.0
    %3393 = vmatprep.subr.mxu0 0.0
    %3394 = vmatpush1.msra.mxu0 0.0
    %3395 = vmatprep.subr.mxu0 0.0
    %3396 = vmatpush1.msra.mxu0 0.0
    %3397 = vmatprep.subr.mxu0 0.0
    %3398 = vmatpush1.msra.mxu0 0.0
    %3399 = vmatprep.subr.mxu0 0.0
    %3400 = vmatpush1.msra.mxu0 0.0
    %3401 = vmatprep.subr.mxu0 0.0
    %3402 = vmatpush1.msra.mxu0 0.0
    %3403 = vmatprep.subr.mxu0 0.0
    %3404 = vmatpush1.msra.mxu0 0.0
    %3405 = vmatprep.subr.mxu0 0.0
    %3406 = vmatpush1.msra.mxu0 0.0
    %3407 = vmatprep.subr.mxu0 0.0
    %3408 = vmatpush1.msra.mxu0 0.0
    %3409 = vmatprep.subr.mxu0 0.0
    %3410 = vmatpush1.msra.mxu0 0.0
    %3411 = vmatprep.subr.mxu0 0.0
    %3412 = vmatpush1.msra.mxu0 0.0
    %3413 = vmatprep.subr.mxu0 0.0
    %3414 = vmatpush1.msra.mxu0 0.0
    %3415 = vmatprep.subr.mxu0 0.0
    %3416 = vmatpush1.msra.mxu0 0.0
    %3417 = vmatprep.subr.mxu0 0.0
    %3418 = vmatpush1.msra.mxu0 0.0
    %3419 = vmatprep.subr.mxu0 0.0
    %3420 = vmatpush1.msra.mxu0 0.0
    %3421 = vmatprep.subr.mxu0 0.0
    %3422 = vmatpush1.msra.mxu0 0.0
    %3423 = vmatprep.subr.mxu0 0.0
    %3424 = vmatpush1.msra.mxu0 0.0
    %3425 = vmatprep.subr.mxu0 0.0
    %3426 = vmatpush1.msra.mxu0 0.0
    %3427 = vmatprep.subr.mxu0 0.0
    %3428 = vmatpush1.msra.mxu0 0.0
    %3429 = vmatprep.subr.mxu0 0.0
    %3430 = vmatpush1.msra.mxu0 0.0
    %3431 = vmatprep.subr.mxu0 0.0
    %3432 = vmatpush1.msra.mxu0 0.0
    %3433 = vmatprep.mubr.f32.mxu0 0.0
    %3434 = vmatmul.mubr.f32.gmra.mrb[0].mxu0 %v3367
    %v3435 = vpop.f32.mrb[0].mxu0
    %v3436 = vadd.f32 0.0, %v3435
    %v3437 = vpop.f32.mrb[0].mxu0
    %3438 = vdwg.mxu0
    %v3439 = vadd.f32 %v3198, %v3436
    %3440 = vrot.lane.b32.xlu0 %v2735, 8
    %v3441 = vpop.permute.xlu0 %3440
    %3443 = vrot.lane.b32.xlu0 %v3048, 16
    %v3444 = vpop.permute.xlu0 %3443
    %3446 = vrot.lane.b32.xlu0 %v3289, 24
    %v3447 = vpop.permute.xlu0 %3446
    %v3449 = vsel %vm161, %v2568, %v3441
    %v3450 = vsel %vm1130, %v3449, %v3444
    %v3451 = vsel %vm1132, %v3450, %v3447
    %s3452 = scalar_lea.vmem [#allocation8], 16
    %3453 = vst.msk [vmem:[%s3452] sm:$0xff] %vm72, %v3451
    %3455 = vrot.lane.b32.xlu0 %v2471, 96
    %v3456 = vpop.permute.xlu0 %3455
    %v3457 = vsel %vm161, %v2471, 0
    %v3459 = vsel %vm161, %v3456, 0
    %3461 = vmatprep.subr.mxu0 0.0
    %3462 = vmatpush1.xpose.msra.mxu0 %v3459
    %3463 = vmatprep.subr.mxu0 0.0
    %3464 = vmatpush1.xpose.msra.mxu0 0.0
    %3465 = vmatprep.subr.mxu0 0.0
    %3466 = vmatpush1.xpose.msra.mxu0 0.0
    %3467 = vmatprep.subr.mxu0 0.0
    %3468 = vmatpush1.xpose.msra.mxu0 0.0
    %3469 = vmatprep.subr.mxu0 0.0
    %3470 = vmatpush1.xpose.msra.mxu0 0.0
    %3471 = vmatprep.subr.mxu0 0.0
    %3472 = vmatpush1.xpose.msra.mxu0 0.0
    %3473 = vmatprep.subr.mxu0 0.0
    %3474 = vmatpush1.xpose.msra.mxu0 0.0
    %3475 = vmatprep.subr.mxu0 0.0
    %3476 = vmatpush1.xpose.msra.mxu0 0.0
    %3477 = vmatprep.subr.mxu0 0.0
    %3478 = vmatpush1.xpose.msra.mxu0 0.0
    %3479 = vmatprep.subr.mxu0 0.0
    %3480 = vmatpush1.xpose.msra.mxu0 0.0
    %3481 = vmatprep.subr.mxu0 0.0
    %3482 = vmatpush1.xpose.msra.mxu0 0.0
    %3483 = vmatprep.subr.mxu0 0.0
    %3484 = vmatpush1.xpose.msra.mxu0 0.0
    %3485 = vmatprep.subr.mxu0 0.0
    %3486 = vmatpush1.xpose.msra.mxu0 0.0
    %3487 = vmatprep.subr.mxu0 0.0
    %3488 = vmatpush1.xpose.msra.mxu0 0.0
    %3489 = vmatprep.subr.mxu0 0.0
    %3490 = vmatpush1.xpose.msra.mxu0 0.0
    %3491 = vmatprep.subr.mxu0 0.0
    %3492 = vmatpush1.xpose.msra.mxu0 0.0
    %3493 = vmatprep.subr.mxu0 0.0
    %3494 = vmatpush1.xpose.msra.mxu0 0.0
    %3495 = vmatprep.subr.mxu0 0.0
    %3496 = vmatpush1.xpose.msra.mxu0 0.0
    %3497 = vmatprep.subr.mxu0 0.0
    %3498 = vmatpush1.xpose.msra.mxu0 0.0
    %3499 = vmatprep.subr.mxu0 0.0
    %3500 = vmatpush1.xpose.msra.mxu0 0.0
    %3501 = vmatprep.subr.mxu0 0.0
    %3502 = vmatpush1.xpose.msra.mxu0 0.0
    %3503 = vmatprep.subr.mxu0 0.0
    %3504 = vmatpush1.xpose.msra.mxu0 0.0
    %3505 = vmatprep.subr.mxu0 0.0
    %3506 = vmatpush1.xpose.msra.mxu0 0.0
    %3507 = vmatprep.subr.mxu0 0.0
    %3508 = vmatpush1.xpose.msra.mxu0 0.0
    %3509 = vmatprep.subr.mxu0 0.0
    %3510 = vmatpush1.xpose.msra.mxu0 0.0
    %3511 = vmatprep.subr.mxu0 0.0
    %3512 = vmatpush1.xpose.msra.mxu0 0.0
    %3513 = vmatprep.subr.mxu0 0.0
    %3514 = vmatpush1.xpose.msra.mxu0 0.0
    %3515 = vmatprep.subr.mxu0 0.0
    %3516 = vmatpush1.xpose.msra.mxu0 0.0
    %3517 = vmatprep.subr.mxu0 0.0
    %3518 = vmatpush1.xpose.msra.mxu0 0.0
    %3519 = vmatprep.subr.mxu0 0.0
    %3520 = vmatpush1.xpose.msra.mxu0 0.0
    %3521 = vmatprep.subr.mxu0 0.0
    %3522 = vmatpush1.xpose.msra.mxu0 0.0
    %3523 = vmatprep.subr.mxu0 0.0
    %3524 = vmatpush1.xpose.msra.mxu0 0.0
    %3525 = vmatprep.mubr.f32.mxu0 0.0
    %3526 = vmatmul.mubr.f32.gmra.mrb[0].mxu0 %v3457
    %v3527 = vpop.f32.mrb[0].mxu0
    %v3528 = vadd.f32 0.0, %v3527
    %v3529 = vpop.f32.mrb[0].mxu0
    %3530 = vdwg.mxu0
    %v3531 = vmul.f32 %v3528, 0.35355338
    %v3532 = vadd.f32 %v3531, %v67
    %v3533 = vsel %vm161, %v3532, -inf
    %3534 = vmax.xlane.f32.xlu0 %v3533
    %v3535 = vpop.xlane.xlu0 %3534
    %v3536 = vsub.f32 %v3532, %v3535
    %v3537 = vmul.f32 %v3536, 1.442695
    %v3538 = vpow.pop %v3537
    %v3539 = vsel %vm161, %v3538, 0.0
    %3540 = vadd.xlane.f32.xlu0 %v3539
    %v3541 = vpop.xlane.xlu0 %3540
    %v3542 = vrcp.pop %v3541
    %v3543 = vmul.f32 %v3538, %v3542
    %3544 = vrot.lane.b32.xlu0 %v2471, 64
    %v3545 = vpop.permute.xlu0 %3544
    %v3548 = vsel %vm161, %v3543, 0
    %3550 = vmatprep.subr.mxu0 0.0
    %3551 = vmatpush1.msra.mxu0 %v3545
    %3552 = vmatprep.subr.mxu0 0.0
    %3553 = vmatpush1.msra.mxu0 0.0
    %3554 = vmatprep.subr.mxu0 0.0
    %3555 = vmatpush1.msra.mxu0 0.0
    %3556 = vmatprep.subr.mxu0 0.0
    %3557 = vmatpush1.msra.mxu0 0.0
    %3558 = vmatprep.subr.mxu0 0.0
    %3559 = vmatpush1.msra.mxu0 0.0
    %3560 = vmatprep.subr.mxu0 0.0
    %3561 = vmatpush1.msra.mxu0 0.0
    %3562 = vmatprep.subr.mxu0 0.0
    %3563 = vmatpush1.msra.mxu0 0.0
    %3564 = vmatprep.subr.mxu0 0.0
    %3565 = vmatpush1.msra.mxu0 0.0
    %3566 = vmatprep.subr.mxu0 0.0
    %3567 = vmatpush1.msra.mxu0 0.0
    %3568 = vmatprep.subr.mxu0 0.0
    %3569 = vmatpush1.msra.mxu0 0.0
    %3570 = vmatprep.subr.mxu0 0.0
    %3571 = vmatpush1.msra.mxu0 0.0
    %3572 = vmatprep.subr.mxu0 0.0
    %3573 = vmatpush1.msra.mxu0 0.0
    %3574 = vmatprep.subr.mxu0 0.0
    %3575 = vmatpush1.msra.mxu0 0.0
    %3576 = vmatprep.subr.mxu0 0.0
    %3577 = vmatpush1.msra.mxu0 0.0
    %3578 = vmatprep.subr.mxu0 0.0
    %3579 = vmatpush1.msra.mxu0 0.0
    %3580 = vmatprep.subr.mxu0 0.0
    %3581 = vmatpush1.msra.mxu0 0.0
    %3582 = vmatprep.subr.mxu0 0.0
    %3583 = vmatpush1.msra.mxu0 0.0
    %3584 = vmatprep.subr.mxu0 0.0
    %3585 = vmatpush1.msra.mxu0 0.0
    %3586 = vmatprep.subr.mxu0 0.0
    %3587 = vmatpush1.msra.mxu0 0.0
    %3588 = vmatprep.subr.mxu0 0.0
    %3589 = vmatpush1.msra.mxu0 0.0
    %3590 = vmatprep.subr.mxu0 0.0
    %3591 = vmatpush1.msra.mxu0 0.0
    %3592 = vmatprep.subr.mxu0 0.0
    %3593 = vmatpush1.msra.mxu0 0.0
    %3594 = vmatprep.subr.mxu0 0.0
    %3595 = vmatpush1.msra.mxu0 0.0
    %3596 = vmatprep.subr.mxu0 0.0
    %3597 = vmatpush1.msra.mxu0 0.0
    %3598 = vmatprep.subr.mxu0 0.0
    %3599 = vmatpush1.msra.mxu0 0.0
    %3600 = vmatprep.subr.mxu0 0.0
    %3601 = vmatpush1.msra.mxu0 0.0
    %3602 = vmatprep.subr.mxu0 0.0
    %3603 = vmatpush1.msra.mxu0 0.0
    %3604 = vmatprep.subr.mxu0 0.0
    %3605 = vmatpush1.msra.mxu0 0.0
    %3606 = vmatprep.subr.mxu0 0.0
    %3607 = vmatpush1.msra.mxu0 0.0
    %3608 = vmatprep.subr.mxu0 0.0
    %3609 = vmatpush1.msra.mxu0 0.0
    %3610 = vmatprep.subr.mxu0 0.0
    %3611 = vmatpush1.msra.mxu0 0.0
    %3612 = vmatprep.subr.mxu0 0.0
    %3613 = vmatpush1.msra.mxu0 0.0
    %3614 = vmatprep.mubr.f32.mxu0 0.0
    %3615 = vmatmul.mubr.f32.gmra.mrb[0].mxu0 %v3548
    %v3616 = vpop.f32.mrb[0].mxu0
    %v3617 = vadd.f32 0.0, %v3616
    %v3618 = vpop.f32.mrb[0].mxu0
    %3619 = vdwg.mxu0
    %3620 = vrot.lane.b32.xlu0 %v2471, 120
    %v3621 = vpop.permute.xlu0 %3620
    %3622 = vrot.lane.b32.xlu0 %v2471, 88
    %v3623 = vpop.permute.xlu0 %3622
    %v3624 = vsel %vm161, %v3621, 0
    %v3626 = vsel %vm161, %v3623, 0
    %3628 = vmatprep.subr.mxu0 0.0
    %3629 = vmatpush1.xpose.msra.mxu0 %v3626
    %3630 = vmatprep.subr.mxu0 0.0
    %3631 = vmatpush1.xpose.msra.mxu0 0.0
    %3632 = vmatprep.subr.mxu0 0.0
    %3633 = vmatpush1.xpose.msra.mxu0 0.0
    %3634 = vmatprep.subr.mxu0 0.0
    %3635 = vmatpush1.xpose.msra.mxu0 0.0
    %3636 = vmatprep.subr.mxu0 0.0
    %3637 = vmatpush1.xpose.msra.mxu0 0.0
    %3638 = vmatprep.subr.mxu0 0.0
    %3639 = vmatpush1.xpose.msra.mxu0 0.0
    %3640 = vmatprep.subr.mxu0 0.0
    %3641 = vmatpush1.xpose.msra.mxu0 0.0
    %3642 = vmatprep.subr.mxu0 0.0
    %3643 = vmatpush1.xpose.msra.mxu0 0.0
    %3644 = vmatprep.subr.mxu0 0.0
    %3645 = vmatpush1.xpose.msra.mxu0 0.0
    %3646 = vmatprep.subr.mxu0 0.0
    %3647 = vmatpush1.xpose.msra.mxu0 0.0
    %3648 = vmatprep.subr.mxu0 0.0
    %3649 = vmatpush1.xpose.msra.mxu0 0.0
    %3650 = vmatprep.subr.mxu0 0.0
    %3651 = vmatpush1.xpose.msra.mxu0 0.0
    %3652 = vmatprep.subr.mxu0 0.0
    %3653 = vmatpush1.xpose.msra.mxu0 0.0
    %3654 = vmatprep.subr.mxu0 0.0
    %3655 = vmatpush1.xpose.msra.mxu0 0.0
    %3656 = vmatprep.subr.mxu0 0.0
    %3657 = vmatpush1.xpose.msra.mxu0 0.0
    %3658 = vmatprep.subr.mxu0 0.0
    %3659 = vmatpush1.xpose.msra.mxu0 0.0
    %3660 = vmatprep.subr.mxu0 0.0
    %3661 = vmatpush1.xpose.msra.mxu0 0.0
    %3662 = vmatprep.subr.mxu0 0.0
    %3663 = vmatpush1.xpose.msra.mxu0 0.0
    %3664 = vmatprep.subr.mxu0 0.0
    %3665 = vmatpush1.xpose.msra.mxu0 0.0
    %3666 = vmatprep.subr.mxu0 0.0
    %3667 = vmatpush1.xpose.msra.mxu0 0.0
    %3668 = vmatprep.subr.mxu0 0.0
    %3669 = vmatpush1.xpose.msra.mxu0 0.0
    %3670 = vmatprep.subr.mxu0 0.0
    %3671 = vmatpush1.xpose.msra.mxu0 0.0
    %3672 = vmatprep.subr.mxu0 0.0
    %3673 = vmatpush1.xpose.msra.mxu0 0.0
    %3674 = vmatprep.subr.mxu0 0.0
    %3675 = vmatpush1.xpose.msra.mxu0 0.0
    %3676 = vmatprep.subr.mxu0 0.0
    %3677 = vmatpush1.xpose.msra.mxu0 0.0
    %3678 = vmatprep.subr.mxu0 0.0
    %3679 = vmatpush1.xpose.msra.mxu0 0.0
    %3680 = vmatprep.subr.mxu0 0.0
    %3681 = vmatpush1.xpose.msra.mxu0 0.0
    %3682 = vmatprep.subr.mxu0 0.0
    %3683 = vmatpush1.xpose.msra.mxu0 0.0
    %3684 = vmatprep.subr.mxu0 0.0
    %3685 = vmatpush1.xpose.msra.mxu0 0.0
    %3686 = vmatprep.subr.mxu0 0.0
    %3687 = vmatpush1.xpose.msra.mxu0 0.0
    %3688 = vmatprep.subr.mxu0 0.0
    %3689 = vmatpush1.xpose.msra.mxu0 0.0
    %3690 = vmatprep.subr.mxu0 0.0
    %3691 = vmatpush1.xpose.msra.mxu0 0.0
    %3692 = vmatprep.mubr.f32.mxu0 0.0
    %3693 = vmatmul.mubr.f32.gmra.mrb[0].mxu0 %v3624
    %v3694 = vpop.f32.mrb[0].mxu0
    %v3695 = vadd.f32 0.0, %v3694
    %v3696 = vpop.f32.mrb[0].mxu0
    %3697 = vdwg.mxu0
    %v3698 = vmul.f32 %v3695, 0.35355338
    %v3699 = vadd.f32 %v3698, %v67
    %v3700 = vsel %vm161, %v3699, -inf
    %3701 = vmax.xlane.f32.xlu0 %v3700
    %v3702 = vpop.xlane.xlu0 %3701
    %v3703 = vsub.f32 %v3699, %v3702
    %v3704 = vmul.f32 %v3703, 1.442695
    %v3705 = vpow.pop %v3704
    %v3706 = vsel %vm161, %v3705, 0.0
    %3707 = vadd.xlane.f32.xlu0 %v3706
    %v3708 = vpop.xlane.xlu0 %3707
    %v3709 = vrcp.pop %v3708
    %v3710 = vmul.f32 %v3705, %v3709
    %3711 = vrot.lane.b32.xlu0 %v2471, 56
    %v3712 = vpop.permute.xlu0 %3711
    %v3715 = vsel %vm161, %v3710, 0
    %3717 = vmatprep.subr.mxu0 0.0
    %3718 = vmatpush1.msra.mxu0 %v3712
    %3719 = vmatprep.subr.mxu0 0.0
    %3720 = vmatpush1.msra.mxu0 0.0
    %3721 = vmatprep.subr.mxu0 0.0
    %3722 = vmatpush1.msra.mxu0 0.0
    %3723 = vmatprep.subr.mxu0 0.0
    %3724 = vmatpush1.msra.mxu0 0.0
    %3725 = vmatprep.subr.mxu0 0.0
    %3726 = vmatpush1.msra.mxu0 0.0
    %3727 = vmatprep.subr.mxu0 0.0
    %3728 = vmatpush1.msra.mxu0 0.0
    %3729 = vmatprep.subr.mxu0 0.0
    %3730 = vmatpush1.msra.mxu0 0.0
    %3731 = vmatprep.subr.mxu0 0.0
    %3732 = vmatpush1.msra.mxu0 0.0
    %3733 = vmatprep.subr.mxu0 0.0
    %3734 = vmatpush1.msra.mxu0 0.0
    %3735 = vmatprep.subr.mxu0 0.0
    %3736 = vmatpush1.msra.mxu0 0.0
    %3737 = vmatprep.subr.mxu0 0.0
    %3738 = vmatpush1.msra.mxu0 0.0
    %3739 = vmatprep.subr.mxu0 0.0
    %3740 = vmatpush1.msra.mxu0 0.0
    %3741 = vmatprep.subr.mxu0 0.0
    %3742 = vmatpush1.msra.mxu0 0.0
    %3743 = vmatprep.subr.mxu0 0.0
    %3744 = vmatpush1.msra.mxu0 0.0
    %3745 = vmatprep.subr.mxu0 0.0
    %3746 = vmatpush1.msra.mxu0 0.0
    %3747 = vmatprep.subr.mxu0 0.0
    %3748 = vmatpush1.msra.mxu0 0.0
    %3749 = vmatprep.subr.mxu0 0.0
    %3750 = vmatpush1.msra.mxu0 0.0
    %3751 = vmatprep.subr.mxu0 0.0
    %3752 = vmatpush1.msra.mxu0 0.0
    %3753 = vmatprep.subr.mxu0 0.0
    %3754 = vmatpush1.msra.mxu0 0.0
    %3755 = vmatprep.subr.mxu0 0.0
    %3756 = vmatpush1.msra.mxu0 0.0
    %3757 = vmatprep.subr.mxu0 0.0
    %3758 = vmatpush1.msra.mxu0 0.0
    %3759 = vmatprep.subr.mxu0 0.0
    %3760 = vmatpush1.msra.mxu0 0.0
    %3761 = vmatprep.subr.mxu0 0.0
    %3762 = vmatpush1.msra.mxu0 0.0
    %3763 = vmatprep.subr.mxu0 0.0
    %3764 = vmatpush1.msra.mxu0 0.0
    %3765 = vmatprep.subr.mxu0 0.0
    %3766 = vmatpush1.msra.mxu0 0.0
    %3767 = vmatprep.subr.mxu0 0.0
    %3768 = vmatpush1.msra.mxu0 0.0
    %3769 = vmatprep.subr.mxu0 0.0
    %3770 = vmatpush1.msra.mxu0 0.0
    %3771 = vmatprep.subr.mxu0 0.0
    %3772 = vmatpush1.msra.mxu0 0.0
    %3773 = vmatprep.subr.mxu0 0.0
    %3774 = vmatpush1.msra.mxu0 0.0
    %3775 = vmatprep.subr.mxu0 0.0
    %3776 = vmatpush1.msra.mxu0 0.0
    %3777 = vmatprep.subr.mxu0 0.0
    %3778 = vmatpush1.msra.mxu0 0.0
    %3779 = vmatprep.subr.mxu0 0.0
    %3780 = vmatpush1.msra.mxu0 0.0
    %3781 = vmatprep.mubr.f32.mxu0 0.0
    %3782 = vmatmul.mubr.f32.gmra.mrb[0].mxu0 %v3715
    %v3783 = vpop.f32.mrb[0].mxu0
    %v3784 = vadd.f32 0.0, %v3783
    %v3785 = vpop.f32.mrb[0].mxu0
    %3786 = vdwg.mxu0
    %v3788 = vsel %vm161, %v3784, 0
    %3790 = vmatprep.subr.mxu0 0.0
    %3791 = vmatpush1.msra.mxu0 %v2476
    %3792 = vmatprep.subr.mxu0 0.0
    %3793 = vmatpush1.msra.mxu0 0.0
    %3794 = vmatprep.subr.mxu0 0.0
    %3795 = vmatpush1.msra.mxu0 0.0
    %3796 = vmatprep.subr.mxu0 0.0
    %3797 = vmatpush1.msra.mxu0 0.0
    %3798 = vmatprep.subr.mxu0 0.0
    %3799 = vmatpush1.msra.mxu0 0.0
    %3800 = vmatprep.subr.mxu0 0.0
    %3801 = vmatpush1.msra.mxu0 0.0
    %3802 = vmatprep.subr.mxu0 0.0
    %3803 = vmatpush1.msra.mxu0 0.0
    %3804 = vmatprep.subr.mxu0 0.0
    %3805 = vmatpush1.msra.mxu0 0.0
    %3806 = vmatprep.subr.mxu0 0.0
    %3807 = vmatpush1.msra.mxu0 0.0
    %3808 = vmatprep.subr.mxu0 0.0
    %3809 = vmatpush1.msra.mxu0 0.0
    %3810 = vmatprep.subr.mxu0 0.0
    %3811 = vmatpush1.msra.mxu0 0.0
    %3812 = vmatprep.subr.mxu0 0.0
    %3813 = vmatpush1.msra.mxu0 0.0
    %3814 = vmatprep.subr.mxu0 0.0
    %3815 = vmatpush1.msra.mxu0 0.0
    %3816 = vmatprep.subr.mxu0 0.0
    %3817 = vmatpush1.msra.mxu0 0.0
    %3818 = vmatprep.subr.mxu0 0.0
    %3819 = vmatpush1.msra.mxu0 0.0
    %3820 = vmatprep.subr.mxu0 0.0
    %3821 = vmatpush1.msra.mxu0 0.0
    %3822 = vmatprep.subr.mxu0 0.0
    %3823 = vmatpush1.msra.mxu0 0.0
    %3824 = vmatprep.subr.mxu0 0.0
    %3825 = vmatpush1.msra.mxu0 0.0
    %3826 = vmatprep.subr.mxu0 0.0
    %3827 = vmatpush1.msra.mxu0 0.0
    %3828 = vmatprep.subr.mxu0 0.0
    %3829 = vmatpush1.msra.mxu0 0.0
    %3830 = vmatprep.subr.mxu0 0.0
    %3831 = vmatpush1.msra.mxu0 0.0
    %3832 = vmatprep.subr.mxu0 0.0
    %3833 = vmatpush1.msra.mxu0 0.0
    %3834 = vmatprep.subr.mxu0 0.0
    %3835 = vmatpush1.msra.mxu0 0.0
    %3836 = vmatprep.subr.mxu0 0.0
    %3837 = vmatpush1.msra.mxu0 0.0
    %3838 = vmatprep.subr.mxu0 0.0
    %3839 = vmatpush1.msra.mxu0 0.0
    %3840 = vmatprep.subr.mxu0 0.0
    %3841 = vmatpush1.msra.mxu0 0.0
    %3842 = vmatprep.subr.mxu0 0.0
    %3843 = vmatpush1.msra.mxu0 0.0
    %3844 = vmatprep.subr.mxu0 0.0
    %3845 = vmatpush1.msra.mxu0 0.0
    %3846 = vmatprep.subr.mxu0 0.0
    %3847 = vmatpush1.msra.mxu0 0.0
    %3848 = vmatprep.subr.mxu0 0.0
    %3849 = vmatpush1.msra.mxu0 0.0
    %3850 = vmatprep.subr.mxu0 0.0
    %3851 = vmatpush1.msra.mxu0 0.0
    %3852 = vmatprep.subr.mxu0 0.0
    %3853 = vmatpush1.msra.mxu0 0.0
    %3854 = vmatprep.mubr.f32.mxu0 0.0
    %3855 = vmatmul.mubr.f32.gmra.mrb[0].mxu0 %v3788
    %v3856 = vpop.f32.mrb[0].mxu0
    %v3857 = vadd.f32 0.0, %v3856
    %v3858 = vpop.f32.mrb[0].mxu0
    %3859 = vdwg.mxu0
    %v3861 = vsel %vm161, %v3617, 0
    %3863 = vmatprep.subr.mxu0 0.0
    %3864 = vmatpush1.msra.mxu0 %v2475
    %3865 = vmatprep.subr.mxu0 0.0
    %3866 = vmatpush1.msra.mxu0 0.0
    %3867 = vmatprep.subr.mxu0 0.0
    %3868 = vmatpush1.msra.mxu0 0.0
    %3869 = vmatprep.subr.mxu0 0.0
    %3870 = vmatpush1.msra.mxu0 0.0
    %3871 = vmatprep.subr.mxu0 0.0
    %3872 = vmatpush1.msra.mxu0 0.0
    %3873 = vmatprep.subr.mxu0 0.0
    %3874 = vmatpush1.msra.mxu0 0.0
    %3875 = vmatprep.subr.mxu0 0.0
    %3876 = vmatpush1.msra.mxu0 0.0
    %3877 = vmatprep.subr.mxu0 0.0
    %3878 = vmatpush1.msra.mxu0 0.0
    %3879 = vmatprep.subr.mxu0 0.0
    %3880 = vmatpush1.msra.mxu0 0.0
    %3881 = vmatprep.subr.mxu0 0.0
    %3882 = vmatpush1.msra.mxu0 0.0
    %3883 = vmatprep.subr.mxu0 0.0
    %3884 = vmatpush1.msra.mxu0 0.0
    %3885 = vmatprep.subr.mxu0 0.0
    %3886 = vmatpush1.msra.mxu0 0.0
    %3887 = vmatprep.subr.mxu0 0.0
    %3888 = vmatpush1.msra.mxu0 0.0
    %3889 = vmatprep.subr.mxu0 0.0
    %3890 = vmatpush1.msra.mxu0 0.0
    %3891 = vmatprep.subr.mxu0 0.0
    %3892 = vmatpush1.msra.mxu0 0.0
    %3893 = vmatprep.subr.mxu0 0.0
    %3894 = vmatpush1.msra.mxu0 0.0
    %3895 = vmatprep.subr.mxu0 0.0
    %3896 = vmatpush1.msra.mxu0 0.0
    %3897 = vmatprep.subr.mxu0 0.0
    %3898 = vmatpush1.msra.mxu0 0.0
    %3899 = vmatprep.subr.mxu0 0.0
    %3900 = vmatpush1.msra.mxu0 0.0
    %3901 = vmatprep.subr.mxu0 0.0
    %3902 = vmatpush1.msra.mxu0 0.0
    %3903 = vmatprep.subr.mxu0 0.0
    %3904 = vmatpush1.msra.mxu0 0.0
    %3905 = vmatprep.subr.mxu0 0.0
    %3906 = vmatpush1.msra.mxu0 0.0
    %3907 = vmatprep.subr.mxu0 0.0
    %3908 = vmatpush1.msra.mxu0 0.0
    %3909 = vmatprep.subr.mxu0 0.0
    %3910 = vmatpush1.msra.mxu0 0.0
    %3911 = vmatprep.subr.mxu0 0.0
    %3912 = vmatpush1.msra.mxu0 0.0
    %3913 = vmatprep.subr.mxu0 0.0
    %3914 = vmatpush1.msra.mxu0 0.0
    %3915 = vmatprep.subr.mxu0 0.0
    %3916 = vmatpush1.msra.mxu0 0.0
    %3917 = vmatprep.subr.mxu0 0.0
    %3918 = vmatpush1.msra.mxu0 0.0
    %3919 = vmatprep.subr.mxu0 0.0
    %3920 = vmatpush1.msra.mxu0 0.0
    %3921 = vmatprep.subr.mxu0 0.0
    %3922 = vmatpush1.msra.mxu0 0.0
    %3923 = vmatprep.subr.mxu0 0.0
    %3924 = vmatpush1.msra.mxu0 0.0
    %3925 = vmatprep.subr.mxu0 0.0
    %3926 = vmatpush1.msra.mxu0 0.0
    %3927 = vmatprep.mubr.f32.mxu0 0.0
    %3928 = vmatmul.mubr.f32.gmra.mrb[0].mxu0 %v3861
    %v3929 = vpop.f32.mrb[0].mxu0
    %v3930 = vadd.f32 %v3857, %v3929
    %v3931 = vpop.f32.mrb[0].mxu0
    %3932 = vdwg.mxu0
    %3933 = vrot.lane.b32.xlu0 %v2471, 112
    %v3934 = vpop.permute.xlu0 %3933
    %3935 = vrot.lane.b32.xlu0 %v2471, 80
    %v3936 = vpop.permute.xlu0 %3935
    %v3937 = vsel %vm161, %v3934, 0
    %v3939 = vsel %vm161, %v3936, 0
    %3941 = vmatprep.subr.mxu0 0.0
    %3942 = vmatpush1.xpose.msra.mxu0 %v3939
    %3943 = vmatprep.subr.mxu0 0.0
    %3944 = vmatpush1.xpose.msra.mxu0 0.0
    %3945 = vmatprep.subr.mxu0 0.0
    %3946 = vmatpush1.xpose.msra.mxu0 0.0
    %3947 = vmatprep.subr.mxu0 0.0
    %3948 = vmatpush1.xpose.msra.mxu0 0.0
    %3949 = vmatprep.subr.mxu0 0.0
    %3950 = vmatpush1.xpose.msra.mxu0 0.0
    %3951 = vmatprep.subr.mxu0 0.0
    %3952 = vmatpush1.xpose.msra.mxu0 0.0
    %3953 = vmatprep.subr.mxu0 0.0
    %3954 = vmatpush1.xpose.msra.mxu0 0.0
    %3955 = vmatprep.subr.mxu0 0.0
    %3956 = vmatpush1.xpose.msra.mxu0 0.0
    %3957 = vmatprep.subr.mxu0 0.0
    %3958 = vmatpush1.xpose.msra.mxu0 0.0
    %3959 = vmatprep.subr.mxu0 0.0
    %3960 = vmatpush1.xpose.msra.mxu0 0.0
    %3961 = vmatprep.subr.mxu0 0.0
    %3962 = vmatpush1.xpose.msra.mxu0 0.0
    %3963 = vmatprep.subr.mxu0 0.0
    %3964 = vmatpush1.xpose.msra.mxu0 0.0
    %3965 = vmatprep.subr.mxu0 0.0
    %3966 = vmatpush1.xpose.msra.mxu0 0.0
    %3967 = vmatprep.subr.mxu0 0.0
    %3968 = vmatpush1.xpose.msra.mxu0 0.0
    %3969 = vmatprep.subr.mxu0 0.0
    %3970 = vmatpush1.xpose.msra.mxu0 0.0
    %3971 = vmatprep.subr.mxu0 0.0
    %3972 = vmatpush1.xpose.msra.mxu0 0.0
    %3973 = vmatprep.subr.mxu0 0.0
    %3974 = vmatpush1.xpose.msra.mxu0 0.0
    %3975 = vmatprep.subr.mxu0 0.0
    %3976 = vmatpush1.xpose.msra.mxu0 0.0
    %3977 = vmatprep.subr.mxu0 0.0
    %3978 = vmatpush1.xpose.msra.mxu0 0.0
    %3979 = vmatprep.subr.mxu0 0.0
    %3980 = vmatpush1.xpose.msra.mxu0 0.0
    %3981 = vmatprep.subr.mxu0 0.0
    %3982 = vmatpush1.xpose.msra.mxu0 0.0
    %3983 = vmatprep.subr.mxu0 0.0
    %3984 = vmatpush1.xpose.msra.mxu0 0.0
    %3985 = vmatprep.subr.mxu0 0.0
    %3986 = vmatpush1.xpose.msra.mxu0 0.0
    %3987 = vmatprep.subr.mxu0 0.0
    %3988 = vmatpush1.xpose.msra.mxu0 0.0
    %3989 = vmatprep.subr.mxu0 0.0
    %3990 = vmatpush1.xpose.msra.mxu0 0.0
    %3991 = vmatprep.subr.mxu0 0.0
    %3992 = vmatpush1.xpose.msra.mxu0 0.0
    %3993 = vmatprep.subr.mxu0 0.0
    %3994 = vmatpush1.xpose.msra.mxu0 0.0
    %3995 = vmatprep.subr.mxu0 0.0
    %3996 = vmatpush1.xpose.msra.mxu0 0.0
    %3997 = vmatprep.subr.mxu0 0.0
    %3998 = vmatpush1.xpose.msra.mxu0 0.0
    %3999 = vmatprep.subr.mxu0 0.0
    %4000 = vmatpush1.xpose.msra.mxu0 0.0
    %4001 = vmatprep.subr.mxu0 0.0
    %4002 = vmatpush1.xpose.msra.mxu0 0.0
    %4003 = vmatprep.subr.mxu0 0.0
    %4004 = vmatpush1.xpose.msra.mxu0 0.0
    %4005 = vmatprep.mubr.f32.mxu0 0.0
    %4006 = vmatmul.mubr.f32.gmra.mrb[0].mxu0 %v3937
    %v4007 = vpop.f32.mrb[0].mxu0
    %v4008 = vadd.f32 0.0, %v4007
    %v4009 = vpop.f32.mrb[0].mxu0
    %4010 = vdwg.mxu0
    %v4011 = vmul.f32 %v4008, 0.35355338
    %v4012 = vadd.f32 %v4011, %v67
    %v4013 = vsel %vm161, %v4012, -inf
    %4014 = vmax.xlane.f32.xlu0 %v4013
    %v4015 = vpop.xlane.xlu0 %4014
    %v4016 = vsub.f32 %v4012, %v4015
    %v4017 = vmul.f32 %v4016, 1.442695
    %v4018 = vpow.pop %v4017
    %v4019 = vsel %vm161, %v4018, 0.0
    %4020 = vadd.xlane.f32.xlu0 %v4019
    %v4021 = vpop.xlane.xlu0 %4020
    %v4022 = vrcp.pop %v4021
    %v4023 = vmul.f32 %v4018, %v4022
    %4024 = vrot.lane.b32.xlu0 %v2471, 48
    %v4025 = vpop.permute.xlu0 %4024
    %v4028 = vsel %vm161, %v4023, 0
    %4030 = vmatprep.subr.mxu0 0.0
    %4031 = vmatpush1.msra.mxu0 %v4025
    %4032 = vmatprep.subr.mxu0 0.0
    %4033 = vmatpush1.msra.mxu0 0.0
    %4034 = vmatprep.subr.mxu0 0.0
    %4035 = vmatpush1.msra.mxu0 0.0
    %4036 = vmatprep.subr.mxu0 0.0
    %4037 = vmatpush1.msra.mxu0 0.0
    %4038 = vmatprep.subr.mxu0 0.0
    %4039 = vmatpush1.msra.mxu0 0.0
    %4040 = vmatprep.subr.mxu0 0.0
    %4041 = vmatpush1.msra.mxu0 0.0
    %4042 = vmatprep.subr.mxu0 0.0
    %4043 = vmatpush1.msra.mxu0 0.0
    %4044 = vmatprep.subr.mxu0 0.0
    %4045 = vmatpush1.msra.mxu0 0.0
    %4046 = vmatprep.subr.mxu0 0.0
    %4047 = vmatpush1.msra.mxu0 0.0
    %4048 = vmatprep.subr.mxu0 0.0
    %4049 = vmatpush1.msra.mxu0 0.0
    %4050 = vmatprep.subr.mxu0 0.0
    %4051 = vmatpush1.msra.mxu0 0.0
    %4052 = vmatprep.subr.mxu0 0.0
    %4053 = vmatpush1.msra.mxu0 0.0
    %4054 = vmatprep.subr.mxu0 0.0
    %4055 = vmatpush1.msra.mxu0 0.0
    %4056 = vmatprep.subr.mxu0 0.0
    %4057 = vmatpush1.msra.mxu0 0.0
    %4058 = vmatprep.subr.mxu0 0.0
    %4059 = vmatpush1.msra.mxu0 0.0
    %4060 = vmatprep.subr.mxu0 0.0
    %4061 = vmatpush1.msra.mxu0 0.0
    %4062 = vmatprep.subr.mxu0 0.0
    %4063 = vmatpush1.msra.mxu0 0.0
    %4064 = vmatprep.subr.mxu0 0.0
    %4065 = vmatpush1.msra.mxu0 0.0
    %4066 = vmatprep.subr.mxu0 0.0
    %4067 = vmatpush1.msra.mxu0 0.0
    %4068 = vmatprep.subr.mxu0 0.0
    %4069 = vmatpush1.msra.mxu0 0.0
    %4070 = vmatprep.subr.mxu0 0.0
    %4071 = vmatpush1.msra.mxu0 0.0
    %4072 = vmatprep.subr.mxu0 0.0
    %4073 = vmatpush1.msra.mxu0 0.0
    %4074 = vmatprep.subr.mxu0 0.0
    %4075 = vmatpush1.msra.mxu0 0.0
    %4076 = vmatprep.subr.mxu0 0.0
    %4077 = vmatpush1.msra.mxu0 0.0
    %4078 = vmatprep.subr.mxu0 0.0
    %4079 = vmatpush1.msra.mxu0 0.0
    %4080 = vmatprep.subr.mxu0 0.0
    %4081 = vmatpush1.msra.mxu0 0.0
    %4082 = vmatprep.subr.mxu0 0.0
    %4083 = vmatpush1.msra.mxu0 0.0
    %4084 = vmatprep.subr.mxu0 0.0
    %4085 = vmatpush1.msra.mxu0 0.0
    %4086 = vmatprep.subr.mxu0 0.0
    %4087 = vmatpush1.msra.mxu0 0.0
    %4088 = vmatprep.subr.mxu0 0.0
    %4089 = vmatpush1.msra.mxu0 0.0
    %4090 = vmatprep.subr.mxu0 0.0
    %4091 = vmatpush1.msra.mxu0 0.0
    %4092 = vmatprep.subr.mxu0 0.0
    %4093 = vmatpush1.msra.mxu0 0.0
    %4094 = vmatprep.mubr.f32.mxu0 0.0
    %4095 = vmatmul.mubr.f32.gmra.mrb[0].mxu0 %v4028
    %v4096 = vpop.f32.mrb[0].mxu0
    %v4097 = vadd.f32 0.0, %v4096
    %v4098 = vpop.f32.mrb[0].mxu0
    %4099 = vdwg.mxu0
    %v4101 = vsel %vm161, %v4097, 0
    %4103 = vmatprep.subr.mxu0 0.0
    %4104 = vmatpush1.msra.mxu0 %v2477
    %4105 = vmatprep.subr.mxu0 0.0
    %4106 = vmatpush1.msra.mxu0 0.0
    %4107 = vmatprep.subr.mxu0 0.0
    %4108 = vmatpush1.msra.mxu0 0.0
    %4109 = vmatprep.subr.mxu0 0.0
    %4110 = vmatpush1.msra.mxu0 0.0
    %4111 = vmatprep.subr.mxu0 0.0
    %4112 = vmatpush1.msra.mxu0 0.0
    %4113 = vmatprep.subr.mxu0 0.0
    %4114 = vmatpush1.msra.mxu0 0.0
    %4115 = vmatprep.subr.mxu0 0.0
    %4116 = vmatpush1.msra.mxu0 0.0
    %4117 = vmatprep.subr.mxu0 0.0
    %4118 = vmatpush1.msra.mxu0 0.0
    %4119 = vmatprep.subr.mxu0 0.0
    %4120 = vmatpush1.msra.mxu0 0.0
    %4121 = vmatprep.subr.mxu0 0.0
    %4122 = vmatpush1.msra.mxu0 0.0
    %4123 = vmatprep.subr.mxu0 0.0
    %4124 = vmatpush1.msra.mxu0 0.0
    %4125 = vmatprep.subr.mxu0 0.0
    %4126 = vmatpush1.msra.mxu0 0.0
    %4127 = vmatprep.subr.mxu0 0.0
    %4128 = vmatpush1.msra.mxu0 0.0
    %4129 = vmatprep.subr.mxu0 0.0
    %4130 = vmatpush1.msra.mxu0 0.0
    %4131 = vmatprep.subr.mxu0 0.0
    %4132 = vmatpush1.msra.mxu0 0.0
    %4133 = vmatprep.subr.mxu0 0.0
    %4134 = vmatpush1.msra.mxu0 0.0
    %4135 = vmatprep.subr.mxu0 0.0
    %4136 = vmatpush1.msra.mxu0 0.0
    %4137 = vmatprep.subr.mxu0 0.0
    %4138 = vmatpush1.msra.mxu0 0.0
    %4139 = vmatprep.subr.mxu0 0.0
    %4140 = vmatpush1.msra.mxu0 0.0
    %4141 = vmatprep.subr.mxu0 0.0
    %4142 = vmatpush1.msra.mxu0 0.0
    %4143 = vmatprep.subr.mxu0 0.0
    %4144 = vmatpush1.msra.mxu0 0.0
    %4145 = vmatprep.subr.mxu0 0.0
    %4146 = vmatpush1.msra.mxu0 0.0
    %4147 = vmatprep.subr.mxu0 0.0
    %4148 = vmatpush1.msra.mxu0 0.0
    %4149 = vmatprep.subr.mxu0 0.0
    %4150 = vmatpush1.msra.mxu0 0.0
    %4151 = vmatprep.subr.mxu0 0.0
    %4152 = vmatpush1.msra.mxu0 0.0
    %4153 = vmatprep.subr.mxu0 0.0
    %4154 = vmatpush1.msra.mxu0 0.0
    %4155 = vmatprep.subr.mxu0 0.0
    %4156 = vmatpush1.msra.mxu0 0.0
    %4157 = vmatprep.subr.mxu0 0.0
    %4158 = vmatpush1.msra.mxu0 0.0
    %4159 = vmatprep.subr.mxu0 0.0
    %4160 = vmatpush1.msra.mxu0 0.0
    %4161 = vmatprep.subr.mxu0 0.0
    %4162 = vmatpush1.msra.mxu0 0.0
    %4163 = vmatprep.subr.mxu0 0.0
    %4164 = vmatpush1.msra.mxu0 0.0
    %4165 = vmatprep.subr.mxu0 0.0
    %4166 = vmatpush1.msra.mxu0 0.0
    %4167 = vmatprep.mubr.f32.mxu0 0.0
    %4168 = vmatmul.mubr.f32.gmra.mrb[0].mxu0 %v4101
    %v4169 = vpop.f32.mrb[0].mxu0
    %v4170 = vadd.f32 0.0, %v4169
    %v4171 = vpop.f32.mrb[0].mxu0
    %4172 = vdwg.mxu0
    %v4173 = vadd.f32 %v3930, %v4170
    %4174 = vrot.lane.b32.xlu0 %v2471, 104
    %v4175 = vpop.permute.xlu0 %4174
    %4176 = vrot.lane.b32.xlu0 %v2471, 72
    %v4177 = vpop.permute.xlu0 %4176
    %v4178 = vsel %vm161, %v4175, 0
    %v4180 = vsel %vm161, %v4177, 0
    %4182 = vmatprep.subr.mxu0 0.0
    %4183 = vmatpush1.xpose.msra.mxu0 %v4180
    %4184 = vmatprep.subr.mxu0 0.0
    %4185 = vmatpush1.xpose.msra.mxu0 0.0
    %4186 = vmatprep.subr.mxu0 0.0
    %4187 = vmatpush1.xpose.msra.mxu0 0.0
    %4188 = vmatprep.subr.mxu0 0.0
    %4189 = vmatpush1.xpose.msra.mxu0 0.0
    %4190 = vmatprep.subr.mxu0 0.0
    %4191 = vmatpush1.xpose.msra.mxu0 0.0
    %4192 = vmatprep.subr.mxu0 0.0
    %4193 = vmatpush1.xpose.msra.mxu0 0.0
    %4194 = vmatprep.subr.mxu0 0.0
    %4195 = vmatpush1.xpose.msra.mxu0 0.0
    %4196 = vmatprep.subr.mxu0 0.0
    %4197 = vmatpush1.xpose.msra.mxu0 0.0
    %4198 = vmatprep.subr.mxu0 0.0
    %4199 = vmatpush1.xpose.msra.mxu0 0.0
    %4200 = vmatprep.subr.mxu0 0.0
    %4201 = vmatpush1.xpose.msra.mxu0 0.0
    %4202 = vmatprep.subr.mxu0 0.0
    %4203 = vmatpush1.xpose.msra.mxu0 0.0
    %4204 = vmatprep.subr.mxu0 0.0
    %4205 = vmatpush1.xpose.msra.mxu0 0.0
    %4206 = vmatprep.subr.mxu0 0.0
    %4207 = vmatpush1.xpose.msra.mxu0 0.0
    %4208 = vmatprep.subr.mxu0 0.0
    %4209 = vmatpush1.xpose.msra.mxu0 0.0
    %4210 = vmatprep.subr.mxu0 0.0
    %4211 = vmatpush1.xpose.msra.mxu0 0.0
    %4212 = vmatprep.subr.mxu0 0.0
    %4213 = vmatpush1.xpose.msra.mxu0 0.0
    %4214 = vmatprep.subr.mxu0 0.0
    %4215 = vmatpush1.xpose.msra.mxu0 0.0
    %4216 = vmatprep.subr.mxu0 0.0
    %4217 = vmatpush1.xpose.msra.mxu0 0.0
    %4218 = vmatprep.subr.mxu0 0.0
    %4219 = vmatpush1.xpose.msra.mxu0 0.0
    %4220 = vmatprep.subr.mxu0 0.0
    %4221 = vmatpush1.xpose.msra.mxu0 0.0
    %4222 = vmatprep.subr.mxu0 0.0
    %4223 = vmatpush1.xpose.msra.mxu0 0.0
    %4224 = vmatprep.subr.mxu0 0.0
    %4225 = vmatpush1.xpose.msra.mxu0 0.0
    %4226 = vmatprep.subr.mxu0 0.0
    %4227 = vmatpush1.xpose.msra.mxu0 0.0
    %4228 = vmatprep.subr.mxu0 0.0
    %4229 = vmatpush1.xpose.msra.mxu0 0.0
    %4230 = vmatprep.subr.mxu0 0.0
    %4231 = vmatpush1.xpose.msra.mxu0 0.0
    %4232 = vmatprep.subr.mxu0 0.0
    %4233 = vmatpush1.xpose.msra.mxu0 0.0
    %4234 = vmatprep.subr.mxu0 0.0
    %4235 = vmatpush1.xpose.msra.mxu0 0.0
    %4236 = vmatprep.subr.mxu0 0.0
    %4237 = vmatpush1.xpose.msra.mxu0 0.0
    %4238 = vmatprep.subr.mxu0 0.0
    %4239 = vmatpush1.xpose.msra.mxu0 0.0
    %4240 = vmatprep.subr.mxu0 0.0
    %4241 = vmatpush1.xpose.msra.mxu0 0.0
    %4242 = vmatprep.subr.mxu0 0.0
    %4243 = vmatpush1.xpose.msra.mxu0 0.0
    %4244 = vmatprep.subr.mxu0 0.0
    %4245 = vmatpush1.xpose.msra.mxu0 0.0
    %4246 = vmatprep.mubr.f32.mxu0 0.0
    %4247 = vmatmul.mubr.f32.gmra.mrb[0].mxu0 %v4178
    %v4248 = vpop.f32.mrb[0].mxu0
    %v4249 = vadd.f32 0.0, %v4248
    %v4250 = vpop.f32.mrb[0].mxu0
    %4251 = vdwg.mxu0
    %v4252 = vmul.f32 %v4249, 0.35355338
    %v4253 = vadd.f32 %v4252, %v67
    %v4254 = vsel %vm161, %v4253, -inf
    %4255 = vmax.xlane.f32.xlu0 %v4254
    %v4256 = vpop.xlane.xlu0 %4255
    %v4257 = vsub.f32 %v4253, %v4256
    %v4258 = vmul.f32 %v4257, 1.442695
    %v4259 = vpow.pop %v4258
    %v4260 = vsel %vm161, %v4259, 0.0
    %4261 = vadd.xlane.f32.xlu0 %v4260
    %v4262 = vpop.xlane.xlu0 %4261
    %v4263 = vrcp.pop %v4262
    %v4264 = vmul.f32 %v4259, %v4263
    %4265 = vrot.lane.b32.xlu0 %v2471, 40
    %v4266 = vpop.permute.xlu0 %4265
    %v4269 = vsel %vm161, %v4264, 0
    %4271 = vmatprep.subr.mxu0 0.0
    %4272 = vmatpush1.msra.mxu0 %v4266
    %4273 = vmatprep.subr.mxu0 0.0
    %4274 = vmatpush1.msra.mxu0 0.0
    %4275 = vmatprep.subr.mxu0 0.0
    %4276 = vmatpush1.msra.mxu0 0.0
    %4277 = vmatprep.subr.mxu0 0.0
    %4278 = vmatpush1.msra.mxu0 0.0
    %4279 = vmatprep.subr.mxu0 0.0
    %4280 = vmatpush1.msra.mxu0 0.0
    %4281 = vmatprep.subr.mxu0 0.0
    %4282 = vmatpush1.msra.mxu0 0.0
    %4283 = vmatprep.subr.mxu0 0.0
    %4284 = vmatpush1.msra.mxu0 0.0
    %4285 = vmatprep.subr.mxu0 0.0
    %4286 = vmatpush1.msra.mxu0 0.0
    %4287 = vmatprep.subr.mxu0 0.0
    %4288 = vmatpush1.msra.mxu0 0.0
    %4289 = vmatprep.subr.mxu0 0.0
    %4290 = vmatpush1.msra.mxu0 0.0
    %4291 = vmatprep.subr.mxu0 0.0
    %4292 = vmatpush1.msra.mxu0 0.0
    %4293 = vmatprep.subr.mxu0 0.0
    %4294 = vmatpush1.msra.mxu0 0.0
    %4295 = vmatprep.subr.mxu0 0.0
    %4296 = vmatpush1.msra.mxu0 0.0
    %4297 = vmatprep.subr.mxu0 0.0
    %4298 = vmatpush1.msra.mxu0 0.0
    %4299 = vmatprep.subr.mxu0 0.0
    %4300 = vmatpush1.msra.mxu0 0.0
    %4301 = vmatprep.subr.mxu0 0.0
    %4302 = vmatpush1.msra.mxu0 0.0
    %4303 = vmatprep.subr.mxu0 0.0
    %4304 = vmatpush1.msra.mxu0 0.0
    %4305 = vmatprep.subr.mxu0 0.0
    %4306 = vmatpush1.msra.mxu0 0.0
    %4307 = vmatprep.subr.mxu0 0.0
    %4308 = vmatpush1.msra.mxu0 0.0
    %4309 = vmatprep.subr.mxu0 0.0
    %4310 = vmatpush1.msra.mxu0 0.0
    %4311 = vmatprep.subr.mxu0 0.0
    %4312 = vmatpush1.msra.mxu0 0.0
    %4313 = vmatprep.subr.mxu0 0.0
    %4314 = vmatpush1.msra.mxu0 0.0
    %4315 = vmatprep.subr.mxu0 0.0
    %4316 = vmatpush1.msra.mxu0 0.0
    %4317 = vmatprep.subr.mxu0 0.0
    %4318 = vmatpush1.msra.mxu0 0.0
    %4319 = vmatprep.subr.mxu0 0.0
    %4320 = vmatpush1.msra.mxu0 0.0
    %4321 = vmatprep.subr.mxu0 0.0
    %4322 = vmatpush1.msra.mxu0 0.0
    %4323 = vmatprep.subr.mxu0 0.0
    %4324 = vmatpush1.msra.mxu0 0.0
    %4325 = vmatprep.subr.mxu0 0.0
    %4326 = vmatpush1.msra.mxu0 0.0
    %4327 = vmatprep.subr.mxu0 0.0
    %4328 = vmatpush1.msra.mxu0 0.0
    %4329 = vmatprep.subr.mxu0 0.0
    %4330 = vmatpush1.msra.mxu0 0.0
    %4331 = vmatprep.subr.mxu0 0.0
    %4332 = vmatpush1.msra.mxu0 0.0
    %4333 = vmatprep.subr.mxu0 0.0
    %4334 = vmatpush1.msra.mxu0 0.0
    %4335 = vmatprep.mubr.f32.mxu0 0.0
    %4336 = vmatmul.mubr.f32.gmra.mrb[0].mxu0 %v4269
    %v4337 = vpop.f32.mrb[0].mxu0
    %v4338 = vadd.f32 0.0, %v4337
    %v4339 = vpop.f32.mrb[0].mxu0
    %4340 = vdwg.mxu0
    %v4342 = vsel %vm161, %v4338, 0
    %4344 = vmatprep.subr.mxu0 0.0
    %4345 = vmatpush1.msra.mxu0 %v2478
    %4346 = vmatprep.subr.mxu0 0.0
    %4347 = vmatpush1.msra.mxu0 0.0
    %4348 = vmatprep.subr.mxu0 0.0
    %4349 = vmatpush1.msra.mxu0 0.0
    %4350 = vmatprep.subr.mxu0 0.0
    %4351 = vmatpush1.msra.mxu0 0.0
    %4352 = vmatprep.subr.mxu0 0.0
    %4353 = vmatpush1.msra.mxu0 0.0
    %4354 = vmatprep.subr.mxu0 0.0
    %4355 = vmatpush1.msra.mxu0 0.0
    %4356 = vmatprep.subr.mxu0 0.0
    %4357 = vmatpush1.msra.mxu0 0.0
    %4358 = vmatprep.subr.mxu0 0.0
    %4359 = vmatpush1.msra.mxu0 0.0
    %4360 = vmatprep.subr.mxu0 0.0
    %4361 = vmatpush1.msra.mxu0 0.0
    %4362 = vmatprep.subr.mxu0 0.0
    %4363 = vmatpush1.msra.mxu0 0.0
    %4364 = vmatprep.subr.mxu0 0.0
    %4365 = vmatpush1.msra.mxu0 0.0
    %4366 = vmatprep.subr.mxu0 0.0
    %4367 = vmatpush1.msra.mxu0 0.0
    %4368 = vmatprep.subr.mxu0 0.0
    %4369 = vmatpush1.msra.mxu0 0.0
    %4370 = vmatprep.subr.mxu0 0.0
    %4371 = vmatpush1.msra.mxu0 0.0
    %4372 = vmatprep.subr.mxu0 0.0
    %4373 = vmatpush1.msra.mxu0 0.0
    %4374 = vmatprep.subr.mxu0 0.0
    %4375 = vmatpush1.msra.mxu0 0.0
    %4376 = vmatprep.subr.mxu0 0.0
    %4377 = vmatpush1.msra.mxu0 0.0
    %4378 = vmatprep.subr.mxu0 0.0
    %4379 = vmatpush1.msra.mxu0 0.0
    %4380 = vmatprep.subr.mxu0 0.0
    %4381 = vmatpush1.msra.mxu0 0.0
    %4382 = vmatprep.subr.mxu0 0.0
    %4383 = vmatpush1.msra.mxu0 0.0
    %4384 = vmatprep.subr.mxu0 0.0
    %4385 = vmatpush1.msra.mxu0 0.0
    %4386 = vmatprep.subr.mxu0 0.0
    %4387 = vmatpush1.msra.mxu0 0.0
    %4388 = vmatprep.subr.mxu0 0.0
    %4389 = vmatpush1.msra.mxu0 0.0
    %4390 = vmatprep.subr.mxu0 0.0
    %4391 = vmatpush1.msra.mxu0 0.0
    %4392 = vmatprep.subr.mxu0 0.0
    %4393 = vmatpush1.msra.mxu0 0.0
    %4394 = vmatprep.subr.mxu0 0.0
    %4395 = vmatpush1.msra.mxu0 0.0
    %4396 = vmatprep.subr.mxu0 0.0
    %4397 = vmatpush1.msra.mxu0 0.0
    %4398 = vmatprep.subr.mxu0 0.0
    %4399 = vmatpush1.msra.mxu0 0.0
    %4400 = vmatprep.subr.mxu0 0.0
    %4401 = vmatpush1.msra.mxu0 0.0
    %4402 = vmatprep.subr.mxu0 0.0
    %4403 = vmatpush1.msra.mxu0 0.0
    %4404 = vmatprep.subr.mxu0 0.0
    %4405 = vmatpush1.msra.mxu0 0.0
    %4406 = vmatprep.subr.mxu0 0.0
    %4407 = vmatpush1.msra.mxu0 0.0
    %4408 = vmatprep.mubr.f32.mxu0 0.0
    %4409 = vmatmul.mubr.f32.gmra.mrb[0].mxu0 %v4342
    %v4410 = vpop.f32.mrb[0].mxu0
    %v4411 = vadd.f32 0.0, %v4410
    %v4412 = vpop.f32.mrb[0].mxu0
    %4413 = vdwg.mxu0
    %v4414 = vadd.f32 %v4173, %v4411
    %4415 = vrot.lane.b32.xlu0 %v3710, 8
    %v4416 = vpop.permute.xlu0 %4415
    %4418 = vrot.lane.b32.xlu0 %v4023, 16
    %v4419 = vpop.permute.xlu0 %4418
    %4421 = vrot.lane.b32.xlu0 %v4264, 24
    %v4422 = vpop.permute.xlu0 %4421
    %v4424 = vsel %vm161, %v3543, %v4416
    %v4425 = vsel %vm1130, %v4424, %v4419
    %v4426 = vsel %vm1132, %v4425, %v4422
    %s4427 = scalar_lea.vmem [#allocation8], 24
    %4428 = vst.msk [vmem:[%s4427] sm:$0xff] %vm72, %v4426
    %s4429 = scalar_lea.vmem %s4, 1
    %v4430 = vld [vmem:[%s4429] sm:$0x1]
    %s4431 = scalar_lea.vmem %s5, 1
    %v4432 = vld [vmem:[%s4431] sm:$0x1]
    %v4433 = vadd.f32 %v3439, %v2386
    %v4434 = vadd.f32 %v4414, %v2387
    %v4435 = vsel %vm72, %v4433, 0.0
    %4436 = vadd.xlane.f32.xlu0 %v4435
    %v4437 = vpop.xlane.xlu0 %4436
    %v4438 = vsel %vm72, %v4434, 0.0
    %4439 = vadd.xlane.f32.xlu0 %v4438
    %v4440 = vpop.xlane.xlu0 %4439
    %v4441 = vmul.f32 %v4437, %v2120
    %v4442 = vmul.f32 %v4440, %v2120
    %v4443 = vmul.f32 %v4433, %v4433
    %v4444 = vmul.f32 %v4434, %v4434
    %v4445 = vsel %vm72, %v4443, 0.0
    %4446 = vadd.xlane.f32.xlu0 %v4445
    %v4447 = vpop.xlane.xlu0 %4446
    %v4448 = vsel %vm72, %v4444, 0.0
    %4449 = vadd.xlane.f32.xlu0 %v4448
    %v4450 = vpop.xlane.xlu0 %4449
    %v4451 = vmul.f32 %v4447, %v2120
    %v4452 = vmul.f32 %v4450, %v2120
    %v4453 = vsub.f32 %v4433, %v4441
    %v4454 = vsub.f32 %v4434, %v4442
    %v4455 = vmul.f32 %v4441, %v4441
    %v4456 = vmul.f32 %v4442, %v4442
    %v4457 = vsub.f32 %v4451, %v4455
    %v4458 = vsub.f32 %v4452, %v4456
    %v4459 = vadd.f32 %v4457, 1e-05
    %v4460 = vadd.f32 %v4458, 1e-05
    %v4461 = vrsqrt.pop %v4459
    %v4462 = vrsqrt.pop %v4460
    %v4463 = vmul.f32 %v4453, %v4461
    %v4464 = vmul.f32 %v4454, %v4462
    %v4466 = vlaneseq
    %v4467 = vshrl.u32 %v4466, 7
    %v4468 = vsub.s32 0, %v4467
    %v4469 = vrot.slane %v4430, %v4468
    %v4471 = vmul.f32 %v4463, %v4469
    %v4472 = vmul.f32 %v4464, %v4469
    %v4474 = vlaneseq
    %v4475 = vshrl.u32 %v4474, 7
    %v4476 = vsub.s32 0, %v4475
    %v4477 = vrot.slane %v4432, %v4476
    %v4479 = vadd.f32 %v4471, %v4477
    %v4480 = vadd.f32 %v4472, %v4477
    %s4481 = scalar_lea.vmem %s6, 32
    %v4482 = vld [vmem:[%s4481] sm:$0xff]
    %v4483 = vld [vmem:[%s4481 + $0x8] sm:$0xff]
    %v4484 = vld [vmem:[%s4481 + $0x10] sm:$0xff]
    %v4485 = vld [vmem:[%s4481 + $0x18] sm:$0xff]
    %s4486 = scalar_lea.vmem %s7, 1
    %v4487 = vld [vmem:[%s4486] sm:$0x1]
    %v4489 = vlaneseq
    %v4490 = vshrl.u32 %v4489, 7
    %v4491 = vsub.s32 0, %v4490
    %v4492 = vrot.slane %v4487, %v4491
    %v4495 = vsel %vm72, %v4479, 0
    %v4498 = vsel %vm72, %v4480, 0
    %4500 = vmatprep.subr.mxu0 0.0
    %4501 = vmatpush1.msra.mxu0 %v4482
    %4502 = vmatprep.subr.mxu0 0.0
    %4503 = vmatpush1.msra.mxu0 %v4483
    %4504 = vmatprep.subr.mxu0 0.0
    %4505 = vmatpush1.msra.mxu0 %v4484
    %4506 = vmatprep.subr.mxu0 0.0
    %4507 = vmatpush1.msra.mxu0 %v4485
    %4508 = vmatprep.subr.mxu0 0.0
    %4509 = vmatpush1.msra.mxu0 0.0
    %4510 = vmatprep.subr.mxu0 0.0
    %4511 = vmatpush1.msra.mxu0 0.0
    %4512 = vmatprep.subr.mxu0 0.0
    %4513 = vmatpush1.msra.mxu0 0.0
    %4514 = vmatprep.subr.mxu0 0.0
    %4515 = vmatpush1.msra.mxu0 0.0
    %4516 = vmatprep.subr.mxu0 0.0
    %4517 = vmatpush1.msra.mxu0 0.0
    %4518 = vmatprep.subr.mxu0 0.0
    %4519 = vmatpush1.msra.mxu0 0.0
    %4520 = vmatprep.subr.mxu0 0.0
    %4521 = vmatpush1.msra.mxu0 0.0
    %4522 = vmatprep.subr.mxu0 0.0
    %4523 = vmatpush1.msra.mxu0 0.0
    %4524 = vmatprep.subr.mxu0 0.0
    %4525 = vmatpush1.msra.mxu0 0.0
    %4526 = vmatprep.subr.mxu0 0.0
    %4527 = vmatpush1.msra.mxu0 0.0
    %4528 = vmatprep.subr.mxu0 0.0
    %4529 = vmatpush1.msra.mxu0 0.0
    %4530 = vmatprep.subr.mxu0 0.0
    %4531 = vmatpush1.msra.mxu0 0.0
    %4532 = vmatprep.subr.mxu0 0.0
    %4533 = vmatpush1.msra.mxu0 0.0
    %4534 = vmatprep.subr.mxu0 0.0
    %4535 = vmatpush1.msra.mxu0 0.0
    %4536 = vmatprep.subr.mxu0 0.0
    %4537 = vmatpush1.msra.mxu0 0.0
    %4538 = vmatprep.subr.mxu0 0.0
    %4539 = vmatpush1.msra.mxu0 0.0
    %4540 = vmatprep.subr.mxu0 0.0
    %4541 = vmatpush1.msra.mxu0 0.0
    %4542 = vmatprep.subr.mxu0 0.0
    %4543 = vmatpush1.msra.mxu0 0.0
    %4544 = vmatprep.subr.mxu0 0.0
    %4545 = vmatpush1.msra.mxu0 0.0
    %4546 = vmatprep.subr.mxu0 0.0
    %4547 = vmatpush1.msra.mxu0 0.0
    %4548 = vmatprep.subr.mxu0 0.0
    %4549 = vmatpush1.msra.mxu0 0.0
    %4550 = vmatprep.subr.mxu0 0.0
    %4551 = vmatpush1.msra.mxu0 0.0
    %4552 = vmatprep.subr.mxu0 0.0
    %4553 = vmatpush1.msra.mxu0 0.0
    %4554 = vmatprep.subr.mxu0 0.0
    %4555 = vmatpush1.msra.mxu0 0.0
    %4556 = vmatprep.subr.mxu0 0.0
    %4557 = vmatpush1.msra.mxu0 0.0
    %4558 = vmatprep.subr.mxu0 0.0
    %4559 = vmatpush1.msra.mxu0 0.0
    %4560 = vmatprep.subr.mxu0 0.0
    %4561 = vmatpush1.msra.mxu0 0.0
    %4562 = vmatprep.subr.mxu0 0.0
    %4563 = vmatpush1.msra.mxu0 0.0
    %4564 = vmatprep.mubr.f32.mxu0 0.0
    %4565 = vmatmul.mubr.f32.gmra.mrb[0].mxu0 %v4495
    %v4566 = vpop.f32.mrb[0].mxu0
    %v4567 = vadd.f32 %v4492, %v4566
    %v4568 = vpop.f32.mrb[0].mxu0
    %4569 = vmatprep.mubr.f32.mxu0 0.0
    %4570 = vmatmul.mubr.f32.gmra.mrb[0].mxu0 %v4498
    %v4571 = vpop.f32.mrb[0].mxu0
    %v4572 = vadd.f32 %v4492, %v4571
    %v4573 = vpop.f32.mrb[0].mxu0
    %4574 = vdwg.mxu0
    %v4575 = vmax.f32 %v4567, 0.0
    %v4576 = vmax.f32 %v4572, 0.0
    %s4577 = scalar_lea.vmem %s8, 64
    %v4578 = vld [vmem:[%s4577] sm:$0xff]
    %v4579 = vld [vmem:[%s4577 + $0x8] sm:$0xff]
    %v4580 = vld [vmem:[%s4577 + $0x10] sm:$0xff]
    %v4581 = vld [vmem:[%s4577 + $0x18] sm:$0xff]
    %v4582 = vld [vmem:[%s4577 + $0x20] sm:$0xff]
    %v4583 = vld [vmem:[%s4577 + $0x28] sm:$0xff]
    %v4584 = vld [vmem:[%s4577 + $0x30] sm:$0xff]
    %v4585 = vld [vmem:[%s4577 + $0x38] sm:$0xff]
    %s4586 = scalar_lea.vmem %s9, 1
    %v4587 = vld [vmem:[%s4586] sm:$0x1]
    %v4589 = vlaneseq
    %v4590 = vshrl.u32 %v4589, 7
    %v4591 = vsub.s32 0, %v4590
    %v4592 = vrot.slane %v4587, %v4591
    %v4595 = vsel %vm2270, %v4575, 0
    %v4598 = vsel %vm2270, %v4576, 0
    %4600 = vmatprep.subr.mxu0 0.0
    %4601 = vmatpush1.msra.mxu0 %v4578
    %4602 = vmatprep.subr.mxu0 0.0
    %4603 = vmatpush1.msra.mxu0 %v4579
    %4604 = vmatprep.subr.mxu0 0.0
    %4605 = vmatpush1.msra.mxu0 %v4580
    %4606 = vmatprep.subr.mxu0 0.0
    %4607 = vmatpush1.msra.mxu0 %v4581
    %4608 = vmatprep.subr.mxu0 0.0
    %4609 = vmatpush1.msra.mxu0 %v4582
    %4610 = vmatprep.subr.mxu0 0.0
    %4611 = vmatpush1.msra.mxu0 %v4583
    %4612 = vmatprep.subr.mxu0 0.0
    %4613 = vmatpush1.msra.mxu0 %v4584
    %4614 = vmatprep.subr.mxu0 0.0
    %4615 = vmatpush1.msra.mxu0 %v4585
    %4616 = vmatprep.subr.mxu0 0.0
    %4617 = vmatpush1.msra.mxu0 0.0
    %4618 = vmatprep.subr.mxu0 0.0
    %4619 = vmatpush1.msra.mxu0 0.0
    %4620 = vmatprep.subr.mxu0 0.0
    %4621 = vmatpush1.msra.mxu0 0.0
    %4622 = vmatprep.subr.mxu0 0.0
    %4623 = vmatpush1.msra.mxu0 0.0
    %4624 = vmatprep.subr.mxu0 0.0
    %4625 = vmatpush1.msra.mxu0 0.0
    %4626 = vmatprep.subr.mxu0 0.0
    %4627 = vmatpush1.msra.mxu0 0.0
    %4628 = vmatprep.subr.mxu0 0.0
    %4629 = vmatpush1.msra.mxu0 0.0
    %4630 = vmatprep.subr.mxu0 0.0
    %4631 = vmatpush1.msra.mxu0 0.0
    %4632 = vmatprep.subr.mxu0 0.0
    %4633 = vmatpush1.msra.mxu0 0.0
    %4634 = vmatprep.subr.mxu0 0.0
    %4635 = vmatpush1.msra.mxu0 0.0
    %4636 = vmatprep.subr.mxu0 0.0
    %4637 = vmatpush1.msra.mxu0 0.0
    %4638 = vmatprep.subr.mxu0 0.0
    %4639 = vmatpush1.msra.mxu0 0.0
    %4640 = vmatprep.subr.mxu0 0.0
    %4641 = vmatpush1.msra.mxu0 0.0
    %4642 = vmatprep.subr.mxu0 0.0
    %4643 = vmatpush1.msra.mxu0 0.0
    %4644 = vmatprep.subr.mxu0 0.0
    %4645 = vmatpush1.msra.mxu0 0.0
    %4646 = vmatprep.subr.mxu0 0.0
    %4647 = vmatpush1.msra.mxu0 0.0
    %4648 = vmatprep.subr.mxu0 0.0
    %4649 = vmatpush1.msra.mxu0 0.0
    %4650 = vmatprep.subr.mxu0 0.0
    %4651 = vmatpush1.msra.mxu0 0.0
    %4652 = vmatprep.subr.mxu0 0.0
    %4653 = vmatpush1.msra.mxu0 0.0
    %4654 = vmatprep.subr.mxu0 0.0
    %4655 = vmatpush1.msra.mxu0 0.0
    %4656 = vmatprep.subr.mxu0 0.0
    %4657 = vmatpush1.msra.mxu0 0.0
    %4658 = vmatprep.subr.mxu0 0.0
    %4659 = vmatpush1.msra.mxu0 0.0
    %4660 = vmatprep.subr.mxu0 0.0
    %4661 = vmatpush1.msra.mxu0 0.0
    %4662 = vmatprep.subr.mxu0 0.0
    %4663 = vmatpush1.msra.mxu0 0.0
    %4664 = vmatprep.mubr.f32.mxu0 0.0
    %4665 = vmatmul.mubr.f32.gmra.mrb[0].mxu0 %v4595
    %v4666 = vpop.f32.mrb[0].mxu0
    %v4667 = vadd.f32 %v4592, %v4666
    %v4668 = vpop.f32.mrb[0].mxu0
    %4669 = vmatprep.mubr.f32.mxu0 0.0
    %4670 = vmatmul.mubr.f32.gmra.mrb[0].mxu0 %v4598
    %v4671 = vpop.f32.mrb[0].mxu0
    %v4672 = vadd.f32 %v4592, %v4671
    %v4673 = vpop.f32.mrb[0].mxu0
    %4674 = vdwg.mxu0
    %v4675 = vadd.f32 %v4667, %v4479
    %v4676 = vadd.f32 %v4672, %v4480
    %v4677 = vsel %vm72, %v4675, 0.0
    %4678 = vadd.xlane.f32.xlu0 %v4677
    %v4679 = vpop.xlane.xlu0 %4678
    %v4680 = vsel %vm72, %v4676, 0.0
    %4681 = vadd.xlane.f32.xlu0 %v4680
    %v4682 = vpop.xlane.xlu0 %4681
    %v4683 = vmul.f32 %v4679, %v2120
    %v4684 = vmul.f32 %v4682, %v2120
    %v4685 = vmul.f32 %v4675, %v4675
    %v4686 = vmul.f32 %v4676, %v4676
    %v4687 = vsel %vm72, %v4685, 0.0
    %4688 = vadd.xlane.f32.xlu0 %v4687
    %v4689 = vpop.xlane.xlu0 %4688
    %v4690 = vsel %vm72, %v4686, 0.0
    %4691 = vadd.xlane.f32.xlu0 %v4690
    %v4692 = vpop.xlane.xlu0 %4691
    %v4693 = vmul.f32 %v4689, %v2120
    %v4694 = vmul.f32 %v4692, %v2120
    %v4695 = vsub.f32 %v4675, %v4683
    %v4696 = vsub.f32 %v4676, %v4684
    %v4697 = vmul.f32 %v4683, %v4683
    %v4698 = vmul.f32 %v4684, %v4684
    %v4699 = vsub.f32 %v4693, %v4697
    %v4700 = vsub.f32 %v4694, %v4698
    %v4701 = vadd.f32 %v4699, 1e-05
    %v4702 = vadd.f32 %v4700, 1e-05
    %v4703 = vrsqrt.pop %v4701
    %v4704 = vrsqrt.pop %v4702
    %v4705 = vmul.f32 %v4695, %v4703
    %v4706 = vmul.f32 %v4696, %v4704
    %v4707 = vmul.f32 %v4705, %v4469
    %v4708 = vmul.f32 %v4706, %v4469
    %v4709 = vadd.f32 %v4707, %v4477
    %v4710 = vadd.f32 %v4708, %v4477
    %4711 = vst.msk [vmem:[#allocation7] sm:$0xff] %vm72, %v4709
    %4712 = vst.msk [vmem:[#allocation7 + $0x8] sm:$0xff] %vm72, %v4710
    // Predicated region
    $region50: #{tpu_custom_call.1} parent=1 // pred_check
      _
    $region51: #{tpu_custom_call.1} parent=1 // pred_check_branch
      %4714 = sbr.rel (0) target = $region53
    $region52: #{tpu_custom_call.1} parent=1 // pred_region
      %s4716 = ssub.s32 256, 256
      %4717 = vsyncadd [#allocation4], %s4716
      %s4718 = sshll.u32 [#allocation7], 4
      %s4719 = int_to_ptr.vmem [resolvable:$true] %s4718
      %4724 = dma.vmem_to_hbm [thread:$0]  %s4719, 256, %s10, [#allocation4], 128, 128, 8
    $region53: #{tpu_custom_call.1} parent=1 // pred_fallthru
      _
    // Predicated region
    $region54: #{tpu_custom_call.1} parent=1 // pred_check
      _
    $region55: #{tpu_custom_call.1} parent=1 // pred_check_branch
      %4726 = sbr.rel (0) target = $region57
    $region56: #{tpu_custom_call.1} parent=1 // pred_region
      %s4728 = ssub.s32 512, 512
      %4729 = vsyncadd [#allocation9], %s4728
      %s4730 = sshll.u32 [#allocation8], 4
      %s4731 = int_to_ptr.vmem [resolvable:$true] %s4730
      %4736 = dma.vmem_to_hbm [thread:$0]  %s4731, 512, %s11, [#allocation9], 128, 128, 8
    $region57: #{tpu_custom_call.1} parent=1 // pred_fallthru
      _
    // Predicated region
    $region58: #{tpu_custom_call.1} parent=1 // pred_check
      _
    $region59: #{tpu_custom_call.1} parent=1 // pred_check_branch
      %4738 = sbr.rel (0) target = $region61
    $region60: #{tpu_custom_call.1} parent=1 // pred_region
      %4739 = dma.done [#allocation4], 256
    $region61: #{tpu_custom_call.1} parent=1 // pred_fallthru
      _
    // Predicated region
    $region62: #{tpu_custom_call.1} parent=1 // pred_check
      _
    $region63: #{tpu_custom_call.1} parent=1 // pred_check_branch
      %4741 = sbr.rel (0) target = $region65
    $region64: #{tpu_custom_call.1} parent=1 // pred_region
      %4742 = dma.done [#allocation9], 512
    $region65: #{tpu_custom_call.1} parent=1 // pred_fallthru
      _
    %4743 = vsyncpa [#allocation3], 1
    %4744 = vsyncpa [#allocation6], 1
    %4745 = vsyncpa [#allocation4], 1
    %4746 = vsyncpa [#allocation9], 1

</llo_original>
